<compile_context>
chip_gen: v5e
topology: v5e:2x2
jax: 0.10.0
libtpu: 0.0.40
codegen_flags: <defaults>
</compile_context>

<pallas_src>
import functools

import jax
import jax.numpy as jnp
from jax import lax
from jax.experimental import pallas as pl
from jax.experimental.pallas import tpu as pltpu

EPS = 1e-5


# ----------------------------- kernel helpers ------------------------------

def _conv3x3_rows(rows, wk):
    """3x3 conv (stride 1, reflect width-pad of 1) over an H-haloed row strip.

    rows: (TH+2, W, C) value in the matmul compute dtype; rows 0 / TH+1 are
          the (possibly reflected) top/bottom halos supplied by the caller.
    wk:   (3, 3*C, Cout) weights with wk[dx] = w[:, dx].reshape(3*C, Cout)
          (dy-major, Cin-minor), i.e. the three dy taps merged into the
          contraction dim -> one MXU matmul per dx with K = 3*C.

    Returns (TH, W, Cout) float32.
    """
    thp2, w, c = rows.shape
    th = thp2 - 2
    cout = wk.shape[-1]

    # dy-merged operand: X3[i, j, :] = [rows[i, j], rows[i+1, j], rows[i+2, j]].
    # Built once per tile from three free leading-dim views; shared by all dx.
    x3 = jnp.concatenate([rows[0:th], rows[1:th + 1], rows[2:th + 2]], axis=-1)
    x3 = x3.reshape(th * w, 3 * c)

    p = []
    for dx in range(3):
        pd = jnp.dot(x3, wk[dx], preferred_element_type=jnp.float32)
        p.append(pd.reshape(th, w, cout))

    # Width taps: shift the per-dx *outputs* one column instead of building a
    # (W+2)-wide padded input. Reflected border: col -1 -> col 1, col W -> W-2.
    left = jnp.concatenate([p[0][:, 1:2, :], p[0][:, :w - 1, :]], axis=1)
    right = jnp.concatenate([p[2][:, 1:, :], p[2][:, w - 2:w - 1, :]], axis=1)
    return left + p[1] + right


def _partial_stats(v):
    """Per-channel (sum, sum of squares) of a (TH, W, C) f32 tile -> (1,1,2,C)."""
    ssum = jnp.sum(v, axis=(0, 1), keepdims=True)          # (1, 1, C)
    ssq = jnp.sum(v * v, axis=(0, 1), keepdims=True)       # (1, 1, C)
    return jnp.concatenate([ssum, ssq], axis=1)[None]      # (1, 1, 2, C)


# -------------------------------- kernels ----------------------------------

def _conv_stats_kernel(xm_ref, xt_ref, xb_ref, w_ref, y_ref, st_ref):
    # Pass 1: conv1 on an H-haloed strip; emit BN1 partial stats (f32, pre-cast).
    rows = jnp.concatenate([xt_ref[0], xm_ref[0], xb_ref[0]], axis=0)
    y = _conv3x3_rows(rows.astype(w_ref.dtype), w_ref[...])
    y_ref[0] = y.astype(y_ref.dtype)
    st_ref[...] = _partial_stats(y)


def _bn_prelu_conv_stats_kernel(ym_ref, yt_ref, yb_ref, s_ref, t_ref, a_ref,
                                w_ref, z_ref, st_ref):
    # Pass 2: folded BN1 (scale/shift) + PReLU in f32, then conv2; BN2 stats.
    c = ym_ref.shape[-1]
    rows = jnp.concatenate([yt_ref[0], ym_ref[0], yb_ref[0]],
                           axis=0).astype(jnp.float32)
    scale = s_ref[...].reshape(1, 1, c)
    shift = t_ref[...].reshape(1, 1, c)
    alpha = a_ref[...].reshape(1, 1, c)
    h = rows * scale + shift                   # BatchNorm1 (folded)
    h = jnp.where(h > 0, h, alpha * h)         # PReLU (per channel)
    z = _conv3x3_rows(h.astype(w_ref.dtype), w_ref[...])
    z_ref[0] = z.astype(z_ref.dtype)
    st_ref[...] = _partial_stats(z)


def _bn_residual_kernel(zm_ref, xm_ref, s_ref, t_ref, o_ref):
    # Pass 3: folded BN2 + identity shortcut, single fused elementwise pass.
    c = o_ref.shape[-1]
    scale = s_ref[...].reshape(1, 1, c)
    shift = t_ref[...].reshape(1, 1, c)
    o_ref[...] = (xm_ref[...].astype(jnp.float32)
                  + zm_ref[...].astype(jnp.float32) * scale
                  + shift).astype(o_ref.dtype)


# ------------------------------ host wrapper --------------------------------

def _vmem_capacity_bytes():
    try:
        cap = getattr(pltpu.get_tpu_info(), "vmem_capacity_bytes", None)
        if cap:
            return int(cap)
    except Exception:
        pass
    return 64 * 1024 * 1024      # conservative fallback (v7x per-TC VMEM)


def _pick_tile_h(n, h, w, c, budget_bytes):
    # ~12 live f32 row-equivalents per grid step (double-buffered in/out blocks
    # + dy-merged (3C) operand + per-dx conv outputs + shifted copies).
    per_row = max(1, 12 * w * max(c, 8) * 4)
    th = max(1, min(h, budget_bytes // per_row, 512))
    while h % th:                 # largest divisor of H not above the cap
        th -= 1
    # v7x megacore: keep an even number of parallel grid steps when N == 1.
    if n == 1 and (h // th) % 2 and th > 1:
        t = th - 1
        while t >= 1 and (h % t or (h // t) % 2):
            t -= 1
        if t >= 1:
            th = t
    return int(th)


def _pick_tile_rows(rows, w, c, budget_bytes):
    per_row = max(1, 6 * w * max(c, 8) * 4)
    r = max(1, min(rows, budget_bytes // per_row, 4096))
    while rows % r:
        r -= 1
    if r == rows and rows % 2 == 0:     # at least 2 parallel steps (v7x 2 TCs)
        r = rows // 2
    return int(r)


def _reflect_top_row(i, th):
    r = i * th - 1
    return jnp.maximum(r, -r)              # row -1 reflects to row 1


def _reflect_bot_row(i, th, h):
    r = (i + 1) * th
    d = (h - 1) - r
    return (h - 1) - jnp.maximum(d, -d)    # row H reflects to row H-2


def _pack_weight(w_hwio, compute_dtype):
    """(3, 3, Cin, Cout) HWIO -> (3[dx], 3*Cin, Cout), dy-major along K."""
    cout = w_hwio.shape[-1]
    return jnp.stack([w_hwio[:, dx].reshape(-1, cout) for dx in range(3)],
                     axis=0).astype(compute_dtype)


def _bn_scale_shift(partial_stats, gamma, beta, count):
    """Fold training-mode BatchNorm into per-channel scale/shift, shape (1, C)."""
    s = jnp.sum(partial_stats, axis=(0, 1))              # (2, C)
    mean = s[0] / count
    var = jnp.maximum(s[1] / count - mean * mean, 0.0)   # biased batch variance
    scale = gamma * lax.rsqrt(var + EPS)
    shift = beta - mean * scale
    return (scale.reshape(1, -1).astype(jnp.float32),
            shift.reshape(1, -1).astype(jnp.float32))


def residual_block_nhwc(x, params, *, tile_h=None,
                        act_dtype=jnp.bfloat16, compute_dtype=jnp.bfloat16):
    """x: (N, H, W, C) float32 NHWC -> (N, H, W, C) float32 (preferred path).

    act_dtype:     HBM storage dtype of the y/z intermediates.
    compute_dtype: MXU matmul operand dtype (accumulation always f32).
    """
    n, h, w, c = x.shape
    assert h >= 2 and w >= 2, "ReflectionPad2d(1) requires H, W >= 2"
    cout = params["w1"].shape[-1]
    assert cout == c, "identity shortcut requires c_in == c_out (scale='none')"

    vmem_cap = _vmem_capacity_bytes()
    vmem_limit = int(min(max(vmem_cap // 2, 32 * 1024 * 1024), 96 * 1024 * 1024))
    budget = vmem_limit // 3
    th = tile_h if tile_h is not None else _pick_tile_h(n, h, w, c, budget)
    assert h % th == 0
    n_h = h // th
    grid = (n, n_h)

    tile_spec = pl.BlockSpec((1, th, w, c), lambda b, i: (b, i, 0, 0))
    top_spec = pl.BlockSpec((1, 1, w, c),
                            lambda b, i: (b, _reflect_top_row(i, th), 0, 0))
    bot_spec = pl.BlockSpec((1, 1, w, c),
                            lambda b, i: (b, _reflect_bot_row(i, th, h), 0, 0))
    # Constant index_map -> double-buffering buys nothing.
    # TODO(synk): single-buffer via pipeline_mode=pl.Buffered(1) once stable.
    wgt_spec = pl.BlockSpec((3, 3 * c, cout), lambda b, i: (0, 0, 0))
    vec_spec = pl.BlockSpec((1, c), lambda b, i: (0, 0))
    stats_spec = pl.BlockSpec((1, 1, 2, cout), lambda b, i: (b, i, 0, 0))

    act_shape = jax.ShapeDtypeStruct((n, h, w, cout), act_dtype)
    stats_shape = jax.ShapeDtypeStruct((n, n_h, 2, cout), jnp.float32)
    cparams = pltpu.CompilerParams(
        dimension_semantics=("parallel", "parallel"),
        vmem_limit_bytes=vmem_limit)

    act_elems = n * h * w * c
    act_isz = jnp.dtype(act_dtype).itemsize
    conv_cost = pl.CostEstimate(flops=2 * 9 * n * h * w * c * cout,
                                transcendentals=0,
                                bytes_accessed=(4 + 2 * act_isz) * act_elems)
    ew_cost = pl.CostEstimate(flops=3 * n * h * w * c,
                              transcendentals=0,
                              bytes_accessed=(8 + act_isz) * act_elems)

    count = float(n * h * w)
    alpha = params["a"].reshape(1, c).astype(jnp.float32)
    wk1 = _pack_weight(params["w1"], compute_dtype)
    wk2 = _pack_weight(params["w2"], compute_dtype)

    # Pass 1: conv1 (+ BN1 partial statistics).
    y_pre, st1 = pl.pallas_call(
        _conv_stats_kernel,
        out_shape=(act_shape, stats_shape),
        grid=grid,
        in_specs=[tile_spec, top_spec, bot_spec, wgt_spec],
        out_specs=(tile_spec, stats_spec),
        compiler_params=cparams, cost_estimate=conv_cost,
    )(x, x, x, wk1)

    scale1, shift1 = _bn_scale_shift(st1, params["g1"], params["b1"], count)

    # Pass 2: folded BN1 + PReLU + conv2 (+ BN2 partial statistics).
    z_pre, st2 = pl.pallas_call(
        _bn_prelu_conv_stats_kernel,
        out_shape=(act_shape, stats_shape),
        grid=grid,
        in_specs=[tile_spec, top_spec, bot_spec,
                  vec_spec, vec_spec, vec_spec, wgt_spec],
        out_specs=(tile_spec, stats_spec),
        compiler_params=cparams, cost_estimate=conv_cost,
    )(y_pre, y_pre, y_pre, scale1, shift1, alpha, wk2)

    scale2, shift2 = _bn_scale_shift(st2, params["g2"], params["b2"], count)

    # Pass 3: folded BN2 + identity shortcut. No halo, no scratch -> flatten
    # (N, H) and use the largest lane-dense row strip that fits the budget.
    rows_total = n * h
    tr = _pick_tile_rows(rows_total, w, c, budget)
    row_spec = pl.BlockSpec((tr, w, c), lambda i: (i, 0, 0))
    vec3_spec = pl.BlockSpec((1, c), lambda i: (0, 0))
    out_flat = pl.pallas_call(
        _bn_residual_kernel,
        out_shape=jax.ShapeDtypeStruct((rows_total, w, c), jnp.float32),
        grid=(rows_total // tr,),
        in_specs=[row_spec, row_spec, vec3_spec, vec3_spec],
        out_specs=row_spec,
        compiler_params=pltpu.CompilerParams(
            dimension_semantics=("parallel",), vmem_limit_bytes=vmem_limit),
        cost_estimate=ew_cost,
    )(z_pre.reshape(rows_total, w, c), x.reshape(rows_total, w, c),
      scale2, shift2)
    return out_flat.reshape(n, h, w, c)


def residual_block(x_nchw, params, *, tile_h=None,
                   act_dtype=jnp.bfloat16, compute_dtype=jnp.bfloat16):
    """PyTorch-facing adapter: (N, C, H, W) -> (N, C, H, W).

    Prefer residual_block_nhwc end-to-end to avoid the two boundary transposes
    (each is an extra full HBM pass for this memory-bound block).
    """
    x = jnp.transpose(x_nchw, (0, 2, 3, 1))
    out = residual_block_nhwc(x, params, tile_h=tile_h,
                              act_dtype=act_dtype, compute_dtype=compute_dtype)
    return jnp.transpose(out, (0, 3, 1, 2))


def init_params(key, c_in, c_out):
    assert c_in == c_out, "identity shortcut requires c_in == c_out (scale='none')"
    k1, k2 = jax.random.split(key)
    # Conv weights stored HWIO (PyTorch keeps OIHW); bias=False since norm='bn'.
    w1 = 0.1 * jax.random.normal(k1, (3, 3, c_in, c_out), jnp.float32)
    w2 = 0.1 * jax.random.normal(k2, (3, 3, c_out, c_out), jnp.float32)
    return {
        "w1": w1, "w2": w2,
        "g1": jnp.ones((c_out,), jnp.float32),
        "b1": jnp.zeros((c_out,), jnp.float32),
        "g2": jnp.ones((c_out,), jnp.float32),
        "b2": jnp.zeros((c_out,), jnp.float32),
        "a": jnp.full((c_out,), 0.25, jnp.float32),      # nn.PReLU init
    }


# ------------------------- pure-JAX reference (check) -----------------------

def _reference_nchw(x_nchw, p):
    x = jnp.transpose(x_nchw, (0, 2, 3, 1))

    def conv(hh, w):
        hp = jnp.pad(hh, ((0, 0), (1, 1), (1, 1), (0, 0)), mode="reflect")
        return lax.conv_general_dilated(
            hp, w, window_strides=(1, 1), padding="VALID",
            dimension_numbers=("NHWC", "HWIO", "NHWC"))

    def bn(hh, g, b):
        m = jnp.mean(hh, axis=(0, 1, 2), keepdims=True)
        v = jnp.mean((hh - m) ** 2, axis=(0, 1, 2), keepdims=True)
        return (hh - m) * lax.rsqrt(v + EPS) * g + b

    y = bn(conv(x, p["w1"]), p["g1"], p["b1"])
    y = jnp.where(y > 0, y, p["a"] * y)
    z = bn(conv(y, p["w2"]), p["g2"], p["b2"])
    return jnp.transpose(x + z, (0, 3, 1, 2))


if __name__ == "__main__":
    key = jax.random.PRNGKey(0)
    kx, kp = jax.random.split(key)
    N, C, H, W = 2, 4, 16, 16                  # c_in == c_out, scale='none'
    x = jax.random.normal(kx, (N, C, H, W), jnp.float32)
    params = init_params(kp, C, C)

    ref = _reference_nchw(x, params)

    # Strict-numerics path (f32 matmuls, f32 intermediates): validates the
    # kernel semantics tightly against the PyTorch-equivalent reference.
    out_f32 = jax.jit(functools.partial(residual_block,
                                        act_dtype=jnp.float32,
                                        compute_dtype=jnp.float32))(x, params)
    jax.block_until_ready(out_f32)
    assert out_f32.shape == (N, C, H, W) and out_f32.dtype == jnp.float32
    err32 = float(jnp.max(jnp.abs(out_f32 - ref)))
    assert err32 < 1e-3, f"f32 path: max abs error vs reference = {err32}"

    # Default fast path: bf16 MXU operands + bf16 intermediates in HBM
    # (f32 accumulation and f32 BN/PReLU elementwise math).
    out = jax.jit(residual_block)(x, params)
    jax.block_until_ready(out)
    assert out.shape == (N, C, H, W) and out.dtype == jnp.float32
    err16 = float(jnp.max(jnp.abs(out - ref)))
    assert err16 < 8e-2, f"bf16 path: max abs error vs reference = {err16}"

    print("KERNEL_OK")
</pallas_src>

<mosaic_0001>
module attributes {stable_mosaic.version = 11 : i64} {
  func.func @_conv_stats_kernel(%arg0: i32, %arg1: i32, %arg2: memref<1x16x16x4xf32, #tpu.memory_space<vmem>>, %arg3: memref<1x1x16x4xf32, #tpu.memory_space<vmem>>, %arg4: memref<1x1x16x4xf32, #tpu.memory_space<vmem>>, %arg5: memref<3x12x4xf32, #tpu.memory_space<vmem>>, %arg6: memref<1x16x16x4xf32, #tpu.memory_space<vmem>>, %arg7: memref<1x1x2x4xf32, #tpu.memory_space<vmem>>) attributes {dimension_semantics = [#tpu.dimension_semantics<parallel>, #tpu.dimension_semantics<parallel>], iteration_bounds = array<i64: 2, 1>, scalar_prefetch = 0 : i64, scratch_operands = 0 : i64, tpu.core_type = #tpu.core_type<tc>, window_params = [{transform_indices = @transform_0, window_bounds = array<i64: 1, 16, 16, 4>}, {transform_indices = @transform_1, window_bounds = array<i64: 1, 1, 16, 4>}, {transform_indices = @transform_2, window_bounds = array<i64: 1, 1, 16, 4>}, {pipeline_mode = #tpu.pipeline_mode<synchronous>, transform_indices = @transform_3, window_bounds = array<i64: 3, 12, 4>}, {transform_indices = @transform_4, window_bounds = array<i64: 1, 16, 16, 4>}, {transform_indices = @transform_5, window_bounds = array<i64: 1, 1, 2, 4>}]} {
    %c0 = arith.constant 0 : index
    %c0_0 = arith.constant 0 : index
    %c0_1 = arith.constant 0 : index
    %c0_2 = arith.constant 0 : index
    %0 = vector.load %arg3[%c0, %c0_0, %c0_1, %c0_2] : memref<1x1x16x4xf32, #tpu.memory_space<vmem>>, vector<1x1x16x4xf32>
    %1 = vector.shape_cast %0 : vector<1x1x16x4xf32> to vector<1x16x4xf32>
    %c0_3 = arith.constant 0 : index
    %c0_4 = arith.constant 0 : index
    %c0_5 = arith.constant 0 : index
    %c0_6 = arith.constant 0 : index
    %2 = vector.load %arg2[%c0_3, %c0_4, %c0_5, %c0_6] : memref<1x16x16x4xf32, #tpu.memory_space<vmem>>, vector<1x16x16x4xf32>
    %3 = vector.shape_cast %2 : vector<1x16x16x4xf32> to vector<16x16x4xf32>
    %c0_7 = arith.constant 0 : index
    %c0_8 = arith.constant 0 : index
    %c0_9 = arith.constant 0 : index
    %c0_10 = arith.constant 0 : index
    %4 = vector.load %arg4[%c0_7, %c0_8, %c0_9, %c0_10] : memref<1x1x16x4xf32, #tpu.memory_space<vmem>>, vector<1x1x16x4xf32>
    %5 = vector.shape_cast %4 : vector<1x1x16x4xf32> to vector<1x16x4xf32>
    %6 = tpu.concatenate %1, %3, %5 in 0 : vector<1x16x4xf32>, vector<16x16x4xf32>, vector<1x16x4xf32> -> vector<18x16x4xf32>
    %c0_11 = arith.constant 0 : index
    %c0_12 = arith.constant 0 : index
    %c0_13 = arith.constant 0 : index
    %7 = vector.load %arg5[%c0_11, %c0_12, %c0_13] : memref<3x12x4xf32, #tpu.memory_space<vmem>>, vector<3x12x4xf32>
    %8 = vector.extract_strided_slice %6 {offsets = [0, 0, 0], sizes = [16, 16, 4], strides = [1, 1, 1]} : vector<18x16x4xf32> to vector<16x16x4xf32>
    %9 = vector.extract_strided_slice %6 {offsets = [1, 0, 0], sizes = [16, 16, 4], strides = [1, 1, 1]} : vector<18x16x4xf32> to vector<16x16x4xf32>
    %10 = vector.extract_strided_slice %6 {offsets = [2, 0, 0], sizes = [16, 16, 4], strides = [1, 1, 1]} : vector<18x16x4xf32> to vector<16x16x4xf32>
    %11 = tpu.concatenate %8, %9, %10 in 2 : vector<16x16x4xf32>, vector<16x16x4xf32>, vector<16x16x4xf32> -> vector<16x16x12xf32>
    %12 = vector.shape_cast %11 : vector<16x16x12xf32> to vector<256x12xf32>
    %13 = vector.extract_strided_slice %7 {offsets = [0, 0, 0], sizes = [1, 12, 4], strides = [1, 1, 1]} : vector<3x12x4xf32> to vector<1x12x4xf32>
    %14 = vector.shape_cast %13 : vector<1x12x4xf32> to vector<12x4xf32>
    %cst = arith.constant dense<0.000000e+00> : vector<256x4xf32>
    %15 = tpu.matmul %12, %14, %cst {dimension_numbers = #tpu.dot_dimension_numbers<[1], [0], [0], [1], [0, 0, 1, 1], [], []>} : vector<256x12xf32>, vector<12x4xf32>, vector<256x4xf32> -> vector<256x4xf32>
    %16 = vector.shape_cast %15 : vector<256x4xf32> to vector<16x16x4xf32>
    %17 = vector.extract_strided_slice %7 {offsets = [1, 0, 0], sizes = [1, 12, 4], strides = [1, 1, 1]} : vector<3x12x4xf32> to vector<1x12x4xf32>
    %18 = vector.shape_cast %17 : vector<1x12x4xf32> to vector<12x4xf32>
    %cst_14 = arith.constant dense<0.000000e+00> : vector<256x4xf32>
    %19 = tpu.matmul %12, %18, %cst_14 {dimension_numbers = #tpu.dot_dimension_numbers<[1], [0], [0], [1], [0, 0, 1, 1], [], []>} : vector<256x12xf32>, vector<12x4xf32>, vector<256x4xf32> -> vector<256x4xf32>
    %20 = vector.shape_cast %19 : vector<256x4xf32> to vector<16x16x4xf32>
    %21 = vector.extract_strided_slice %7 {offsets = [2, 0, 0], sizes = [1, 12, 4], strides = [1, 1, 1]} : vector<3x12x4xf32> to vector<1x12x4xf32>
    %22 = vector.shape_cast %21 : vector<1x12x4xf32> to vector<12x4xf32>
    %cst_15 = arith.constant dense<0.000000e+00> : vector<256x4xf32>
    %23 = tpu.matmul %12, %22, %cst_15 {dimension_numbers = #tpu.dot_dimension_numbers<[1], [0], [0], [1], [0, 0, 1, 1], [], []>} : vector<256x12xf32>, vector<12x4xf32>, vector<256x4xf32> -> vector<256x4xf32>
    %24 = vector.shape_cast %23 : vector<256x4xf32> to vector<16x16x4xf32>
    %25 = vector.extract_strided_slice %16 {offsets = [0, 1, 0], sizes = [16, 1, 4], strides = [1, 1, 1]} : vector<16x16x4xf32> to vector<16x1x4xf32>
    %26 = vector.extract_strided_slice %16 {offsets = [0, 0, 0], sizes = [16, 15, 4], strides = [1, 1, 1]} : vector<16x16x4xf32> to vector<16x15x4xf32>
    %27 = tpu.concatenate %25, %26 in 1 : vector<16x1x4xf32>, vector<16x15x4xf32> -> vector<16x16x4xf32>
    %28 = vector.extract_strided_slice %24 {offsets = [0, 1, 0], sizes = [16, 15, 4], strides = [1, 1, 1]} : vector<16x16x4xf32> to vector<16x15x4xf32>
    %29 = vector.extract_strided_slice %24 {offsets = [0, 14, 0], sizes = [16, 1, 4], strides = [1, 1, 1]} : vector<16x16x4xf32> to vector<16x1x4xf32>
    %30 = tpu.concatenate %28, %29 in 1 : vector<16x15x4xf32>, vector<16x1x4xf32> -> vector<16x16x4xf32>
    %31 = arith.addf %27, %20 : vector<16x16x4xf32>
    %32 = arith.addf %31, %30 : vector<16x16x4xf32>
    %c0_16 = arith.constant 0 : index
    %c0_17 = arith.constant 0 : index
    %c0_18 = arith.constant 0 : index
    %c0_19 = arith.constant 0 : index
    %33 = vector.load %arg6[%c0_16, %c0_17, %c0_18, %c0_19] : memref<1x16x16x4xf32, #tpu.memory_space<vmem>>, vector<1x16x16x4xf32>
    %34 = vector.shape_cast %33 : vector<1x16x16x4xf32> to vector<16x16x4xf32>
    %35 = vector.shape_cast %32 : vector<16x16x4xf32> to vector<1x16x16x4xf32>
    tpu.vector_store %arg6[%c0_16, %c0_17, %c0_18, %c0_19], %35 {strides = array<i32>} : memref<1x16x16x4xf32, #tpu.memory_space<vmem>>, vector<1x16x16x4xf32>,
    %cst_20 = arith.constant dense<0.000000e+00> : vector<4xf32>
    %36 = vector.multi_reduction <add>, %32, %cst_20 [0, 1] : vector<16x16x4xf32> to vector<4xf32>
    %37 = vector.shape_cast %36 : vector<4xf32> to vector<1x1x4xf32>
    %38 = arith.mulf %32, %32 : vector<16x16x4xf32>
    %cst_21 = arith.constant dense<0.000000e+00> : vector<4xf32>
    %39 = vector.multi_reduction <add>, %38, %cst_21 [0, 1] : vector<16x16x4xf32> to vector<4xf32>
    %40 = vector.shape_cast %39 : vector<4xf32> to vector<1x1x4xf32>
    %41 = tpu.concatenate %37, %40 in 1 : vector<1x1x4xf32>, vector<1x1x4xf32> -> vector<1x2x4xf32>
    %42 = vector.shape_cast %41 : vector<1x2x4xf32> to vector<1x1x2x4xf32>
    %c0_22 = arith.constant 0 : index
    %c0_23 = arith.constant 0 : index
    %c0_24 = arith.constant 0 : index
    %c0_25 = arith.constant 0 : index
    %43 = vector.load %arg7[%c0_22, %c0_23, %c0_24, %c0_25] : memref<1x1x2x4xf32, #tpu.memory_space<vmem>>, vector<1x1x2x4xf32>
    tpu.vector_store %arg7[%c0_22, %c0_23, %c0_24, %c0_25], %42 {strides = array<i32>} : memref<1x1x2x4xf32, #tpu.memory_space<vmem>>, vector<1x1x2x4xf32>,
    return
  }
  func.func @transform_0(%arg0: i32, %arg1: i32) -> (i32, i32, i32, i32) {
    %c0_i32 = arith.constant 0 : i32
    %c0_i32_0 = arith.constant 0 : i32
    %c0_i32_1 = arith.constant 0 : i32
    return %arg0, %arg1, %c0_i32, %c0_i32_0 : i32, i32, i32, i32
  }
  func.func @transform_1(%arg0: i32, %arg1: i32) -> (i32, i32, i32, i32) {
    %c16_i32 = arith.constant 16 : i32
    %0 = arith.muli %arg1, %c16_i32 : i32
    %c1_i32 = arith.constant 1 : i32
    %1 = arith.subi %0, %c1_i32 : i32
    %c0_i32 = arith.constant 0 : i32
    %2 = arith.subi %c0_i32, %1 : i32
    %3 = arith.maxsi %1, %2 : i32
    %c0_i32_0 = arith.constant 0 : i32
    %c0_i32_1 = arith.constant 0 : i32
    %c0_i32_2 = arith.constant 0 : i32
    return %arg0, %3, %c0_i32_0, %c0_i32_1 : i32, i32, i32, i32
  }
  func.func @transform_2(%arg0: i32, %arg1: i32) -> (i32, i32, i32, i32) {
    %c1_i32 = arith.constant 1 : i32
    %0 = arith.addi %arg1, %c1_i32 : i32
    %c16_i32 = arith.constant 16 : i32
    %1 = arith.muli %0, %c16_i32 : i32
    %c15_i32 = arith.constant 15 : i32
    %2 = arith.subi %c15_i32, %1 : i32
    %c0_i32 = arith.constant 0 : i32
    %3 = arith.subi %c0_i32, %2 : i32
    %4 = arith.maxsi %2, %3 : i32
    %c15_i32_0 = arith.constant 15 : i32
    %5 = arith.subi %c15_i32_0, %4 : i32
    %c0_i32_1 = arith.constant 0 : i32
    %c0_i32_2 = arith.constant 0 : i32
    %c0_i32_3 = arith.constant 0 : i32
    return %arg0, %5, %c0_i32_1, %c0_i32_2 : i32, i32, i32, i32
  }
  func.func @transform_3(%arg0: i32, %arg1: i32) -> (i32, i32, i32) {
    %c0_i32 = arith.constant 0 : i32
    %c0_i32_0 = arith.constant 0 : i32
    %c0_i32_1 = arith.constant 0 : i32
    %c0_i32_2 = arith.constant 0 : i32
    return %c0_i32, %c0_i32_0, %c0_i32_1 : i32, i32, i32
  }
  func.func @transform_4(%arg0: i32, %arg1: i32) -> (i32, i32, i32, i32) {
    %c0_i32 = arith.constant 0 : i32
    %c0_i32_0 = arith.constant 0 : i32
    %c0_i32_1 = arith.constant 0 : i32
    return %arg0, %arg1, %c0_i32, %c0_i32_0 : i32, i32, i32, i32
  }
  func.func @transform_5(%arg0: i32, %arg1: i32) -> (i32, i32, i32, i32) {
    %c0_i32 = arith.constant 0 : i32
    %c0_i32_0 = arith.constant 0 : i32
    %c0_i32_1 = arith.constant 0 : i32
    return %arg0, %arg1, %c0_i32, %c0_i32_0 : i32, i32, i32, i32
  }
}

module attributes {stable_mosaic.version = 11 : i64} {
  func.func @_bn_residual_kernel(%arg0: i32, %arg1: memref<16x16x4xf32, #tpu.memory_space<vmem>>, %arg2: memref<16x16x4xf32, #tpu.memory_space<vmem>>, %arg3: memref<1x4xf32, #tpu.memory_space<vmem>>, %arg4: memref<1x4xf32, #tpu.memory_space<vmem>>, %arg5: memref<16x16x4xf32, #tpu.memory_space<vmem>>) attributes {dimension_semantics = [#tpu.dimension_semantics<parallel>], iteration_bounds = array<i64: 2>, scalar_prefetch = 0 : i64, scratch_operands = 0 : i64, tpu.core_type = #tpu.core_type<tc>, window_params = [{transform_indices = @transform_0, window_bounds = array<i64: 16, 16, 4>}, {transform_indices = @transform_1, window_bounds = array<i64: 16, 16, 4>}, {pipeline_mode = #tpu.pipeline_mode<synchronous>, transform_indices = @transform_2, window_bounds = array<i64: 1, 4>}, {pipeline_mode = #tpu.pipeline_mode<synchronous>, transform_indices = @transform_3, window_bounds = array<i64: 1, 4>}, {transform_indices = @transform_4, window_bounds = array<i64: 16, 16, 4>}]} {
    %c0 = arith.constant 0 : index
    %c0_0 = arith.constant 0 : index
    %0 = vector.load %arg3[%c0, %c0_0] : memref<1x4xf32, #tpu.memory_space<vmem>>, vector<1x4xf32>
    %1 = vector.shape_cast %0 : vector<1x4xf32> to vector<1x1x4xf32>
    %c0_1 = arith.constant 0 : index
    %c0_2 = arith.constant 0 : index
    %2 = vector.load %arg4[%c0_1, %c0_2] : memref<1x4xf32, #tpu.memory_space<vmem>>, vector<1x4xf32>
    %3 = vector.shape_cast %2 : vector<1x4xf32> to vector<1x1x4xf32>
    %c0_3 = arith.constant 0 : index
    %c0_4 = arith.constant 0 : index
    %c0_5 = arith.constant 0 : index
    %4 = vector.load %arg2[%c0_3, %c0_4, %c0_5] : memref<16x16x4xf32, #tpu.memory_space<vmem>>, vector<16x16x4xf32>
    %c0_6 = arith.constant 0 : index
    %c0_7 = arith.constant 0 : index
    %c0_8 = arith.constant 0 : index
    %5 = vector.load %arg1[%c0_6, %c0_7, %c0_8] : memref<16x16x4xf32, #tpu.memory_space<vmem>>, vector<16x16x4xf32>
    %6 = vector.broadcast %1 : vector<1x1x4xf32> to vector<16x16x4xf32>
    %7 = arith.mulf %5, %6 : vector<16x16x4xf32>
    %8 = arith.addf %4, %7 : vector<16x16x4xf32>
    %9 = vector.broadcast %3 : vector<1x1x4xf32> to vector<16x16x4xf32>
    %10 = arith.addf %8, %9 : vector<16x16x4xf32>
    %c0_9 = arith.constant 0 : index
    %c0_10 = arith.constant 0 : index
    %c0_11 = arith.constant 0 : index
    %11 = vector.load %arg5[%c0_9, %c0_10, %c0_11] : memref<16x16x4xf32, #tpu.memory_space<vmem>>, vector<16x16x4xf32>
    tpu.vector_store %arg5[%c0_9, %c0_10, %c0_11], %10 {strides = array<i32>} : memref<16x16x4xf32, #tpu.memory_space<vmem>>, vector<16x16x4xf32>,
    return
  }
  func.func @transform_0(%arg0: i32) -> (i32, i32, i32) {
    %c0_i32 = arith.constant 0 : i32
    %c0_i32_0 = arith.constant 0 : i32
    %c0_i32_1 = arith.constant 0 : i32
    return %arg0, %c0_i32, %c0_i32_0 : i32, i32, i32
  }
  func.func @transform_1(%arg0: i32) -> (i32, i32, i32) {
    %c0_i32 = arith.constant 0 : i32
    %c0_i32_0 = arith.constant 0 : i32
    %c0_i32_1 = arith.constant 0 : i32
    return %arg0, %c0_i32, %c0_i32_0 : i32, i32, i32
  }
  func.func @transform_2(%arg0: i32) -> (i32, i32) {
    %c0_i32 = arith.constant 0 : i32
    %c0_i32_0 = arith.constant 0 : i32
    %c0_i32_1 = arith.constant 0 : i32
    return %c0_i32, %c0_i32_0 : i32, i32
  }
  func.func @transform_3(%arg0: i32) -> (i32, i32) {
    %c0_i32 = arith.constant 0 : i32
    %c0_i32_0 = arith.constant 0 : i32
    %c0_i32_1 = arith.constant 0 : i32
    return %c0_i32, %c0_i32_0 : i32, i32
  }
  func.func @transform_4(%arg0: i32) -> (i32, i32, i32) {
    %c0_i32 = arith.constant 0 : i32
    %c0_i32_0 = arith.constant 0 : i32
    %c0_i32_1 = arith.constant 0 : i32
    return %arg0, %c0_i32, %c0_i32_0 : i32, i32, i32
  }
}

module attributes {stable_mosaic.version = 11 : i64} {
  func.func @_bn_prelu_conv_stats_kernel(%arg0: i32, %arg1: i32, %arg2: memref<1x16x16x4xf32, #tpu.memory_space<vmem>>, %arg3: memref<1x1x16x4xf32, #tpu.memory_space<vmem>>, %arg4: memref<1x1x16x4xf32, #tpu.memory_space<vmem>>, %arg5: memref<1x4xf32, #tpu.memory_space<vmem>>, %arg6: memref<1x4xf32, #tpu.memory_space<vmem>>, %arg7: memref<1x4xf32, #tpu.memory_space<vmem>>, %arg8: memref<3x12x4xf32, #tpu.memory_space<vmem>>, %arg9: memref<1x16x16x4xf32, #tpu.memory_space<vmem>>, %arg10: memref<1x1x2x4xf32, #tpu.memory_space<vmem>>) attributes {dimension_semantics = [#tpu.dimension_semantics<parallel>, #tpu.dimension_semantics<parallel>], iteration_bounds = array<i64: 2, 1>, scalar_prefetch = 0 : i64, scratch_operands = 0 : i64, tpu.core_type = #tpu.core_type<tc>, window_params = [{transform_indices = @transform_0, window_bounds = array<i64: 1, 16, 16, 4>}, {transform_indices = @transform_1, window_bounds = array<i64: 1, 1, 16, 4>}, {transform_indices = @transform_2, window_bounds = array<i64: 1, 1, 16, 4>}, {pipeline_mode = #tpu.pipeline_mode<synchronous>, transform_indices = @transform_3, window_bounds = array<i64: 1, 4>}, {pipeline_mode = #tpu.pipeline_mode<synchronous>, transform_indices = @transform_4, window_bounds = array<i64: 1, 4>}, {pipeline_mode = #tpu.pipeline_mode<synchronous>, transform_indices = @transform_5, window_bounds = array<i64: 1, 4>}, {pipeline_mode = #tpu.pipeline_mode<synchronous>, transform_indices = @transform_6, window_bounds = array<i64: 3, 12, 4>}, {transform_indices = @transform_7, window_bounds = array<i64: 1, 16, 16, 4>}, {transform_indices = @transform_8, window_bounds = array<i64: 1, 1, 2, 4>}]} {
    %c0 = arith.constant 0 : index
    %c0_0 = arith.constant 0 : index
    %c0_1 = arith.constant 0 : index
    %c0_2 = arith.constant 0 : index
    %0 = vector.load %arg3[%c0, %c0_0, %c0_1, %c0_2] : memref<1x1x16x4xf32, #tpu.memory_space<vmem>>, vector<1x1x16x4xf32>
    %1 = vector.shape_cast %0 : vector<1x1x16x4xf32> to vector<1x16x4xf32>
    %c0_3 = arith.constant 0 : index
    %c0_4 = arith.constant 0 : index
    %c0_5 = arith.constant 0 : index
    %c0_6 = arith.constant 0 : index
    %2 = vector.load %arg2[%c0_3, %c0_4, %c0_5, %c0_6] : memref<1x16x16x4xf32, #tpu.memory_space<vmem>>, vector<1x16x16x4xf32>
    %3 = vector.shape_cast %2 : vector<1x16x16x4xf32> to vector<16x16x4xf32>
    %c0_7 = arith.constant 0 : index
    %c0_8 = arith.constant 0 : index
    %c0_9 = arith.constant 0 : index
    %c0_10 = arith.constant 0 : index
    %4 = vector.load %arg4[%c0_7, %c0_8, %c0_9, %c0_10] : memref<1x1x16x4xf32, #tpu.memory_space<vmem>>, vector<1x1x16x4xf32>
    %5 = vector.shape_cast %4 : vector<1x1x16x4xf32> to vector<1x16x4xf32>
    %6 = tpu.concatenate %1, %3, %5 in 0 : vector<1x16x4xf32>, vector<16x16x4xf32>, vector<1x16x4xf32> -> vector<18x16x4xf32>
    %c0_11 = arith.constant 0 : index
    %c0_12 = arith.constant 0 : index
    %7 = vector.load %arg5[%c0_11, %c0_12] : memref<1x4xf32, #tpu.memory_space<vmem>>, vector<1x4xf32>
    %8 = vector.shape_cast %7 : vector<1x4xf32> to vector<1x1x4xf32>
    %c0_13 = arith.constant 0 : index
    %c0_14 = arith.constant 0 : index
    %9 = vector.load %arg6[%c0_13, %c0_14] : memref<1x4xf32, #tpu.memory_space<vmem>>, vector<1x4xf32>
    %10 = vector.shape_cast %9 : vector<1x4xf32> to vector<1x1x4xf32>
    %c0_15 = arith.constant 0 : index
    %c0_16 = arith.constant 0 : index
    %11 = vector.load %arg7[%c0_15, %c0_16] : memref<1x4xf32, #tpu.memory_space<vmem>>, vector<1x4xf32>
    %12 = vector.shape_cast %11 : vector<1x4xf32> to vector<1x1x4xf32>
    %13 = vector.broadcast %8 : vector<1x1x4xf32> to vector<18x16x4xf32>
    %14 = arith.mulf %6, %13 : vector<18x16x4xf32>
    %15 = vector.broadcast %10 : vector<1x1x4xf32> to vector<18x16x4xf32>
    %16 = arith.addf %14, %15 : vector<18x16x4xf32>
    %cst = arith.constant 0.000000e+00 : f32
    %17 = vector.broadcast %cst : f32 to vector<18x16x4xf32>
    %18 = arith.cmpf ogt, %16, %17 : vector<18x16x4xf32>
    %19 = vector.broadcast %12 : vector<1x1x4xf32> to vector<18x16x4xf32>
    %20 = arith.mulf %19, %16 : vector<18x16x4xf32>
    %21 = arith.select %18, %16, %20 : vector<18x16x4xi1>, vector<18x16x4xf32>
    %c0_17 = arith.constant 0 : index
    %c0_18 = arith.constant 0 : index
    %c0_19 = arith.constant 0 : index
    %22 = vector.load %arg8[%c0_17, %c0_18, %c0_19] : memref<3x12x4xf32, #tpu.memory_space<vmem>>, vector<3x12x4xf32>
    %23 = vector.extract_strided_slice %21 {offsets = [0, 0, 0], sizes = [16, 16, 4], strides = [1, 1, 1]} : vector<18x16x4xf32> to vector<16x16x4xf32>
    %24 = vector.extract_strided_slice %21 {offsets = [1, 0, 0], sizes = [16, 16, 4], strides = [1, 1, 1]} : vector<18x16x4xf32> to vector<16x16x4xf32>
    %25 = vector.extract_strided_slice %21 {offsets = [2, 0, 0], sizes = [16, 16, 4], strides = [1, 1, 1]} : vector<18x16x4xf32> to vector<16x16x4xf32>
    %26 = tpu.concatenate %23, %24, %25 in 2 : vector<16x16x4xf32>, vector<16x16x4xf32>, vector<16x16x4xf32> -> vector<16x16x12xf32>
    %27 = vector.shape_cast %26 : vector<16x16x12xf32> to vector<256x12xf32>
    %28 = vector.extract_strided_slice %22 {offsets = [0, 0, 0], sizes = [1, 12, 4], strides = [1, 1, 1]} : vector<3x12x4xf32> to vector<1x12x4xf32>
    %29 = vector.shape_cast %28 : vector<1x12x4xf32> to vector<12x4xf32>
    %cst_20 = arith.constant dense<0.000000e+00> : vector<256x4xf32>
    %30 = tpu.matmul %27, %29, %cst_20 {dimension_numbers = #tpu.dot_dimension_numbers<[1], [0], [0], [1], [0, 0, 1, 1], [], []>} : vector<256x12xf32>, vector<12x4xf32>, vector<256x4xf32> -> vector<256x4xf32>
    %31 = vector.shape_cast %30 : vector<256x4xf32> to vector<16x16x4xf32>
    %32 = vector.extract_strided_slice %22 {offsets = [1, 0, 0], sizes = [1, 12, 4], strides = [1, 1, 1]} : vector<3x12x4xf32> to vector<1x12x4xf32>
    %33 = vector.shape_cast %32 : vector<1x12x4xf32> to vector<12x4xf32>
    %cst_21 = arith.constant dense<0.000000e+00> : vector<256x4xf32>
    %34 = tpu.matmul %27, %33, %cst_21 {dimension_numbers = #tpu.dot_dimension_numbers<[1], [0], [0], [1], [0, 0, 1, 1], [], []>} : vector<256x12xf32>, vector<12x4xf32>, vector<256x4xf32> -> vector<256x4xf32>
    %35 = vector.shape_cast %34 : vector<256x4xf32> to vector<16x16x4xf32>
    %36 = vector.extract_strided_slice %22 {offsets = [2, 0, 0], sizes = [1, 12, 4], strides = [1, 1, 1]} : vector<3x12x4xf32> to vector<1x12x4xf32>
    %37 = vector.shape_cast %36 : vector<1x12x4xf32> to vector<12x4xf32>
    %cst_22 = arith.constant dense<0.000000e+00> : vector<256x4xf32>
    %38 = tpu.matmul %27, %37, %cst_22 {dimension_numbers = #tpu.dot_dimension_numbers<[1], [0], [0], [1], [0, 0, 1, 1], [], []>} : vector<256x12xf32>, vector<12x4xf32>, vector<256x4xf32> -> vector<256x4xf32>
    %39 = vector.shape_cast %38 : vector<256x4xf32> to vector<16x16x4xf32>
    %40 = vector.extract_strided_slice %31 {offsets = [0, 1, 0], sizes = [16, 1, 4], strides = [1, 1, 1]} : vector<16x16x4xf32> to vector<16x1x4xf32>
    %41 = vector.extract_strided_slice %31 {offsets = [0, 0, 0], sizes = [16, 15, 4], strides = [1, 1, 1]} : vector<16x16x4xf32> to vector<16x15x4xf32>
    %42 = tpu.concatenate %40, %41 in 1 : vector<16x1x4xf32>, vector<16x15x4xf32> -> vector<16x16x4xf32>
    %43 = vector.extract_strided_slice %39 {offsets = [0, 1, 0], sizes = [16, 15, 4], strides = [1, 1, 1]} : vector<16x16x4xf32> to vector<16x15x4xf32>
    %44 = vector.extract_strided_slice %39 {offsets = [0, 14, 0], sizes = [16, 1, 4], strides = [1, 1, 1]} : vector<16x16x4xf32> to vector<16x1x4xf32>
    %45 = tpu.concatenate %43, %44 in 1 : vector<16x15x4xf32>, vector<16x1x4xf32> -> vector<16x16x4xf32>
    %46 = arith.addf %42, %35 : vector<16x16x4xf32>
    %47 = arith.addf %46, %45 : vector<16x16x4xf32>
    %c0_23 = arith.constant 0 : index
    %c0_24 = arith.constant 0 : index
    %c0_25 = arith.constant 0 : index
    %c0_26 = arith.constant 0 : index
    %48 = vector.load %arg9[%c0_23, %c0_24, %c0_25, %c0_26] : memref<1x16x16x4xf32, #tpu.memory_space<vmem>>, vector<1x16x16x4xf32>
    %49 = vector.shape_cast %48 : vector<1x16x16x4xf32> to vector<16x16x4xf32>
    %50 = vector.shape_cast %47 : vector<16x16x4xf32> to vector<1x16x16x4xf32>
    tpu.vector_store %arg9[%c0_23, %c0_24, %c0_25, %c0_26], %50 {strides = array<i32>} : memref<1x16x16x4xf32, #tpu.memory_space<vmem>>, vector<1x16x16x4xf32>,
    %cst_27 = arith.constant dense<0.000000e+00> : vector<4xf32>
    %51 = vector.multi_reduction <add>, %47, %cst_27 [0, 1] : vector<16x16x4xf32> to vector<4xf32>
    %52 = vector.shape_cast %51 : vector<4xf32> to vector<1x1x4xf32>
    %53 = arith.mulf %47, %47 : vector<16x16x4xf32>
    %cst_28 = arith.constant dense<0.000000e+00> : vector<4xf32>
    %54 = vector.multi_reduction <add>, %53, %cst_28 [0, 1] : vector<16x16x4xf32> to vector<4xf32>
    %55 = vector.shape_cast %54 : vector<4xf32> to vector<1x1x4xf32>
    %56 = tpu.concatenate %52, %55 in 1 : vector<1x1x4xf32>, vector<1x1x4xf32> -> vector<1x2x4xf32>
    %57 = vector.shape_cast %56 : vector<1x2x4xf32> to vector<1x1x2x4xf32>
    %c0_29 = arith.constant 0 : index
    %c0_30 = arith.constant 0 : index
    %c0_31 = arith.constant 0 : index
    %c0_32 = arith.constant 0 : index
    %58 = vector.load %arg10[%c0_29, %c0_30, %c0_31, %c0_32] : memref<1x1x2x4xf32, #tpu.memory_space<vmem>>, vector<1x1x2x4xf32>
    tpu.vector_store %arg10[%c0_29, %c0_30, %c0_31, %c0_32], %57 {strides = array<i32>} : memref<1x1x2x4xf32, #tpu.memory_space<vmem>>, vector<1x1x2x4xf32>,
    return
  }
  func.func @transform_0(%arg0: i32, %arg1: i32) -> (i32, i32, i32, i32) {
    %c0_i32 = arith.constant 0 : i32
    %c0_i32_0 = arith.constant 0 : i32
    %c0_i32_1 = arith.constant 0 : i32
    return %arg0, %arg1, %c0_i32, %c0_i32_0 : i32, i32, i32, i32
  }
  func.func @transform_1(%arg0: i32, %arg1: i32) -> (i32, i32, i32, i32) {
    %c16_i32 = arith.constant 16 : i32
    %0 = arith.muli %arg1, %c16_i32 : i32
    %c1_i32 = arith.constant 1 : i32
    %1 = arith.subi %0, %c1_i32 : i32
    %c0_i32 = arith.constant 0 : i32
    %2 = arith.subi %c0_i32, %1 : i32
    %3 = arith.maxsi %1, %2 : i32
    %c0_i32_0 = arith.constant 0 : i32
    %c0_i32_1 = arith.constant 0 : i32
    %c0_i32_2 = arith.constant 0 : i32
    return %arg0, %3, %c0_i32_0, %c0_i32_1 : i32, i32, i32, i32
  }
  func.func @transform_2(%arg0: i32, %arg1: i32) -> (i32, i32, i32, i32) {
    %c1_i32 = arith.constant 1 : i32
    %0 = arith.addi %arg1, %c1_i32 : i32
    %c16_i32 = arith.constant 16 : i32
    %1 = arith.muli %0, %c16_i32 : i32
    %c15_i32 = arith.constant 15 : i32
    %2 = arith.subi %c15_i32, %1 : i32
    %c0_i32 = arith.constant 0 : i32
    %3 = arith.subi %c0_i32, %2 : i32
    %4 = arith.maxsi %2, %3 : i32
    %c15_i32_0 = arith.constant 15 : i32
    %5 = arith.subi %c15_i32_0, %4 : i32
    %c0_i32_1 = arith.constant 0 : i32
    %c0_i32_2 = arith.constant 0 : i32
    %c0_i32_3 = arith.constant 0 : i32
    return %arg0, %5, %c0_i32_1, %c0_i32_2 : i32, i32, i32, i32
  }
  func.func @transform_3(%arg0: i32, %arg1: i32) -> (i32, i32) {
    %c0_i32 = arith.constant 0 : i32
    %c0_i32_0 = arith.constant 0 : i32
    %c0_i32_1 = arith.constant 0 : i32
    return %c0_i32, %c0_i32_0 : i32, i32
  }
  func.func @transform_4(%arg0: i32, %arg1: i32) -> (i32, i32) {
    %c0_i32 = arith.constant 0 : i32
    %c0_i32_0 = arith.constant 0 : i32
    %c0_i32_1 = arith.constant 0 : i32
    return %c0_i32, %c0_i32_0 : i32, i32
  }
  func.func @transform_5(%arg0: i32, %arg1: i32) -> (i32, i32) {
    %c0_i32 = arith.constant 0 : i32
    %c0_i32_0 = arith.constant 0 : i32
    %c0_i32_1 = arith.constant 0 : i32
    return %c0_i32, %c0_i32_0 : i32, i32
  }
  func.func @transform_6(%arg0: i32, %arg1: i32) -> (i32, i32, i32) {
    %c0_i32 = arith.constant 0 : i32
    %c0_i32_0 = arith.constant 0 : i32
    %c0_i32_1 = arith.constant 0 : i32
    %c0_i32_2 = arith.constant 0 : i32
    return %c0_i32, %c0_i32_0, %c0_i32_1 : i32, i32, i32
  }
  func.func @transform_7(%arg0: i32, %arg1: i32) -> (i32, i32, i32, i32) {
    %c0_i32 = arith.constant 0 : i32
    %c0_i32_0 = arith.constant 0 : i32
    %c0_i32_1 = arith.constant 0 : i32
    return %arg0, %arg1, %c0_i32, %c0_i32_0 : i32, i32, i32, i32
  }
  func.func @transform_8(%arg0: i32, %arg1: i32) -> (i32, i32, i32, i32) {
    %c0_i32 = arith.constant 0 : i32
    %c0_i32_0 = arith.constant 0 : i32
    %c0_i32_1 = arith.constant 0 : i32
    return %arg0, %arg1, %c0_i32, %c0_i32_0 : i32, i32, i32, i32
  }
}

</mosaic_0001>

<llo_original>
// kernel: residual_block.5
$region0: #{residual_block.5}
  #allocation0 [shape = 'u32[]', space=smem, size = 0x4, offset = 0x4, fixed_abs, tag = 'smem constant byte address 0x4 - core index']
  #allocation1 [shape = 'u32[72,128]{1,0:T(1,128)}', space=vmem, size = 0x9000, scoped, tag = 'internal scratch']
  %s0 = inlined_call_operand.vmem [shape: f32[32,16,4], index: 0, kind: input, shape index: {}]
  %s1 = inlined_call_operand.vmem [shape: f32[32,16,4], index: 1, kind: input, shape index: {}]
  %s2 = inlined_call_operand.vmem [shape: f32[1,4], index: 2, kind: input, shape index: {}]
  %s3 = inlined_call_operand.vmem [shape: f32[1,4], index: 3, kind: input, shape index: {}]
  %s4 = inlined_call_operand.vmem [shape: f32[32,16,4], index: 4, kind: output, shape index: {}]
  %s5 = sld [smem:[#allocation0]]
  $region49: #{residual_block.5} parent=0
    _
  %s7 = ssub.s32 1, %s5
  %s8 = scalar_select 0, %s7, %s5
  loop: start=0, step=1, limit=4
  $region2: #{residual_block.5} parent=0 // loop_pre_header
    _
  $region3: #{residual_block.5} parent=0 // loop_header
    %s10 = sphi 0, %s14
    %p11 = scmp.ge.s32.totalorder %s10, 4
    %s20 = sphi 0, %s22
    %s23 = sphi 0, %s20
    %s24 = sphi 0, %s23
    %s40 = sphi 0, %s24
    %s46 = sphi 0, %s48
    %s49 = sphi 0, %s46
    %s50 = sphi 0, %s49
    %s66 = sphi 0, %s50
    %s70 = sphi 0, %s70
    %s72 = sphi 0, %s70
    %s73 = sphi 0, %s72
    %s87 = sphi 0, %s73
    %s91 = sphi 0, %s91
    %s93 = sphi 0, %s91
    %s94 = sphi 0, %s93
    %s108 = sphi 0, %s94
    %s114 = sphi 0, %s116
    %s117 = sphi 0, %s114
    %s118 = sphi 0, %s117
    %s134 = sphi 0, %s118
  $region4: #{residual_block.5} parent=0 // loop_header_branch
    %13 = sbr.rel (%p11) target = $region8
  $region5: #{residual_block.5} parent=0 // loop_body
    %s15 = ssub.s32 %s10, 1
    %s16 = ssub.s32 %s10, 2
    %s17 = sadd.s32 %s10, 1
    %s18 = ssub.s32 %s10, %s17
    %p19 = scmp.eq.s32.totalorder %s18, 0
    %s21 = sadd.s32 %s20, 1
    %s22 = scalar_select %p19, %s20, %s21
    %p25 = pneg %p19
    %p26 = scmp.eq.s32.totalorder %s10, 1
    %p27 = por %p25, %p26
    %p28 = scmp.ne.s32.totalorder %s20, %s23
    %p29 = scmp.eq.s32.totalorder %s10, 0
    %p30 = por %p28, %p29
    %p31 = scmp.ne.s32.totalorder %s20, %s23
    %p32 = scmp.eq.s32.totalorder %s15, 1
    %p33 = por %p31, %p32
    %p34 = scmp.ne.s32.totalorder %s23, %s24
    %p35 = scmp.eq.s32.totalorder %s15, 0
    %p36 = por %p34, %p35
    %p37 = scmp.ne.s32.totalorder %s23, %s24
    %p38 = scmp.eq.s32.totalorder %s16, 1
    %p39 = por %p37, %p38
    %p41 = scmp.ne.s32.totalorder %s24, %s40
    %p42 = scmp.eq.s32.totalorder %s16, 0
    %p43 = por %p41, %p42
    %s44 = ssub.s32 %s10, %s17
    %p45 = scmp.eq.s32.totalorder %s44, 0
    %s47 = sadd.s32 %s46, 1
    %s48 = scalar_select %p45, %s46, %s47
    %p51 = pneg %p45
    %p52 = scmp.eq.s32.totalorder %s10, 1
    %p53 = por %p51, %p52
    %p54 = scmp.ne.s32.totalorder %s46, %s49
    %p55 = scmp.eq.s32.totalorder %s10, 0
    %p56 = por %p54, %p55
    %p57 = scmp.ne.s32.totalorder %s46, %s49
    %p58 = scmp.eq.s32.totalorder %s15, 1
    %p59 = por %p57, %p58
    %p60 = scmp.ne.s32.totalorder %s49, %s50
    %p61 = scmp.eq.s32.totalorder %s15, 0
    %p62 = por %p60, %p61
    %p63 = scmp.ne.s32.totalorder %s49, %s50
    %p64 = scmp.eq.s32.totalorder %s16, 1
    %p65 = por %p63, %p64
    %p67 = scmp.ne.s32.totalorder %s50, %s66
    %p68 = scmp.eq.s32.totalorder %s16, 0
    %p69 = por %p67, %p68
    %s71 = sadd.s32 %s70, 1
    %p74 = scmp.eq.s32.totalorder %s10, 1
    %p75 = scmp.ne.s32.totalorder %s70, %s72
    %p76 = scmp.eq.s32.totalorder %s10, 0
    %p77 = por %p75, %p76
    %p78 = scmp.ne.s32.totalorder %s70, %s72
    %p79 = scmp.eq.s32.totalorder %s15, 1
    %p80 = por %p78, %p79
    %p81 = scmp.ne.s32.totalorder %s72, %s73
    %p82 = scmp.eq.s32.totalorder %s15, 0
    %p83 = por %p81, %p82
    %p84 = scmp.ne.s32.totalorder %s72, %s73
    %p85 = scmp.eq.s32.totalorder %s16, 1
    %p86 = por %p84, %p85
    %p88 = scmp.ne.s32.totalorder %s73, %s87
    %p89 = scmp.eq.s32.totalorder %s16, 0
    %p90 = por %p88, %p89
    %s92 = sadd.s32 %s91, 1
    %p95 = scmp.eq.s32.totalorder %s10, 1
    %p96 = scmp.ne.s32.totalorder %s91, %s93
    %p97 = scmp.eq.s32.totalorder %s10, 0
    %p98 = por %p96, %p97
    %p99 = scmp.ne.s32.totalorder %s91, %s93
    %p100 = scmp.eq.s32.totalorder %s15, 1
    %p101 = por %p99, %p100
    %p102 = scmp.ne.s32.totalorder %s93, %s94
    %p103 = scmp.eq.s32.totalorder %s15, 0
    %p104 = por %p102, %p103
    %p105 = scmp.ne.s32.totalorder %s93, %s94
    %p106 = scmp.eq.s32.totalorder %s16, 1
    %p107 = por %p105, %p106
    %p109 = scmp.ne.s32.totalorder %s94, %s108
    %p110 = scmp.eq.s32.totalorder %s16, 0
    %p111 = por %p109, %p110
    %s112 = ssub.s32 %s10, %s17
    %p113 = scmp.eq.s32.totalorder %s112, 0
    %s115 = sadd.s32 %s114, 1
    %s116 = scalar_select %p113, %s114, %s115
    %p119 = pneg %p113
    %p120 = scmp.eq.s32.totalorder %s10, 1
    %p121 = por %p119, %p120
    %p122 = scmp.ne.s32.totalorder %s114, %s117
    %p123 = scmp.eq.s32.totalorder %s10, 0
    %p124 = por %p122, %p123
    %p125 = scmp.ne.s32.totalorder %s114, %s117
    %p126 = scmp.eq.s32.totalorder %s15, 1
    %p127 = por %p125, %p126
    %p128 = scmp.ne.s32.totalorder %s117, %s118
    %p129 = scmp.eq.s32.totalorder %s15, 0
    %p130 = por %p128, %p129
    %p131 = scmp.ne.s32.totalorder %s117, %s118
    %p132 = scmp.eq.s32.totalorder %s16, 1
    %p133 = por %p131, %p132
    %p135 = scmp.ne.s32.totalorder %s118, %s134
    %p136 = scmp.eq.s32.totalorder %s16, 0
    %p137 = por %p135, %p136
    %p138 = scmp.le.s32.totalorder 1, %s10
    %p139 = scmp.lt.s32.totalorder %s10, 3
    %p140 = pnand %p138, %p139
    %p141 = pneg %p140
    // Predicated region
    $region9: #{residual_block.5} parent=5 // pred_check
      _
    $region10: #{residual_block.5} parent=5 // pred_check_branch
      %143 = sbr.rel (%p140) target = $region12
    $region11: #{residual_block.5} parent=5 // pred_region
      %s144 = ssub.s32 %s10, 1
      // Predicated region
      $region13: #{residual_block.5} parent=11 // pred_check
        %p145 = pneg %p83
      $region14: #{residual_block.5} parent=11 // pred_check_branch
        %147 = sbr.rel (%p145) target = $region16
      $region15: #{residual_block.5} parent=11 // pred_region
        _
      $region16: #{residual_block.5} parent=11 // pred_fallthru
        _
      // Predicated region
      $region17: #{residual_block.5} parent=11 // pred_check
        %p148 = pneg %p104
      $region18: #{residual_block.5} parent=11 // pred_check_branch
        %150 = sbr.rel (%p148) target = $region20
      $region19: #{residual_block.5} parent=11 // pred_region
        _
      $region20: #{residual_block.5} parent=11 // pred_fallthru
        _
    $region12: #{residual_block.5} parent=5 // pred_fallthru
      _
    %p151 = scmp.lt.s32.totalorder %s10, 2
    // Predicated region
    $region21: #{residual_block.5} parent=5 // pred_check
      %p152 = pneg %p151
    $region22: #{residual_block.5} parent=5 // pred_check_branch
      %154 = sbr.rel (%p152) target = $region24
    $region23: #{residual_block.5} parent=5 // pred_region
      // Predicated region
      $region25: #{residual_block.5} parent=23 // pred_check
        %p155 = pneg %p30
      $region26: #{residual_block.5} parent=23 // pred_check_branch
        %157 = sbr.rel (%p155) target = $region28
      $region27: #{residual_block.5} parent=23 // pred_region
        %s158 = smul.u32 16, %s10
        %p159 = scmp.lt.s32.totalorder %s158, 31
        %s160 = scalar_select %p159, %s158, 31
        %s161 = smul.addr %s160, 2
        %s162 = smul.addr %s161, 8
        %s163 = scalar_lea.vmem %s0, %s162
        %s164 = smul.u32 16, %s10
      $region28: #{residual_block.5} parent=23 // pred_fallthru
        _
      // Predicated region
      $region29: #{residual_block.5} parent=23 // pred_check
        %p165 = pneg %p56
      $region30: #{residual_block.5} parent=23 // pred_check_branch
        %167 = sbr.rel (%p165) target = $region32
      $region31: #{residual_block.5} parent=23 // pred_region
        %s168 = smul.u32 16, %s10
        %p169 = scmp.lt.s32.totalorder %s168, 31
        %s170 = scalar_select %p169, %s168, 31
        %s171 = smul.addr %s170, 2
        %s172 = smul.addr %s171, 8
        %s173 = scalar_lea.vmem %s1, %s172
        %s174 = smul.u32 16, %s10
      $region32: #{residual_block.5} parent=23 // pred_fallthru
        _
    $region24: #{residual_block.5} parent=5 // pred_fallthru
      _
    %p175 = scmp.le.s32.totalorder 1, %s10
    %p176 = scmp.lt.s32.totalorder %s10, 3
    %p177 = pnand %p175, %p176
    %p178 = pneg %p177
    // Predicated region
    $region33: #{residual_block.5} parent=5 // pred_check
      _
    $region34: #{residual_block.5} parent=5 // pred_check_branch
      %180 = sbr.rel (%p177) target = $region36
    $region35: #{residual_block.5} parent=5 // pred_region
      %s181 = ssub.s32 %s10, 1
      %s182 = smul.u32 16, %s15
      %p183 = scmp.lt.s32.totalorder %s182, 31
      %s184 = scalar_select %p183, %s182, 31
      %s185 = smul.addr %s184, 2
      %s186 = smul.addr %s185, 8
      %s187 = scalar_lea.vmem %s0, %s186
      %p188 = pneg %p36
      %p189 = pneg %p33
      %s190 = smul.u32 16, %s15
      %p191 = scmp.lt.s32.totalorder %s190, 31
      %s192 = scalar_select %p191, %s190, 31
      %s193 = smul.addr %s192, 2
      %s194 = smul.addr %s193, 8
      %s195 = scalar_lea.vmem %s1, %s194
      %p196 = pneg %p62
      %p197 = pneg %p59
      %p198 = pneg %p83
      %p199 = pneg %p80
      %p200 = pneg %p104
      %p201 = pneg %p101
      %p202 = pneg %p130
      %p203 = pneg %p127
      %s204 = smul.u32 16, %s15
      %p205 = scmp.lt.s32.totalorder %s204, 31
      %s206 = scalar_select %p205, %s204, 31
      %s207 = smul.addr %s206, 2
      %s208 = smul.addr %s207, 8
      %s209 = scalar_lea.vmem %s4, %s208
      %s210 = smul.u32 16, %s15
      %p211 = scmp.lt.s32.totalorder %s210, 31
      %s212 = scalar_select %p211, %s210, 31
      %s213 = smul.addr %s212, 2
      %s214 = smul.addr %s213, 8
      %s215 = scalar_lea.vmem %s0, %s214
      %s216 = smul.u32 16, %s15
      %s217 = smul.u32 16, %s15
      %p218 = scmp.lt.s32.totalorder %s217, 31
      %s219 = scalar_select %p218, %s217, 31
      %s220 = smul.addr %s219, 2
      %s221 = smul.addr %s220, 8
      %s222 = scalar_lea.vmem %s1, %s221
      %s223 = smul.u32 16, %s15
      %s224 = smul.u32 16, %s15
      %p225 = scmp.lt.s32.totalorder %s224, 31
      %s226 = scalar_select %p225, %s224, 31
      %s227 = smul.addr %s226, 2
      %s228 = smul.addr %s227, 8
      %s229 = scalar_lea.vmem %s4, %s228
      %s230 = smul.u32 16, %s15
      %v231 = vld [vmem:[%s2] sm:$0x1]
      %v232 = vld [vmem:[%s3] sm:$0x1]
      %v233 = vld [vmem:[%s222] sm:$0xff]
      %v234 = vld [vmem:[%s222 + $0x8] sm:$0xff]
      %v235 = vld [vmem:[%s222 + $0x10] sm:$0xff]
      %v236 = vld [vmem:[%s222 + $0x18] sm:$0xff]
      %v237 = vld [vmem:[%s222 + $0x20] sm:$0xff]
      %v238 = vld [vmem:[%s222 + $0x28] sm:$0xff]
      %v239 = vld [vmem:[%s222 + $0x30] sm:$0xff]
      %v240 = vld [vmem:[%s222 + $0x38] sm:$0xff]
      %v241 = vld [vmem:[%s222 + $0x40] sm:$0xff]
      %v242 = vld [vmem:[%s222 + $0x48] sm:$0xff]
      %v243 = vld [vmem:[%s222 + $0x50] sm:$0xff]
      %v244 = vld [vmem:[%s222 + $0x58] sm:$0xff]
      %v245 = vld [vmem:[%s222 + $0x60] sm:$0xff]
      %v246 = vld [vmem:[%s222 + $0x68] sm:$0xff]
      %v247 = vld [vmem:[%s222 + $0x70] sm:$0xff]
      %v248 = vld [vmem:[%s222 + $0x78] sm:$0xff]
      %v249 = vld [vmem:[%s222 + $0x80] sm:$0xff]
      %v250 = vld [vmem:[%s222 + $0x88] sm:$0xff]
      %v251 = vld [vmem:[%s222 + $0x90] sm:$0xff]
      %v252 = vld [vmem:[%s222 + $0x98] sm:$0xff]
      %v253 = vld [vmem:[%s222 + $0xa0] sm:$0xff]
      %v254 = vld [vmem:[%s222 + $0xa8] sm:$0xff]
      %v255 = vld [vmem:[%s222 + $0xb0] sm:$0xff]
      %v256 = vld [vmem:[%s222 + $0xb8] sm:$0xff]
      %v257 = vld [vmem:[%s222 + $0xc0] sm:$0xff]
      %v258 = vld [vmem:[%s222 + $0xc8] sm:$0xff]
      %v259 = vld [vmem:[%s222 + $0xd0] sm:$0xff]
      %v260 = vld [vmem:[%s222 + $0xd8] sm:$0xff]
      %v261 = vld [vmem:[%s222 + $0xe0] sm:$0xff]
      %v262 = vld [vmem:[%s222 + $0xe8] sm:$0xff]
      %v263 = vld [vmem:[%s222 + $0xf0] sm:$0xff]
      %v264 = vld [vmem:[%s222 + $0xf8] sm:$0xff]
      %v265 = vld [vmem:[%s215] sm:$0xff]
      %v266 = vld [vmem:[%s215 + $0x8] sm:$0xff]
      %v267 = vld [vmem:[%s215 + $0x10] sm:$0xff]
      %v268 = vld [vmem:[%s215 + $0x18] sm:$0xff]
      %v269 = vld [vmem:[%s215 + $0x20] sm:$0xff]
      %v270 = vld [vmem:[%s215 + $0x28] sm:$0xff]
      %v271 = vld [vmem:[%s215 + $0x30] sm:$0xff]
      %v272 = vld [vmem:[%s215 + $0x38] sm:$0xff]
      %v273 = vld [vmem:[%s215 + $0x40] sm:$0xff]
      %v274 = vld [vmem:[%s215 + $0x48] sm:$0xff]
      %v275 = vld [vmem:[%s215 + $0x50] sm:$0xff]
      %v276 = vld [vmem:[%s215 + $0x58] sm:$0xff]
      %v277 = vld [vmem:[%s215 + $0x60] sm:$0xff]
      %v278 = vld [vmem:[%s215 + $0x68] sm:$0xff]
      %v279 = vld [vmem:[%s215 + $0x70] sm:$0xff]
      %v280 = vld [vmem:[%s215 + $0x78] sm:$0xff]
      %v281 = vld [vmem:[%s215 + $0x80] sm:$0xff]
      %v282 = vld [vmem:[%s215 + $0x88] sm:$0xff]
      %v283 = vld [vmem:[%s215 + $0x90] sm:$0xff]
      %v284 = vld [vmem:[%s215 + $0x98] sm:$0xff]
      %v285 = vld [vmem:[%s215 + $0xa0] sm:$0xff]
      %v286 = vld [vmem:[%s215 + $0xa8] sm:$0xff]
      %v287 = vld [vmem:[%s215 + $0xb0] sm:$0xff]
      %v288 = vld [vmem:[%s215 + $0xb8] sm:$0xff]
      %v289 = vld [vmem:[%s215 + $0xc0] sm:$0xff]
      %v290 = vld [vmem:[%s215 + $0xc8] sm:$0xff]
      %v291 = vld [vmem:[%s215 + $0xd0] sm:$0xff]
      %v292 = vld [vmem:[%s215 + $0xd8] sm:$0xff]
      %v293 = vld [vmem:[%s215 + $0xe0] sm:$0xff]
      %v294 = vld [vmem:[%s215 + $0xe8] sm:$0xff]
      %v295 = vld [vmem:[%s215 + $0xf0] sm:$0xff]
      %v296 = vld [vmem:[%s215 + $0xf8] sm:$0xff]
      %v298 = vperm.slane %v231, 0
      %v300 = vmul.f32 %v265, %v298
      %v301 = vmul.f32 %v266, %v298
      %v302 = vmul.f32 %v267, %v298
      %v303 = vmul.f32 %v268, %v298
      %v304 = vmul.f32 %v269, %v298
      %v305 = vmul.f32 %v270, %v298
      %v306 = vmul.f32 %v271, %v298
      %v307 = vmul.f32 %v272, %v298
      %v308 = vmul.f32 %v273, %v298
      %v309 = vmul.f32 %v274, %v298
      %v310 = vmul.f32 %v275, %v298
      %v311 = vmul.f32 %v276, %v298
      %v312 = vmul.f32 %v277, %v298
      %v313 = vmul.f32 %v278, %v298
      %v314 = vmul.f32 %v279, %v298
      %v315 = vmul.f32 %v280, %v298
      %v316 = vmul.f32 %v281, %v298
      %v317 = vmul.f32 %v282, %v298
      %v318 = vmul.f32 %v283, %v298
      %v319 = vmul.f32 %v284, %v298
      %v320 = vmul.f32 %v285, %v298
      %v321 = vmul.f32 %v286, %v298
      %v322 = vmul.f32 %v287, %v298
      %v323 = vmul.f32 %v288, %v298
      %v324 = vmul.f32 %v289, %v298
      %v325 = vmul.f32 %v290, %v298
      %v326 = vmul.f32 %v291, %v298
      %v327 = vmul.f32 %v292, %v298
      %v328 = vmul.f32 %v293, %v298
      %v329 = vmul.f32 %v294, %v298
      %v330 = vmul.f32 %v295, %v298
      %v331 = vmul.f32 %v296, %v298
      %v332 = vadd.f32 %v233, %v300
      %v333 = vadd.f32 %v234, %v301
      %v334 = vadd.f32 %v235, %v302
      %v335 = vadd.f32 %v236, %v303
      %v336 = vadd.f32 %v237, %v304
      %v337 = vadd.f32 %v238, %v305
      %v338 = vadd.f32 %v239, %v306
      %v339 = vadd.f32 %v240, %v307
      %v340 = vadd.f32 %v241, %v308
      %v341 = vadd.f32 %v242, %v309
      %v342 = vadd.f32 %v243, %v310
      %v343 = vadd.f32 %v244, %v311
      %v344 = vadd.f32 %v245, %v312
      %v345 = vadd.f32 %v246, %v313
      %v346 = vadd.f32 %v247, %v314
      %v347 = vadd.f32 %v248, %v315
      %v348 = vadd.f32 %v249, %v316
      %v349 = vadd.f32 %v250, %v317
      %v350 = vadd.f32 %v251, %v318
      %v351 = vadd.f32 %v252, %v319
      %v352 = vadd.f32 %v253, %v320
      %v353 = vadd.f32 %v254, %v321
      %v354 = vadd.f32 %v255, %v322
      %v355 = vadd.f32 %v256, %v323
      %v356 = vadd.f32 %v257, %v324
      %v357 = vadd.f32 %v258, %v325
      %v358 = vadd.f32 %v259, %v326
      %v359 = vadd.f32 %v260, %v327
      %v360 = vadd.f32 %v261, %v328
      %v361 = vadd.f32 %v262, %v329
      %v362 = vadd.f32 %v263, %v330
      %v363 = vadd.f32 %v264, %v331
      %v365 = vperm.slane %v232, 0
      %v367 = vadd.f32 %v332, %v365
      %v368 = vadd.f32 %v333, %v365
      %v369 = vadd.f32 %v334, %v365
      %v370 = vadd.f32 %v335, %v365
      %v371 = vadd.f32 %v336, %v365
      %v372 = vadd.f32 %v337, %v365
      %v373 = vadd.f32 %v338, %v365
      %v374 = vadd.f32 %v339, %v365
      %v375 = vadd.f32 %v340, %v365
      %v376 = vadd.f32 %v341, %v365
      %v377 = vadd.f32 %v342, %v365
      %v378 = vadd.f32 %v343, %v365
      %v379 = vadd.f32 %v344, %v365
      %v380 = vadd.f32 %v345, %v365
      %v381 = vadd.f32 %v346, %v365
      %v382 = vadd.f32 %v347, %v365
      %v383 = vadd.f32 %v348, %v365
      %v384 = vadd.f32 %v349, %v365
      %v385 = vadd.f32 %v350, %v365
      %v386 = vadd.f32 %v351, %v365
      %v387 = vadd.f32 %v352, %v365
      %v388 = vadd.f32 %v353, %v365
      %v389 = vadd.f32 %v354, %v365
      %v390 = vadd.f32 %v355, %v365
      %v391 = vadd.f32 %v356, %v365
      %v392 = vadd.f32 %v357, %v365
      %v393 = vadd.f32 %v358, %v365
      %v394 = vadd.f32 %v359, %v365
      %v395 = vadd.f32 %v360, %v365
      %v396 = vadd.f32 %v361, %v365
      %v397 = vadd.f32 %v362, %v365
      %v398 = vadd.f32 %v363, %v365
      %vm399 = vcmask 31744
      %400 = vst.msk [vmem:[%s229] sm:$0xff] %vm399, %v367
      %401 = vst.msk [vmem:[%s229 + $0x8] sm:$0xff] %vm399, %v368
      %402 = vst.msk [vmem:[%s229 + $0x10] sm:$0xff] %vm399, %v369
      %403 = vst.msk [vmem:[%s229 + $0x18] sm:$0xff] %vm399, %v370
      %404 = vst.msk [vmem:[%s229 + $0x20] sm:$0xff] %vm399, %v371
      %405 = vst.msk [vmem:[%s229 + $0x28] sm:$0xff] %vm399, %v372
      %406 = vst.msk [vmem:[%s229 + $0x30] sm:$0xff] %vm399, %v373
      %407 = vst.msk [vmem:[%s229 + $0x38] sm:$0xff] %vm399, %v374
      %408 = vst.msk [vmem:[%s229 + $0x40] sm:$0xff] %vm399, %v375
      %409 = vst.msk [vmem:[%s229 + $0x48] sm:$0xff] %vm399, %v376
      %410 = vst.msk [vmem:[%s229 + $0x50] sm:$0xff] %vm399, %v377
      %411 = vst.msk [vmem:[%s229 + $0x58] sm:$0xff] %vm399, %v378
      %412 = vst.msk [vmem:[%s229 + $0x60] sm:$0xff] %vm399, %v379
      %413 = vst.msk [vmem:[%s229 + $0x68] sm:$0xff] %vm399, %v380
      %414 = vst.msk [vmem:[%s229 + $0x70] sm:$0xff] %vm399, %v381
      %415 = vst.msk [vmem:[%s229 + $0x78] sm:$0xff] %vm399, %v382
      %416 = vst.msk [vmem:[%s229 + $0x80] sm:$0xff] %vm399, %v383
      %417 = vst.msk [vmem:[%s229 + $0x88] sm:$0xff] %vm399, %v384
      %418 = vst.msk [vmem:[%s229 + $0x90] sm:$0xff] %vm399, %v385
      %419 = vst.msk [vmem:[%s229 + $0x98] sm:$0xff] %vm399, %v386
      %420 = vst.msk [vmem:[%s229 + $0xa0] sm:$0xff] %vm399, %v387
      %421 = vst.msk [vmem:[%s229 + $0xa8] sm:$0xff] %vm399, %v388
      %422 = vst.msk [vmem:[%s229 + $0xb0] sm:$0xff] %vm399, %v389
      %423 = vst.msk [vmem:[%s229 + $0xb8] sm:$0xff] %vm399, %v390
      %424 = vst.msk [vmem:[%s229 + $0xc0] sm:$0xff] %vm399, %v391
      %425 = vst.msk [vmem:[%s229 + $0xc8] sm:$0xff] %vm399, %v392
      %426 = vst.msk [vmem:[%s229 + $0xd0] sm:$0xff] %vm399, %v393
      %427 = vst.msk [vmem:[%s229 + $0xd8] sm:$0xff] %vm399, %v394
      %428 = vst.msk [vmem:[%s229 + $0xe0] sm:$0xff] %vm399, %v395
      %429 = vst.msk [vmem:[%s229 + $0xe8] sm:$0xff] %vm399, %v396
      %430 = vst.msk [vmem:[%s229 + $0xf0] sm:$0xff] %vm399, %v397
      %431 = vst.msk [vmem:[%s229 + $0xf8] sm:$0xff] %vm399, %v398
      %s432 = smul.u32 16, %s15
      %p433 = scmp.lt.s32.totalorder %s432, 31
      %s434 = scalar_select %p433, %s432, 31
      %s435 = smul.addr %s434, 2
      %s436 = smul.addr %s435, 8
      %s437 = scalar_lea.vmem %s4, %s436
      // Predicated region
      $region37: #{residual_block.5} parent=35 // pred_check
        %p438 = pneg %p127
      $region38: #{residual_block.5} parent=35 // pred_check_branch
        %440 = sbr.rel (%p438) target = $region40
      $region39: #{residual_block.5} parent=35 // pred_region
        %s441 = smul.u32 16, %s15
      $region40: #{residual_block.5} parent=35 // pred_fallthru
        _
    $region36: #{residual_block.5} parent=5 // pred_fallthru
      _
    %p442 = scmp.le.s32.totalorder 2, %s10
    // Predicated region
    $region41: #{residual_block.5} parent=5 // pred_check
      %p443 = pneg %p442
    $region42: #{residual_block.5} parent=5 // pred_check_branch
      %445 = sbr.rel (%p443) target = $region44
    $region43: #{residual_block.5} parent=5 // pred_region
      %s446 = ssub.s32 %s10, 2
      // Predicated region
      $region45: #{residual_block.5} parent=43 // pred_check
        %p447 = pneg %p133
      $region46: #{residual_block.5} parent=43 // pred_check_branch
        %449 = sbr.rel (%p447) target = $region48
      $region47: #{residual_block.5} parent=43 // pred_region
        %s450 = smul.u32 16, %s16
        %p451 = scmp.lt.s32.totalorder %s450, 31
        %s452 = scalar_select %p451, %s450, 31
        %s453 = smul.addr %s452, 2
        %s454 = smul.addr %s453, 8
        %s455 = scalar_lea.vmem %s4, %s454
      $region48: #{residual_block.5} parent=43 // pred_fallthru
        _
    $region44: #{residual_block.5} parent=5 // pred_fallthru
      _
  $region6: #{residual_block.5} parent=0 // loop_footer
    %s14 = sadd.s32 1, %s10
  $region7: #{residual_block.5} parent=0 // loop_footer_branch
    %9 = sbr.rel target = $region3
  $region8: #{residual_block.5} parent=0 // loop_exit
    _

// kernel: residual_block.3
$region0: #{residual_block.3}
  #allocation0 [shape = 'u32[]', space=smem, size = 0x4, offset = 0x4, fixed_abs, tag = 'smem constant byte address 0x4 - core index']
  #allocation1 [shape = 'u32[72,128]{1,0:T(1,128)}', space=vmem, size = 0x9000, scoped, tag = 'internal scratch']
  %s0 = inlined_call_operand.vmem [shape: f32[2,16,16,4], index: 0, kind: input, shape index: {}, may-alias: {0,1,2}]
  %s1 = inlined_call_operand.vmem [shape: f32[2,16,16,4], index: 1, kind: input, shape index: {}, may-alias: {0,1,2}]
  %s2 = inlined_call_operand.vmem [shape: f32[2,16,16,4], index: 2, kind: input, shape index: {}, may-alias: {0,1,2}]
  %s3 = inlined_call_operand.vmem [shape: f32[3,12,4], index: 3, kind: input, shape index: {}]
  %s4 = inlined_call_operand.vmem [shape: f32[2,16,16,4], index: 4, kind: output, shape index: {0}]
  %s5 = inlined_call_operand.vmem [shape: f32[2,1,2,4], index: 5, kind: output, shape index: {1}]
  %6 = xla_tuple %s4, %s5
  %s7 = sld [smem:[#allocation0]]
  $region57: #{residual_block.3} parent=0
    _
  %s9 = ssub.s32 1, %s7
  %s10 = scalar_select 0, %s9, %s7
  loop: start=0, step=1, limit=4
  $region2: #{residual_block.3} parent=0 // loop_pre_header
    _
  $region3: #{residual_block.3} parent=0 // loop_header
    %s12 = sphi 0, %s16
    %p13 = scmp.ge.s32.totalorder %s12, 4
    %s19 = sphi 0, %s31
    %s20 = sphi 0, %s27
    %s21 = sphi 0, %s19
    %s22 = sphi 0, %s20
    %s23 = sphi 0, %s21
    %s24 = sphi 0, %s22
    %s36 = sphi 0, %s38
    %s39 = sphi 0, %s36
    %s40 = sphi 0, %s39
    %s56 = sphi 0, %s40
    %s74 = sphi 0, %s76
    %s77 = sphi 0, %s74
    %s78 = sphi 0, %s77
    %s94 = sphi 0, %s78
    %s116 = sphi 0, %s118
    %s119 = sphi 0, %s116
    %s120 = sphi 0, %s119
    %s136 = sphi 0, %s120
    %s140 = sphi 0, %s140
    %s142 = sphi 0, %s140
    %s143 = sphi 0, %s142
    %s157 = sphi 0, %s143
    %s165 = sphi 0, %s167
    %s168 = sphi 0, %s165
    %s169 = sphi 0, %s168
    %s185 = sphi 0, %s169
    %s193 = sphi 0, %s195
    %s196 = sphi 0, %s193
    %s197 = sphi 0, %s196
    %s213 = sphi 0, %s197
  $region4: #{residual_block.3} parent=0 // loop_header_branch
    %15 = sbr.rel (%p13) target = $region8
  $region5: #{residual_block.3} parent=0 // loop_body
    %s17 = ssub.s32 %s12, 1
    %s18 = ssub.s32 %s12, 2
    %s25 = sadd.s32 1, %s20
    %p26 = scmp.ge.s32.totalorder %s25, 1
    %s27 = scalar_select %p26, 0, %s25
    %s28 = sadd.s32 1, %s19
    %s29 = scalar_select %p26, %s28, %s19
    %p30 = scmp.ge.s32.totalorder %s29, 2
    %s31 = scalar_select %p30, 0, %s29
    %s32 = ssub.s32 %s19, %s31
    %s33 = ssub.s32 %s20, %s27
    %s34 = sor.u32 %s32, %s33
    %p35 = scmp.eq.s32.totalorder %s34, 0
    %s37 = sadd.s32 %s36, 1
    %s38 = scalar_select %p35, %s36, %s37
    %p41 = pneg %p35
    %p42 = scmp.eq.s32.totalorder %s12, 1
    %p43 = por %p41, %p42
    %p44 = scmp.ne.s32.totalorder %s36, %s39
    %p45 = scmp.eq.s32.totalorder %s12, 0
    %p46 = por %p44, %p45
    %p47 = scmp.ne.s32.totalorder %s36, %s39
    %p48 = scmp.eq.s32.totalorder %s17, 1
    %p49 = por %p47, %p48
    %p50 = scmp.ne.s32.totalorder %s39, %s40
    %p51 = scmp.eq.s32.totalorder %s17, 0
    %p52 = por %p50, %p51
    %p53 = scmp.ne.s32.totalorder %s39, %s40
    %p54 = scmp.eq.s32.totalorder %s18, 1
    %p55 = por %p53, %p54
    %p57 = scmp.ne.s32.totalorder %s40, %s56
    %p58 = scmp.eq.s32.totalorder %s18, 0
    %p59 = por %p57, %p58
    %s60 = smul.u32 %s20, 16
    %s61 = ssub.s32 %s60, 1
    %s62 = ssub.s32 1, %s60
    %p63 = scmp.gt.s32.totalorder %s61, %s62
    %s64 = scalar_select %p63, %s61, %s62
    %s65 = smul.u32 %s27, 16
    %s66 = ssub.s32 %s65, 1
    %s67 = ssub.s32 1, %s65
    %p68 = scmp.gt.s32.totalorder %s66, %s67
    %s69 = scalar_select %p68, %s66, %s67
    %s70 = ssub.s32 %s19, %s31
    %s71 = ssub.s32 %s64, %s69
    %s72 = sor.u32 %s70, %s71
    %p73 = scmp.eq.s32.totalorder %s72, 0
    %s75 = sadd.s32 %s74, 1
    %s76 = scalar_select %p73, %s74, %s75
    %p79 = pneg %p73
    %p80 = scmp.eq.s32.totalorder %s12, 1
    %p81 = por %p79, %p80
    %p82 = scmp.ne.s32.totalorder %s74, %s77
    %p83 = scmp.eq.s32.totalorder %s12, 0
    %p84 = por %p82, %p83
    %p85 = scmp.ne.s32.totalorder %s74, %s77
    %p86 = scmp.eq.s32.totalorder %s17, 1
    %p87 = por %p85, %p86
    %p88 = scmp.ne.s32.totalorder %s77, %s78
    %p89 = scmp.eq.s32.totalorder %s17, 0
    %p90 = por %p88, %p89
    %p91 = scmp.ne.s32.totalorder %s77, %s78
    %p92 = scmp.eq.s32.totalorder %s18, 1
    %p93 = por %p91, %p92
    %p95 = scmp.ne.s32.totalorder %s78, %s94
    %p96 = scmp.eq.s32.totalorder %s18, 0
    %p97 = por %p95, %p96
    %s98 = sadd.s32 %s20, 1
    %s99 = smul.u32 %s98, 16
    %s100 = ssub.s32 15, %s99
    %s101 = sadd.s32 %s99, 4294967281
    %p102 = scmp.gt.s32.totalorder %s100, %s101
    %s103 = scalar_select %p102, %s100, %s101
    %s104 = ssub.s32 15, %s103
    %s105 = sadd.s32 %s27, 1
    %s106 = smul.u32 %s105, 16
    %s107 = ssub.s32 15, %s106
    %s108 = sadd.s32 %s106, 4294967281
    %p109 = scmp.gt.s32.totalorder %s107, %s108
    %s110 = scalar_select %p109, %s107, %s108
    %s111 = ssub.s32 15, %s110
    %s112 = ssub.s32 %s19, %s31
    %s113 = ssub.s32 %s104, %s111
    %s114 = sor.u32 %s112, %s113
    %p115 = scmp.eq.s32.totalorder %s114, 0
    %s117 = sadd.s32 %s116, 1
    %s118 = scalar_select %p115, %s116, %s117
    %p121 = pneg %p115
    %p122 = scmp.eq.s32.totalorder %s12, 1
    %p123 = por %p121, %p122
    %p124 = scmp.ne.s32.totalorder %s116, %s119
    %p125 = scmp.eq.s32.totalorder %s12, 0
    %p126 = por %p124, %p125
    %p127 = scmp.ne.s32.totalorder %s116, %s119
    %p128 = scmp.eq.s32.totalorder %s17, 1
    %p129 = por %p127, %p128
    %p130 = scmp.ne.s32.totalorder %s119, %s120
    %p131 = scmp.eq.s32.totalorder %s17, 0
    %p132 = por %p130, %p131
    %p133 = scmp.ne.s32.totalorder %s119, %s120
    %p134 = scmp.eq.s32.totalorder %s18, 1
    %p135 = por %p133, %p134
    %p137 = scmp.ne.s32.totalorder %s120, %s136
    %p138 = scmp.eq.s32.totalorder %s18, 0
    %p139 = por %p137, %p138
    %s141 = sadd.s32 %s140, 1
    %p144 = scmp.eq.s32.totalorder %s12, 1
    %p145 = scmp.ne.s32.totalorder %s140, %s142
    %p146 = scmp.eq.s32.totalorder %s12, 0
    %p147 = por %p145, %p146
    %p148 = scmp.ne.s32.totalorder %s140, %s142
    %p149 = scmp.eq.s32.totalorder %s17, 1
    %p150 = por %p148, %p149
    %p151 = scmp.ne.s32.totalorder %s142, %s143
    %p152 = scmp.eq.s32.totalorder %s17, 0
    %p153 = por %p151, %p152
    %p154 = scmp.ne.s32.totalorder %s142, %s143
    %p155 = scmp.eq.s32.totalorder %s18, 1
    %p156 = por %p154, %p155
    %p158 = scmp.ne.s32.totalorder %s143, %s157
    %p159 = scmp.eq.s32.totalorder %s18, 0
    %p160 = por %p158, %p159
    %s161 = ssub.s32 %s19, %s31
    %s162 = ssub.s32 %s20, %s27
    %s163 = sor.u32 %s161, %s162
    %p164 = scmp.eq.s32.totalorder %s163, 0
    %s166 = sadd.s32 %s165, 1
    %s167 = scalar_select %p164, %s165, %s166
    %p170 = pneg %p164
    %p171 = scmp.eq.s32.totalorder %s12, 1
    %p172 = por %p170, %p171
    %p173 = scmp.ne.s32.totalorder %s165, %s168
    %p174 = scmp.eq.s32.totalorder %s12, 0
    %p175 = por %p173, %p174
    %p176 = scmp.ne.s32.totalorder %s165, %s168
    %p177 = scmp.eq.s32.totalorder %s17, 1
    %p178 = por %p176, %p177
    %p179 = scmp.ne.s32.totalorder %s168, %s169
    %p180 = scmp.eq.s32.totalorder %s17, 0
    %p181 = por %p179, %p180
    %p182 = scmp.ne.s32.totalorder %s168, %s169
    %p183 = scmp.eq.s32.totalorder %s18, 1
    %p184 = por %p182, %p183
    %p186 = scmp.ne.s32.totalorder %s169, %s185
    %p187 = scmp.eq.s32.totalorder %s18, 0
    %p188 = por %p186, %p187
    %s189 = ssub.s32 %s19, %s31
    %s190 = ssub.s32 %s20, %s27
    %s191 = sor.u32 %s189, %s190
    %p192 = scmp.eq.s32.totalorder %s191, 0
    %s194 = sadd.s32 %s193, 1
    %s195 = scalar_select %p192, %s193, %s194
    %p198 = pneg %p192
    %p199 = scmp.eq.s32.totalorder %s12, 1
    %p200 = por %p198, %p199
    %p201 = scmp.ne.s32.totalorder %s193, %s196
    %p202 = scmp.eq.s32.totalorder %s12, 0
    %p203 = por %p201, %p202
    %p204 = scmp.ne.s32.totalorder %s193, %s196
    %p205 = scmp.eq.s32.totalorder %s17, 1
    %p206 = por %p204, %p205
    %p207 = scmp.ne.s32.totalorder %s196, %s197
    %p208 = scmp.eq.s32.totalorder %s17, 0
    %p209 = por %p207, %p208
    %p210 = scmp.ne.s32.totalorder %s196, %s197
    %p211 = scmp.eq.s32.totalorder %s18, 1
    %p212 = por %p210, %p211
    %p214 = scmp.ne.s32.totalorder %s197, %s213
    %p215 = scmp.eq.s32.totalorder %s18, 0
    %p216 = por %p214, %p215
    %p217 = scmp.le.s32.totalorder 1, %s12
    %p218 = scmp.lt.s32.totalorder %s12, 3
    %p219 = pnand %p217, %p218
    %p220 = pneg %p219
    // Predicated region
    $region9: #{residual_block.3} parent=5 // pred_check
      _
    $region10: #{residual_block.3} parent=5 // pred_check_branch
      %222 = sbr.rel (%p219) target = $region12
    $region11: #{residual_block.3} parent=5 // pred_region
      %s223 = ssub.s32 %s12, 1
      // Predicated region
      $region13: #{residual_block.3} parent=11 // pred_check
        %p224 = pneg %p153
      $region14: #{residual_block.3} parent=11 // pred_check_branch
        %226 = sbr.rel (%p224) target = $region16
      $region15: #{residual_block.3} parent=11 // pred_region
        _
      $region16: #{residual_block.3} parent=11 // pred_fallthru
        _
    $region12: #{residual_block.3} parent=5 // pred_fallthru
      _
    %p227 = scmp.lt.s32.totalorder %s12, 2
    // Predicated region
    $region17: #{residual_block.3} parent=5 // pred_check
      %p228 = pneg %p227
    $region18: #{residual_block.3} parent=5 // pred_check_branch
      %230 = sbr.rel (%p228) target = $region20
    $region19: #{residual_block.3} parent=5 // pred_region
      // Predicated region
      $region21: #{residual_block.3} parent=19 // pred_check
        %p231 = pneg %p46
      $region22: #{residual_block.3} parent=19 // pred_check_branch
        %233 = sbr.rel (%p231) target = $region24
      $region23: #{residual_block.3} parent=19 // pred_region
        %s234 = smul.u32 16, %s20
        %p235 = scmp.lt.s32.totalorder %s19, 1
        %s236 = scalar_select %p235, %s19, 1
        %p237 = scmp.lt.s32.totalorder %s234, 15
        %s238 = scalar_select %p237, %s234, 15
        %s239 = smul.addr %s238, 2
        %s240 = smul.addr %s236, 32
        %s241 = sadd.s32 %s239, %s240
        %s242 = smul.addr %s241, 8
        %s243 = scalar_lea.vmem %s0, %s242
        %s244 = smul.u32 16, %s20
      $region24: #{residual_block.3} parent=19 // pred_fallthru
        _
      // Predicated region
      $region25: #{residual_block.3} parent=19 // pred_check
        %p245 = pneg %p84
      $region26: #{residual_block.3} parent=19 // pred_check_branch
        %247 = sbr.rel (%p245) target = $region28
      $region27: #{residual_block.3} parent=19 // pred_region
        %s248 = smul.u32 %s20, 16
        %s249 = ssub.s32 %s248, 1
        %s250 = ssub.s32 1, %s248
        %p251 = scmp.gt.s32.totalorder %s249, %s250
        %s252 = scalar_select %p251, %s249, %s250
        %p253 = scmp.lt.s32.totalorder %s19, 1
        %s254 = scalar_select %p253, %s19, 1
        %p255 = scmp.lt.s32.totalorder %s252, 15
        %s256 = scalar_select %p255, %s252, 15
        %s257 = smul.addr %s256, 2
        %s258 = smul.addr %s254, 32
        %s259 = sadd.s32 %s257, %s258
        %s260 = smul.addr %s259, 8
        %s261 = scalar_lea.vmem %s1, %s260
        %s262 = smul.u32 %s20, 16
        %s263 = ssub.s32 %s262, 1
        %s264 = ssub.s32 1, %s262
        %p265 = scmp.gt.s32.totalorder %s263, %s264
        %s266 = scalar_select %p265, %s263, %s264
      $region28: #{residual_block.3} parent=19 // pred_fallthru
        _
      // Predicated region
      $region29: #{residual_block.3} parent=19 // pred_check
        %p267 = pneg %p126
      $region30: #{residual_block.3} parent=19 // pred_check_branch
        %269 = sbr.rel (%p267) target = $region32
      $region31: #{residual_block.3} parent=19 // pred_region
        %s270 = sadd.s32 %s20, 1
        %s271 = smul.u32 %s270, 16
        %s272 = ssub.s32 15, %s271
        %s273 = sadd.s32 %s271, 4294967281
        %p274 = scmp.gt.s32.totalorder %s272, %s273
        %s275 = scalar_select %p274, %s272, %s273
        %s276 = ssub.s32 15, %s275
        %p277 = scmp.lt.s32.totalorder %s19, 1
        %s278 = scalar_select %p277, %s19, 1
        %p279 = scmp.lt.s32.totalorder %s276, 15
        %s280 = scalar_select %p279, %s276, 15
        %s281 = smul.addr %s280, 2
        %s282 = smul.addr %s278, 32
        %s283 = sadd.s32 %s281, %s282
        %s284 = smul.addr %s283, 8
        %s285 = scalar_lea.vmem %s2, %s284
        %s286 = sadd.s32 %s20, 1
        %s287 = smul.u32 %s286, 16
        %s288 = ssub.s32 15, %s287
        %s289 = sadd.s32 %s287, 4294967281
        %p290 = scmp.gt.s32.totalorder %s288, %s289
        %s291 = scalar_select %p290, %s288, %s289
        %s292 = ssub.s32 15, %s291
      $region32: #{residual_block.3} parent=19 // pred_fallthru
        _
    $region20: #{residual_block.3} parent=5 // pred_fallthru
      _
    %p293 = scmp.le.s32.totalorder 1, %s12
    %p294 = scmp.lt.s32.totalorder %s12, 3
    %p295 = pnand %p293, %p294
    %p296 = pneg %p295
    // Predicated region
    $region33: #{residual_block.3} parent=5 // pred_check
      _
    $region34: #{residual_block.3} parent=5 // pred_check_branch
      %298 = sbr.rel (%p295) target = $region36
    $region35: #{residual_block.3} parent=5 // pred_region
      %s299 = ssub.s32 %s12, 1
      %s300 = smul.u32 16, %s22
      %p301 = scmp.lt.s32.totalorder %s21, 1
      %s302 = scalar_select %p301, %s21, 1
      %p303 = scmp.lt.s32.totalorder %s300, 15
      %s304 = scalar_select %p303, %s300, 15
      %s305 = smul.addr %s304, 2
      %s306 = smul.addr %s302, 32
      %s307 = sadd.s32 %s305, %s306
      %s308 = smul.addr %s307, 8
      %s309 = scalar_lea.vmem %s0, %s308
      %p310 = pneg %p52
      %p311 = pneg %p49
      %s312 = smul.u32 %s22, 16
      %s313 = ssub.s32 %s312, 1
      %s314 = ssub.s32 1, %s312
      %p315 = scmp.gt.s32.totalorder %s313, %s314
      %s316 = scalar_select %p315, %s313, %s314
      %p317 = scmp.lt.s32.totalorder %s21, 1
      %s318 = scalar_select %p317, %s21, 1
      %p319 = scmp.lt.s32.totalorder %s316, 15
      %s320 = scalar_select %p319, %s316, 15
      %s321 = smul.addr %s320, 2
      %s322 = smul.addr %s318, 32
      %s323 = sadd.s32 %s321, %s322
      %s324 = smul.addr %s323, 8
      %s325 = scalar_lea.vmem %s1, %s324
      %p326 = pneg %p90
      %p327 = pneg %p87
      %s328 = sadd.s32 %s22, 1
      %s329 = smul.u32 %s328, 16
      %s330 = ssub.s32 15, %s329
      %s331 = sadd.s32 %s329, 4294967281
      %p332 = scmp.gt.s32.totalorder %s330, %s331
      %s333 = scalar_select %p332, %s330, %s331
      %s334 = ssub.s32 15, %s333
      %p335 = scmp.lt.s32.totalorder %s21, 1
      %s336 = scalar_select %p335, %s21, 1
      %p337 = scmp.lt.s32.totalorder %s334, 15
      %s338 = scalar_select %p337, %s334, 15
      %s339 = smul.addr %s338, 2
      %s340 = smul.addr %s336, 32
      %s341 = sadd.s32 %s339, %s340
      %s342 = smul.addr %s341, 8
      %s343 = scalar_lea.vmem %s2, %s342
      %p344 = pneg %p132
      %p345 = pneg %p129
      %p346 = pneg %p153
      %p347 = pneg %p150
      %p348 = pneg %p181
      %p349 = pneg %p178
      %s350 = smul.u32 16, %s22
      %p351 = scmp.lt.s32.totalorder %s21, 1
      %s352 = scalar_select %p351, %s21, 1
      %p353 = scmp.lt.s32.totalorder %s350, 15
      %s354 = scalar_select %p353, %s350, 15
      %s355 = smul.addr %s354, 2
      %s356 = smul.addr %s352, 32
      %s357 = sadd.s32 %s355, %s356
      %s358 = smul.addr %s357, 8
      %s359 = scalar_lea.vmem %s4, %s358
      %p360 = pneg %p209
      %p361 = pneg %p206
      %p362 = scmp.lt.s32.totalorder %s21, 1
      %s363 = scalar_select %p362, %s21, 1
      %p364 = scmp.lt.s32.totalorder %s22, 0
      %s365 = scalar_select %p364, %s22, 0
      %s366 = sadd.s32 %s365, %s363
      %s367 = smul.addr %s366, 2
      %s368 = scalar_lea.vmem %s5, %s367
      %s369 = smul.u32 16, %s22
      %p370 = scmp.lt.s32.totalorder %s21, 1
      %s371 = scalar_select %p370, %s21, 1
      %p372 = scmp.lt.s32.totalorder %s369, 15
      %s373 = scalar_select %p372, %s369, 15
      %s374 = smul.addr %s373, 2
      %s375 = smul.addr %s371, 32
      %s376 = sadd.s32 %s374, %s375
      %s377 = smul.addr %s376, 8
      %s378 = scalar_lea.vmem %s0, %s377
      %s379 = smul.u32 16, %s22
      %s380 = smul.u32 %s22, 16
      %s381 = ssub.s32 %s380, 1
      %s382 = ssub.s32 1, %s380
      %p383 = scmp.gt.s32.totalorder %s381, %s382
      %s384 = scalar_select %p383, %s381, %s382
      %p385 = scmp.lt.s32.totalorder %s21, 1
      %s386 = scalar_select %p385, %s21, 1
      %p387 = scmp.lt.s32.totalorder %s384, 15
      %s388 = scalar_select %p387, %s384, 15
      %s389 = smul.addr %s388, 2
      %s390 = smul.addr %s386, 32
      %s391 = sadd.s32 %s389, %s390
      %s392 = smul.addr %s391, 8
      %s393 = scalar_lea.vmem %s1, %s392
      %s394 = smul.u32 %s22, 16
      %s395 = ssub.s32 %s394, 1
      %s396 = ssub.s32 1, %s394
      %p397 = scmp.gt.s32.totalorder %s395, %s396
      %s398 = scalar_select %p397, %s395, %s396
      %s399 = sadd.s32 %s22, 1
      %s400 = smul.u32 %s399, 16
      %s401 = ssub.s32 15, %s400
      %s402 = sadd.s32 %s400, 4294967281
      %p403 = scmp.gt.s32.totalorder %s401, %s402
      %s404 = scalar_select %p403, %s401, %s402
      %s405 = ssub.s32 15, %s404
      %p406 = scmp.lt.s32.totalorder %s21, 1
      %s407 = scalar_select %p406, %s21, 1
      %p408 = scmp.lt.s32.totalorder %s405, 15
      %s409 = scalar_select %p408, %s405, 15
      %s410 = smul.addr %s409, 2
      %s411 = smul.addr %s407, 32
      %s412 = sadd.s32 %s410, %s411
      %s413 = smul.addr %s412, 8
      %s414 = scalar_lea.vmem %s2, %s413
      %s415 = sadd.s32 %s22, 1
      %s416 = smul.u32 %s415, 16
      %s417 = ssub.s32 15, %s416
      %s418 = sadd.s32 %s416, 4294967281
      %p419 = scmp.gt.s32.totalorder %s417, %s418
      %s420 = scalar_select %p419, %s417, %s418
      %s421 = ssub.s32 15, %s420
      %s422 = smul.u32 16, %s22
      %p423 = scmp.lt.s32.totalorder %s21, 1
      %s424 = scalar_select %p423, %s21, 1
      %p425 = scmp.lt.s32.totalorder %s422, 15
      %s426 = scalar_select %p425, %s422, 15
      %s427 = smul.addr %s426, 2
      %s428 = smul.addr %s424, 32
      %s429 = sadd.s32 %s427, %s428
      %s430 = smul.addr %s429, 8
      %s431 = scalar_lea.vmem %s4, %s430
      %s432 = smul.u32 16, %s22
      %p433 = scmp.lt.s32.totalorder %s21, 1
      %s434 = scalar_select %p433, %s21, 1
      %p435 = scmp.lt.s32.totalorder %s22, 0
      %s436 = scalar_select %p435, %s22, 0
      %s437 = sadd.s32 %s436, %s434
      %s438 = smul.addr %s437, 2
      %s439 = scalar_lea.vmem %s5, %s438
      %v440 = vld [vmem:[%s393] sm:$0xff]
      %v441 = vld [vmem:[%s393 + $0x8] sm:$0xff]
      %v442 = vld [vmem:[%s378] sm:$0xff]
      %v443 = vld [vmem:[%s378 + $0x8] sm:$0xff]
      %v444 = vld [vmem:[%s378 + $0x10] sm:$0xff]
      %v445 = vld [vmem:[%s378 + $0x18] sm:$0xff]
      %v446 = vld [vmem:[%s378 + $0x20] sm:$0xff]
      %v447 = vld [vmem:[%s378 + $0x28] sm:$0xff]
      %v448 = vld [vmem:[%s378 + $0x30] sm:$0xff]
      %v449 = vld [vmem:[%s378 + $0x38] sm:$0xff]
      %v450 = vld [vmem:[%s378 + $0x40] sm:$0xff]
      %v451 = vld [vmem:[%s378 + $0x48] sm:$0xff]
      %v452 = vld [vmem:[%s378 + $0x50] sm:$0xff]
      %v453 = vld [vmem:[%s378 + $0x58] sm:$0xff]
      %v454 = vld [vmem:[%s378 + $0x60] sm:$0xff]
      %v455 = vld [vmem:[%s378 + $0x68] sm:$0xff]
      %v456 = vld [vmem:[%s378 + $0x70] sm:$0xff]
      %v457 = vld [vmem:[%s378 + $0x78] sm:$0xff]
      %v458 = vld [vmem:[%s378 + $0x80] sm:$0xff]
      %v459 = vld [vmem:[%s378 + $0x88] sm:$0xff]
      %v460 = vld [vmem:[%s378 + $0x90] sm:$0xff]
      %v461 = vld [vmem:[%s378 + $0x98] sm:$0xff]
      %v462 = vld [vmem:[%s378 + $0xa0] sm:$0xff]
      %v463 = vld [vmem:[%s378 + $0xa8] sm:$0xff]
      %v464 = vld [vmem:[%s378 + $0xb0] sm:$0xff]
      %v465 = vld [vmem:[%s378 + $0xb8] sm:$0xff]
      %v466 = vld [vmem:[%s378 + $0xc0] sm:$0xff]
      %v467 = vld [vmem:[%s378 + $0xc8] sm:$0xff]
      %v468 = vld [vmem:[%s378 + $0xd0] sm:$0xff]
      %v469 = vld [vmem:[%s378 + $0xd8] sm:$0xff]
      %v470 = vld [vmem:[%s378 + $0xe0] sm:$0xff]
      %v471 = vld [vmem:[%s378 + $0xe8] sm:$0xff]
      %v472 = vld [vmem:[%s378 + $0xf0] sm:$0xff]
      %v473 = vld [vmem:[%s378 + $0xf8] sm:$0xff]
      %v474 = vld [vmem:[%s414] sm:$0xff]
      %v475 = vld [vmem:[%s414 + $0x8] sm:$0xff]
      %v476 = vld [vmem:[%s3] sm:$0xff]
      %v477 = vld [vmem:[%s3 + $0x8] sm:$0xf]
      %v478 = vld [vmem:[%s3 + $0x10] sm:$0xff]
      %v479 = vld [vmem:[%s3 + $0x18] sm:$0xf]
      %v480 = vld [vmem:[%s3 + $0x20] sm:$0xff]
      %v481 = vld [vmem:[%s3 + $0x28] sm:$0xf]
      %514 = vrot.lane.b32.xlu0 %v442, 4
      %v515 = vpop.permute.xlu0 %514
      %516 = vrot.lane.b32.xlu0 %v443, 4
      %v517 = vpop.permute.xlu0 %516
      %518 = vrot.lane.b32.xlu0 %v444, 4
      %v519 = vpop.permute.xlu0 %518
      %520 = vrot.lane.b32.xlu0 %v445, 4
      %v521 = vpop.permute.xlu0 %520
      %522 = vrot.lane.b32.xlu0 %v446, 4
      %v523 = vpop.permute.xlu0 %522
      %524 = vrot.lane.b32.xlu0 %v447, 4
      %v525 = vpop.permute.xlu0 %524
      %526 = vrot.lane.b32.xlu0 %v448, 4
      %v527 = vpop.permute.xlu0 %526
      %528 = vrot.lane.b32.xlu0 %v449, 4
      %v529 = vpop.permute.xlu0 %528
      %530 = vrot.lane.b32.xlu0 %v450, 4
      %v531 = vpop.permute.xlu0 %530
      %532 = vrot.lane.b32.xlu0 %v451, 4
      %v533 = vpop.permute.xlu0 %532
      %534 = vrot.lane.b32.xlu0 %v452, 4
      %v535 = vpop.permute.xlu0 %534
      %536 = vrot.lane.b32.xlu0 %v453, 4
      %v537 = vpop.permute.xlu0 %536
      %538 = vrot.lane.b32.xlu0 %v454, 4
      %v539 = vpop.permute.xlu0 %538
      %540 = vrot.lane.b32.xlu0 %v455, 4
      %v541 = vpop.permute.xlu0 %540
      %542 = vrot.lane.b32.xlu0 %v456, 4
      %v543 = vpop.permute.xlu0 %542
      %544 = vrot.lane.b32.xlu0 %v457, 4
      %v545 = vpop.permute.xlu0 %544
      %546 = vrot.lane.b32.xlu0 %v458, 4
      %v547 = vpop.permute.xlu0 %546
      %548 = vrot.lane.b32.xlu0 %v459, 4
      %v549 = vpop.permute.xlu0 %548
      %550 = vrot.lane.b32.xlu0 %v460, 4
      %v551 = vpop.permute.xlu0 %550
      %552 = vrot.lane.b32.xlu0 %v461, 4
      %v553 = vpop.permute.xlu0 %552
      %554 = vrot.lane.b32.xlu0 %v462, 4
      %v555 = vpop.permute.xlu0 %554
      %556 = vrot.lane.b32.xlu0 %v463, 4
      %v557 = vpop.permute.xlu0 %556
      %558 = vrot.lane.b32.xlu0 %v464, 4
      %v559 = vpop.permute.xlu0 %558
      %560 = vrot.lane.b32.xlu0 %v465, 4
      %v561 = vpop.permute.xlu0 %560
      %562 = vrot.lane.b32.xlu0 %v466, 4
      %v563 = vpop.permute.xlu0 %562
      %564 = vrot.lane.b32.xlu0 %v467, 4
      %v565 = vpop.permute.xlu0 %564
      %566 = vrot.lane.b32.xlu0 %v468, 4
      %v567 = vpop.permute.xlu0 %566
      %568 = vrot.lane.b32.xlu0 %v469, 4
      %v569 = vpop.permute.xlu0 %568
      %570 = vrot.lane.b32.xlu0 %v470, 4
      %v571 = vpop.permute.xlu0 %570
      %572 = vrot.lane.b32.xlu0 %v471, 4
      %v573 = vpop.permute.xlu0 %572
      %574 = vrot.lane.b32.xlu0 %v472, 4
      %v575 = vpop.permute.xlu0 %574
      %576 = vrot.lane.b32.xlu0 %v473, 4
      %v577 = vpop.permute.xlu0 %576
      %612 = vrot.lane.b32.xlu0 %v444, 8
      %v613 = vpop.permute.xlu0 %612
      %614 = vrot.lane.b32.xlu0 %v445, 8
      %v615 = vpop.permute.xlu0 %614
      %616 = vrot.lane.b32.xlu0 %v446, 8
      %v617 = vpop.permute.xlu0 %616
      %618 = vrot.lane.b32.xlu0 %v447, 8
      %v619 = vpop.permute.xlu0 %618
      %620 = vrot.lane.b32.xlu0 %v448, 8
      %v621 = vpop.permute.xlu0 %620
      %622 = vrot.lane.b32.xlu0 %v449, 8
      %v623 = vpop.permute.xlu0 %622
      %624 = vrot.lane.b32.xlu0 %v450, 8
      %v625 = vpop.permute.xlu0 %624
      %626 = vrot.lane.b32.xlu0 %v451, 8
      %v627 = vpop.permute.xlu0 %626
      %628 = vrot.lane.b32.xlu0 %v452, 8
      %v629 = vpop.permute.xlu0 %628
      %630 = vrot.lane.b32.xlu0 %v453, 8
      %v631 = vpop.permute.xlu0 %630
      %632 = vrot.lane.b32.xlu0 %v454, 8
      %v633 = vpop.permute.xlu0 %632
      %634 = vrot.lane.b32.xlu0 %v455, 8
      %v635 = vpop.permute.xlu0 %634
      %636 = vrot.lane.b32.xlu0 %v456, 8
      %v637 = vpop.permute.xlu0 %636
      %638 = vrot.lane.b32.xlu0 %v457, 8
      %v639 = vpop.permute.xlu0 %638
      %640 = vrot.lane.b32.xlu0 %v458, 8
      %v641 = vpop.permute.xlu0 %640
      %642 = vrot.lane.b32.xlu0 %v459, 8
      %v643 = vpop.permute.xlu0 %642
      %644 = vrot.lane.b32.xlu0 %v460, 8
      %v645 = vpop.permute.xlu0 %644
      %646 = vrot.lane.b32.xlu0 %v461, 8
      %v647 = vpop.permute.xlu0 %646
      %648 = vrot.lane.b32.xlu0 %v462, 8
      %v649 = vpop.permute.xlu0 %648
      %650 = vrot.lane.b32.xlu0 %v463, 8
      %v651 = vpop.permute.xlu0 %650
      %652 = vrot.lane.b32.xlu0 %v464, 8
      %v653 = vpop.permute.xlu0 %652
      %654 = vrot.lane.b32.xlu0 %v465, 8
      %v655 = vpop.permute.xlu0 %654
      %656 = vrot.lane.b32.xlu0 %v466, 8
      %v657 = vpop.permute.xlu0 %656
      %658 = vrot.lane.b32.xlu0 %v467, 8
      %v659 = vpop.permute.xlu0 %658
      %660 = vrot.lane.b32.xlu0 %v468, 8
      %v661 = vpop.permute.xlu0 %660
      %662 = vrot.lane.b32.xlu0 %v469, 8
      %v663 = vpop.permute.xlu0 %662
      %664 = vrot.lane.b32.xlu0 %v470, 8
      %v665 = vpop.permute.xlu0 %664
      %666 = vrot.lane.b32.xlu0 %v471, 8
      %v667 = vpop.permute.xlu0 %666
      %668 = vrot.lane.b32.xlu0 %v472, 8
      %v669 = vpop.permute.xlu0 %668
      %670 = vrot.lane.b32.xlu0 %v473, 8
      %v671 = vpop.permute.xlu0 %670
      %672 = vrot.lane.b32.xlu0 %v474, 8
      %v673 = vpop.permute.xlu0 %672
      %674 = vrot.lane.b32.xlu0 %v475, 8
      %v675 = vpop.permute.xlu0 %674
      %vm708 = vcmask 31744
      %v709 = vsel %vm708, %v440, %v515
      %v710 = vsel %vm708, %v441, %v517
      %v711 = vsel %vm708, %v442, %v519
      %v712 = vsel %vm708, %v443, %v521
      %v713 = vsel %vm708, %v444, %v523
      %v714 = vsel %vm708, %v445, %v525
      %v715 = vsel %vm708, %v446, %v527
      %v716 = vsel %vm708, %v447, %v529
      %v717 = vsel %vm708, %v448, %v531
      %v718 = vsel %vm708, %v449, %v533
      %v719 = vsel %vm708, %v450, %v535
      %v720 = vsel %vm708, %v451, %v537
      %v721 = vsel %vm708, %v452, %v539
      %v722 = vsel %vm708, %v453, %v541
      %v723 = vsel %vm708, %v454, %v543
      %v724 = vsel %vm708, %v455, %v545
      %v725 = vsel %vm708, %v456, %v547
      %v726 = vsel %vm708, %v457, %v549
      %v727 = vsel %vm708, %v458, %v551
      %v728 = vsel %vm708, %v459, %v553
      %v729 = vsel %vm708, %v460, %v555
      %v730 = vsel %vm708, %v461, %v557
      %v731 = vsel %vm708, %v462, %v559
      %v732 = vsel %vm708, %v463, %v561
      %v733 = vsel %vm708, %v464, %v563
      %v734 = vsel %vm708, %v465, %v565
      %v735 = vsel %vm708, %v466, %v567
      %v736 = vsel %vm708, %v467, %v569
      %v737 = vsel %vm708, %v468, %v571
      %v738 = vsel %vm708, %v469, %v573
      %v739 = vsel %vm708, %v470, %v575
      %v740 = vsel %vm708, %v471, %v577
      %vm741 = vcmask 64512
      %v742 = vsel %vm741, %v709, %v613
      %v743 = vsel %vm741, %v710, %v615
      %v744 = vsel %vm741, %v711, %v617
      %v745 = vsel %vm741, %v712, %v619
      %v746 = vsel %vm741, %v713, %v621
      %v747 = vsel %vm741, %v714, %v623
      %v748 = vsel %vm741, %v715, %v625
      %v749 = vsel %vm741, %v716, %v627
      %v750 = vsel %vm741, %v717, %v629
      %v751 = vsel %vm741, %v718, %v631
      %v752 = vsel %vm741, %v719, %v633
      %v753 = vsel %vm741, %v720, %v635
      %v754 = vsel %vm741, %v721, %v637
      %v755 = vsel %vm741, %v722, %v639
      %v756 = vsel %vm741, %v723, %v641
      %v757 = vsel %vm741, %v724, %v643
      %v758 = vsel %vm741, %v725, %v645
      %v759 = vsel %vm741, %v726, %v647
      %v760 = vsel %vm741, %v727, %v649
      %v761 = vsel %vm741, %v728, %v651
      %v762 = vsel %vm741, %v729, %v653
      %v763 = vsel %vm741, %v730, %v655
      %v764 = vsel %vm741, %v731, %v657
      %v765 = vsel %vm741, %v732, %v659
      %v766 = vsel %vm741, %v733, %v661
      %v767 = vsel %vm741, %v734, %v663
      %v768 = vsel %vm741, %v735, %v665
      %v769 = vsel %vm741, %v736, %v667
      %v770 = vsel %vm741, %v737, %v669
      %v771 = vsel %vm741, %v738, %v671
      %v772 = vsel %vm741, %v739, %v673
      %v773 = vsel %vm741, %v740, %v675
      %vm774 = vcmask 97280
      %v776 = vsel %vm774, %v742, 0
      %v779 = vsel %vm774, %v743, 0
      %v782 = vsel %vm774, %v744, 0
      %v785 = vsel %vm774, %v745, 0
      %v788 = vsel %vm774, %v746, 0
      %v791 = vsel %vm774, %v747, 0
      %v794 = vsel %vm774, %v748, 0
      %v797 = vsel %vm774, %v749, 0
      %v800 = vsel %vm774, %v750, 0
      %v803 = vsel %vm774, %v751, 0
      %v806 = vsel %vm774, %v752, 0
      %v809 = vsel %vm774, %v753, 0
      %v812 = vsel %vm774, %v754, 0
      %v815 = vsel %vm774, %v755, 0
      %v818 = vsel %vm774, %v756, 0
      %v821 = vsel %vm774, %v757, 0
      %v824 = vsel %vm774, %v758, 0
      %v827 = vsel %vm774, %v759, 0
      %v830 = vsel %vm774, %v760, 0
      %v833 = vsel %vm774, %v761, 0
      %v836 = vsel %vm774, %v762, 0
      %v839 = vsel %vm774, %v763, 0
      %v842 = vsel %vm774, %v764, 0
      %v845 = vsel %vm774, %v765, 0
      %v848 = vsel %vm774, %v766, 0
      %v851 = vsel %vm774, %v767, 0
      %v854 = vsel %vm774, %v768, 0
      %v857 = vsel %vm774, %v769, 0
      %v860 = vsel %vm774, %v770, 0
      %v863 = vsel %vm774, %v771, 0
      %v866 = vsel %vm774, %v772, 0
      %v869 = vsel %vm774, %v773, 0
      %vm871 = vcmask 1043456
      %v873 = vsel %vm871, %v477, 0
      %875 = vmatpush.msra.mxu0 0.0
      %876 = vmatpush.msra.mxu0 0.0
      %877 = vmatpush.msra.mxu0 0.0
      %878 = vmatpush.msra.mxu0 0.0
      %879 = vmatpush.msra.mxu0 0.0
      %880 = vmatpush.msra.mxu0 0.0
      %881 = vmatpush.msra.mxu0 0.0
      %882 = vmatpush.msra.mxu0 0.0
      %883 = vmatpush.msra.mxu0 0.0
      %884 = vmatpush.msra.mxu0 0.0
      %885 = vmatpush.msra.mxu0 0.0
      %886 = vmatpush.msra.mxu0 0.0
      %887 = vmatpush.msra.mxu0 0.0
      %888 = vmatpush.msra.mxu0 0.0
      %889 = vmatpush.msra.mxu0 %v873
      %890 = vmatpush.msra.mxu0 %v476
      %891 = vmatmul.f32.gmra.mxu0 %v776
      %v892 = vpop.f32.mrf.mxu0
      %v893 = vadd.f32 0.0, %v892
      %894 = vmatmul.f32.gmra.mxu0 %v779
      %v895 = vpop.f32.mrf.mxu0
      %v896 = vadd.f32 0.0, %v895
      %897 = vmatmul.f32.gmra.mxu0 %v782
      %v898 = vpop.f32.mrf.mxu0
      %v899 = vadd.f32 0.0, %v898
      %900 = vmatmul.f32.gmra.mxu0 %v785
      %v901 = vpop.f32.mrf.mxu0
      %v902 = vadd.f32 0.0, %v901
      %903 = vmatmul.f32.gmra.mxu0 %v788
      %v904 = vpop.f32.mrf.mxu0
      %v905 = vadd.f32 0.0, %v904
      %906 = vmatmul.f32.gmra.mxu0 %v791
      %v907 = vpop.f32.mrf.mxu0
      %v908 = vadd.f32 0.0, %v907
      %909 = vmatmul.f32.gmra.mxu0 %v794
      %v910 = vpop.f32.mrf.mxu0
      %v911 = vadd.f32 0.0, %v910
      %912 = vmatmul.f32.gmra.mxu0 %v797
      %v913 = vpop.f32.mrf.mxu0
      %v914 = vadd.f32 0.0, %v913
      %915 = vmatmul.f32.gmra.mxu0 %v800
      %v916 = vpop.f32.mrf.mxu0
      %v917 = vadd.f32 0.0, %v916
      %918 = vmatmul.f32.gmra.mxu0 %v803
      %v919 = vpop.f32.mrf.mxu0
      %v920 = vadd.f32 0.0, %v919
      %921 = vmatmul.f32.gmra.mxu0 %v806
      %v922 = vpop.f32.mrf.mxu0
      %v923 = vadd.f32 0.0, %v922
      %924 = vmatmul.f32.gmra.mxu0 %v809
      %v925 = vpop.f32.mrf.mxu0
      %v926 = vadd.f32 0.0, %v925
      %927 = vmatmul.f32.gmra.mxu0 %v812
      %v928 = vpop.f32.mrf.mxu0
      %v929 = vadd.f32 0.0, %v928
      %930 = vmatmul.f32.gmra.mxu0 %v815
      %v931 = vpop.f32.mrf.mxu0
      %v932 = vadd.f32 0.0, %v931
      %933 = vmatmul.f32.gmra.mxu0 %v818
      %v934 = vpop.f32.mrf.mxu0
      %v935 = vadd.f32 0.0, %v934
      %936 = vmatmul.f32.gmra.mxu0 %v821
      %v937 = vpop.f32.mrf.mxu0
      %v938 = vadd.f32 0.0, %v937
      %939 = vmatmul.f32.gmra.mxu0 %v824
      %v940 = vpop.f32.mrf.mxu0
      %v941 = vadd.f32 0.0, %v940
      %942 = vmatmul.f32.gmra.mxu0 %v827
      %v943 = vpop.f32.mrf.mxu0
      %v944 = vadd.f32 0.0, %v943
      %945 = vmatmul.f32.gmra.mxu0 %v830
      %v946 = vpop.f32.mrf.mxu0
      %v947 = vadd.f32 0.0, %v946
      %948 = vmatmul.f32.gmra.mxu0 %v833
      %v949 = vpop.f32.mrf.mxu0
      %v950 = vadd.f32 0.0, %v949
      %951 = vmatmul.f32.gmra.mxu0 %v836
      %v952 = vpop.f32.mrf.mxu0
      %v953 = vadd.f32 0.0, %v952
      %954 = vmatmul.f32.gmra.mxu0 %v839
      %v955 = vpop.f32.mrf.mxu0
      %v956 = vadd.f32 0.0, %v955
      %957 = vmatmul.f32.gmra.mxu0 %v842
      %v958 = vpop.f32.mrf.mxu0
      %v959 = vadd.f32 0.0, %v958
      %960 = vmatmul.f32.gmra.mxu0 %v845
      %v961 = vpop.f32.mrf.mxu0
      %v962 = vadd.f32 0.0, %v961
      %963 = vmatmul.f32.gmra.mxu0 %v848
      %v964 = vpop.f32.mrf.mxu0
      %v965 = vadd.f32 0.0, %v964
      %966 = vmatmul.f32.gmra.mxu0 %v851
      %v967 = vpop.f32.mrf.mxu0
      %v968 = vadd.f32 0.0, %v967
      %969 = vmatmul.f32.gmra.mxu0 %v854
      %v970 = vpop.f32.mrf.mxu0
      %v971 = vadd.f32 0.0, %v970
      %972 = vmatmul.f32.gmra.mxu0 %v857
      %v973 = vpop.f32.mrf.mxu0
      %v974 = vadd.f32 0.0, %v973
      %975 = vmatmul.f32.gmra.mxu0 %v860
      %v976 = vpop.f32.mrf.mxu0
      %v977 = vadd.f32 0.0, %v976
      %978 = vmatmul.f32.gmra.mxu0 %v863
      %v979 = vpop.f32.mrf.mxu0
      %v980 = vadd.f32 0.0, %v979
      %981 = vmatmul.f32.gmra.mxu0 %v866
      %v982 = vpop.f32.mrf.mxu0
      %v983 = vadd.f32 0.0, %v982
      %984 = vmatmul.f32.gmra.mxu0 %v869
      %v985 = vpop.f32.mrf.mxu0
      %v986 = vadd.f32 0.0, %v985
      %987 = vdwg.mxu0
      %v989 = vsel %vm871, %v479, 0
      %991 = vmatpush.msra.mxu0 0.0
      %992 = vmatpush.msra.mxu0 0.0
      %993 = vmatpush.msra.mxu0 0.0
      %994 = vmatpush.msra.mxu0 0.0
      %995 = vmatpush.msra.mxu0 0.0
      %996 = vmatpush.msra.mxu0 0.0
      %997 = vmatpush.msra.mxu0 0.0
      %998 = vmatpush.msra.mxu0 0.0
      %999 = vmatpush.msra.mxu0 0.0
      %1000 = vmatpush.msra.mxu0 0.0
      %1001 = vmatpush.msra.mxu0 0.0
      %1002 = vmatpush.msra.mxu0 0.0
      %1003 = vmatpush.msra.mxu0 0.0
      %1004 = vmatpush.msra.mxu0 0.0
      %1005 = vmatpush.msra.mxu0 %v989
      %1006 = vmatpush.msra.mxu0 %v478
      %1007 = vmatmul.f32.gmra.mxu0 %v776
      %v1008 = vpop.f32.mrf.mxu0
      %v1009 = vadd.f32 0.0, %v1008
      %1010 = vmatmul.f32.gmra.mxu0 %v779
      %v1011 = vpop.f32.mrf.mxu0
      %v1012 = vadd.f32 0.0, %v1011
      %1013 = vmatmul.f32.gmra.mxu0 %v782
      %v1014 = vpop.f32.mrf.mxu0
      %v1015 = vadd.f32 0.0, %v1014
      %1016 = vmatmul.f32.gmra.mxu0 %v785
      %v1017 = vpop.f32.mrf.mxu0
      %v1018 = vadd.f32 0.0, %v1017
      %1019 = vmatmul.f32.gmra.mxu0 %v788
      %v1020 = vpop.f32.mrf.mxu0
      %v1021 = vadd.f32 0.0, %v1020
      %1022 = vmatmul.f32.gmra.mxu0 %v791
      %v1023 = vpop.f32.mrf.mxu0
      %v1024 = vadd.f32 0.0, %v1023
      %1025 = vmatmul.f32.gmra.mxu0 %v794
      %v1026 = vpop.f32.mrf.mxu0
      %v1027 = vadd.f32 0.0, %v1026
      %1028 = vmatmul.f32.gmra.mxu0 %v797
      %v1029 = vpop.f32.mrf.mxu0
      %v1030 = vadd.f32 0.0, %v1029
      %1031 = vmatmul.f32.gmra.mxu0 %v800
      %v1032 = vpop.f32.mrf.mxu0
      %v1033 = vadd.f32 0.0, %v1032
      %1034 = vmatmul.f32.gmra.mxu0 %v803
      %v1035 = vpop.f32.mrf.mxu0
      %v1036 = vadd.f32 0.0, %v1035
      %1037 = vmatmul.f32.gmra.mxu0 %v806
      %v1038 = vpop.f32.mrf.mxu0
      %v1039 = vadd.f32 0.0, %v1038
      %1040 = vmatmul.f32.gmra.mxu0 %v809
      %v1041 = vpop.f32.mrf.mxu0
      %v1042 = vadd.f32 0.0, %v1041
      %1043 = vmatmul.f32.gmra.mxu0 %v812
      %v1044 = vpop.f32.mrf.mxu0
      %v1045 = vadd.f32 0.0, %v1044
      %1046 = vmatmul.f32.gmra.mxu0 %v815
      %v1047 = vpop.f32.mrf.mxu0
      %v1048 = vadd.f32 0.0, %v1047
      %1049 = vmatmul.f32.gmra.mxu0 %v818
      %v1050 = vpop.f32.mrf.mxu0
      %v1051 = vadd.f32 0.0, %v1050
      %1052 = vmatmul.f32.gmra.mxu0 %v821
      %v1053 = vpop.f32.mrf.mxu0
      %v1054 = vadd.f32 0.0, %v1053
      %1055 = vmatmul.f32.gmra.mxu0 %v824
      %v1056 = vpop.f32.mrf.mxu0
      %v1057 = vadd.f32 0.0, %v1056
      %1058 = vmatmul.f32.gmra.mxu0 %v827
      %v1059 = vpop.f32.mrf.mxu0
      %v1060 = vadd.f32 0.0, %v1059
      %1061 = vmatmul.f32.gmra.mxu0 %v830
      %v1062 = vpop.f32.mrf.mxu0
      %v1063 = vadd.f32 0.0, %v1062
      %1064 = vmatmul.f32.gmra.mxu0 %v833
      %v1065 = vpop.f32.mrf.mxu0
      %v1066 = vadd.f32 0.0, %v1065
      %1067 = vmatmul.f32.gmra.mxu0 %v836
      %v1068 = vpop.f32.mrf.mxu0
      %v1069 = vadd.f32 0.0, %v1068
      %1070 = vmatmul.f32.gmra.mxu0 %v839
      %v1071 = vpop.f32.mrf.mxu0
      %v1072 = vadd.f32 0.0, %v1071
      %1073 = vmatmul.f32.gmra.mxu0 %v842
      %v1074 = vpop.f32.mrf.mxu0
      %v1075 = vadd.f32 0.0, %v1074
      %1076 = vmatmul.f32.gmra.mxu0 %v845
      %v1077 = vpop.f32.mrf.mxu0
      %v1078 = vadd.f32 0.0, %v1077
      %1079 = vmatmul.f32.gmra.mxu0 %v848
      %v1080 = vpop.f32.mrf.mxu0
      %v1081 = vadd.f32 0.0, %v1080
      %1082 = vmatmul.f32.gmra.mxu0 %v851
      %v1083 = vpop.f32.mrf.mxu0
      %v1084 = vadd.f32 0.0, %v1083
      %1085 = vmatmul.f32.gmra.mxu0 %v854
      %v1086 = vpop.f32.mrf.mxu0
      %v1087 = vadd.f32 0.0, %v1086
      %1088 = vmatmul.f32.gmra.mxu0 %v857
      %v1089 = vpop.f32.mrf.mxu0
      %v1090 = vadd.f32 0.0, %v1089
      %1091 = vmatmul.f32.gmra.mxu0 %v860
      %v1092 = vpop.f32.mrf.mxu0
      %v1093 = vadd.f32 0.0, %v1092
      %1094 = vmatmul.f32.gmra.mxu0 %v863
      %v1095 = vpop.f32.mrf.mxu0
      %v1096 = vadd.f32 0.0, %v1095
      %1097 = vmatmul.f32.gmra.mxu0 %v866
      %v1098 = vpop.f32.mrf.mxu0
      %v1099 = vadd.f32 0.0, %v1098
      %1100 = vmatmul.f32.gmra.mxu0 %v869
      %v1101 = vpop.f32.mrf.mxu0
      %v1102 = vadd.f32 0.0, %v1101
      %1103 = vdwg.mxu0
      %v1105 = vsel %vm871, %v481, 0
      %1107 = vmatpush.msra.mxu0 0.0
      %1108 = vmatpush.msra.mxu0 0.0
      %1109 = vmatpush.msra.mxu0 0.0
      %1110 = vmatpush.msra.mxu0 0.0
      %1111 = vmatpush.msra.mxu0 0.0
      %1112 = vmatpush.msra.mxu0 0.0
      %1113 = vmatpush.msra.mxu0 0.0
      %1114 = vmatpush.msra.mxu0 0.0
      %1115 = vmatpush.msra.mxu0 0.0
      %1116 = vmatpush.msra.mxu0 0.0
      %1117 = vmatpush.msra.mxu0 0.0
      %1118 = vmatpush.msra.mxu0 0.0
      %1119 = vmatpush.msra.mxu0 0.0
      %1120 = vmatpush.msra.mxu0 0.0
      %1121 = vmatpush.msra.mxu0 %v1105
      %1122 = vmatpush.msra.mxu0 %v480
      %1123 = vmatmul.f32.gmra.mxu0 %v776
      %v1124 = vpop.f32.mrf.mxu0
      %v1125 = vadd.f32 0.0, %v1124
      %1126 = vmatmul.f32.gmra.mxu0 %v779
      %v1127 = vpop.f32.mrf.mxu0
      %v1128 = vadd.f32 0.0, %v1127
      %1129 = vmatmul.f32.gmra.mxu0 %v782
      %v1130 = vpop.f32.mrf.mxu0
      %v1131 = vadd.f32 0.0, %v1130
      %1132 = vmatmul.f32.gmra.mxu0 %v785
      %v1133 = vpop.f32.mrf.mxu0
      %v1134 = vadd.f32 0.0, %v1133
      %1135 = vmatmul.f32.gmra.mxu0 %v788
      %v1136 = vpop.f32.mrf.mxu0
      %v1137 = vadd.f32 0.0, %v1136
      %1138 = vmatmul.f32.gmra.mxu0 %v791
      %v1139 = vpop.f32.mrf.mxu0
      %v1140 = vadd.f32 0.0, %v1139
      %1141 = vmatmul.f32.gmra.mxu0 %v794
      %v1142 = vpop.f32.mrf.mxu0
      %v1143 = vadd.f32 0.0, %v1142
      %1144 = vmatmul.f32.gmra.mxu0 %v797
      %v1145 = vpop.f32.mrf.mxu0
      %v1146 = vadd.f32 0.0, %v1145
      %1147 = vmatmul.f32.gmra.mxu0 %v800
      %v1148 = vpop.f32.mrf.mxu0
      %v1149 = vadd.f32 0.0, %v1148
      %1150 = vmatmul.f32.gmra.mxu0 %v803
      %v1151 = vpop.f32.mrf.mxu0
      %v1152 = vadd.f32 0.0, %v1151
      %1153 = vmatmul.f32.gmra.mxu0 %v806
      %v1154 = vpop.f32.mrf.mxu0
      %v1155 = vadd.f32 0.0, %v1154
      %1156 = vmatmul.f32.gmra.mxu0 %v809
      %v1157 = vpop.f32.mrf.mxu0
      %v1158 = vadd.f32 0.0, %v1157
      %1159 = vmatmul.f32.gmra.mxu0 %v812
      %v1160 = vpop.f32.mrf.mxu0
      %v1161 = vadd.f32 0.0, %v1160
      %1162 = vmatmul.f32.gmra.mxu0 %v815
      %v1163 = vpop.f32.mrf.mxu0
      %v1164 = vadd.f32 0.0, %v1163
      %1165 = vmatmul.f32.gmra.mxu0 %v818
      %v1166 = vpop.f32.mrf.mxu0
      %v1167 = vadd.f32 0.0, %v1166
      %1168 = vmatmul.f32.gmra.mxu0 %v821
      %v1169 = vpop.f32.mrf.mxu0
      %v1170 = vadd.f32 0.0, %v1169
      %1171 = vmatmul.f32.gmra.mxu0 %v824
      %v1172 = vpop.f32.mrf.mxu0
      %v1173 = vadd.f32 0.0, %v1172
      %1174 = vmatmul.f32.gmra.mxu0 %v827
      %v1175 = vpop.f32.mrf.mxu0
      %v1176 = vadd.f32 0.0, %v1175
      %1177 = vmatmul.f32.gmra.mxu0 %v830
      %v1178 = vpop.f32.mrf.mxu0
      %v1179 = vadd.f32 0.0, %v1178
      %1180 = vmatmul.f32.gmra.mxu0 %v833
      %v1181 = vpop.f32.mrf.mxu0
      %v1182 = vadd.f32 0.0, %v1181
      %1183 = vmatmul.f32.gmra.mxu0 %v836
      %v1184 = vpop.f32.mrf.mxu0
      %v1185 = vadd.f32 0.0, %v1184
      %1186 = vmatmul.f32.gmra.mxu0 %v839
      %v1187 = vpop.f32.mrf.mxu0
      %v1188 = vadd.f32 0.0, %v1187
      %1189 = vmatmul.f32.gmra.mxu0 %v842
      %v1190 = vpop.f32.mrf.mxu0
      %v1191 = vadd.f32 0.0, %v1190
      %1192 = vmatmul.f32.gmra.mxu0 %v845
      %v1193 = vpop.f32.mrf.mxu0
      %v1194 = vadd.f32 0.0, %v1193
      %1195 = vmatmul.f32.gmra.mxu0 %v848
      %v1196 = vpop.f32.mrf.mxu0
      %v1197 = vadd.f32 0.0, %v1196
      %1198 = vmatmul.f32.gmra.mxu0 %v851
      %v1199 = vpop.f32.mrf.mxu0
      %v1200 = vadd.f32 0.0, %v1199
      %1201 = vmatmul.f32.gmra.mxu0 %v854
      %v1202 = vpop.f32.mrf.mxu0
      %v1203 = vadd.f32 0.0, %v1202
      %1204 = vmatmul.f32.gmra.mxu0 %v857
      %v1205 = vpop.f32.mrf.mxu0
      %v1206 = vadd.f32 0.0, %v1205
      %1207 = vmatmul.f32.gmra.mxu0 %v860
      %v1208 = vpop.f32.mrf.mxu0
      %v1209 = vadd.f32 0.0, %v1208
      %1210 = vmatmul.f32.gmra.mxu0 %v863
      %v1211 = vpop.f32.mrf.mxu0
      %v1212 = vadd.f32 0.0, %v1211
      %1213 = vmatmul.f32.gmra.mxu0 %v866
      %v1214 = vpop.f32.mrf.mxu0
      %v1215 = vadd.f32 0.0, %v1214
      %1216 = vmatmul.f32.gmra.mxu0 %v869
      %v1217 = vpop.f32.mrf.mxu0
      %v1218 = vadd.f32 0.0, %v1217
      %1219 = vdwg.mxu0
      %v1236 = vrot.slane %v893, 1
      %v1237 = vrot.slane %v899, 1
      %v1238 = vrot.slane %v905, 1
      %v1239 = vrot.slane %v911, 1
      %v1240 = vrot.slane %v917, 1
      %v1241 = vrot.slane %v923, 1
      %v1242 = vrot.slane %v929, 1
      %v1243 = vrot.slane %v935, 1
      %v1244 = vrot.slane %v941, 1
      %v1245 = vrot.slane %v947, 1
      %v1246 = vrot.slane %v953, 1
      %v1247 = vrot.slane %v959, 1
      %v1248 = vrot.slane %v965, 1
      %v1249 = vrot.slane %v971, 1
      %v1250 = vrot.slane %v977, 1
      %v1251 = vrot.slane %v983, 1
      %vm1284 = vcmask 1040384
      %v1285 = vrot.slane %v893, 7
      %v1286 = vrot.slane %v896, 7
      %v1287 = vsel %vm1284, %v1285, %v1286
      %v1288 = vrot.slane %v899, 7
      %v1289 = vrot.slane %v902, 7
      %v1290 = vsel %vm1284, %v1288, %v1289
      %v1291 = vrot.slane %v905, 7
      %v1292 = vrot.slane %v908, 7
      %v1293 = vsel %vm1284, %v1291, %v1292
      %v1294 = vrot.slane %v911, 7
      %v1295 = vrot.slane %v914, 7
      %v1296 = vsel %vm1284, %v1294, %v1295
      %v1297 = vrot.slane %v917, 7
      %v1298 = vrot.slane %v920, 7
      %v1299 = vsel %vm1284, %v1297, %v1298
      %v1300 = vrot.slane %v923, 7
      %v1301 = vrot.slane %v926, 7
      %v1302 = vsel %vm1284, %v1300, %v1301
      %v1303 = vrot.slane %v929, 7
      %v1304 = vrot.slane %v932, 7
      %v1305 = vsel %vm1284, %v1303, %v1304
      %v1306 = vrot.slane %v935, 7
      %v1307 = vrot.slane %v938, 7
      %v1308 = vsel %vm1284, %v1306, %v1307
      %v1309 = vrot.slane %v941, 7
      %v1310 = vrot.slane %v944, 7
      %v1311 = vsel %vm1284, %v1309, %v1310
      %v1312 = vrot.slane %v947, 7
      %v1313 = vrot.slane %v950, 7
      %v1314 = vsel %vm1284, %v1312, %v1313
      %v1315 = vrot.slane %v953, 7
      %v1316 = vrot.slane %v956, 7
      %v1317 = vsel %vm1284, %v1315, %v1316
      %v1318 = vrot.slane %v959, 7
      %v1319 = vrot.slane %v962, 7
      %v1320 = vsel %vm1284, %v1318, %v1319
      %v1321 = vrot.slane %v965, 7
      %v1322 = vrot.slane %v968, 7
      %v1323 = vsel %vm1284, %v1321, %v1322
      %v1324 = vrot.slane %v971, 7
      %v1325 = vrot.slane %v974, 7
      %v1326 = vsel %vm1284, %v1324, %v1325
      %v1327 = vrot.slane %v977, 7
      %v1328 = vrot.slane %v980, 7
      %v1329 = vsel %vm1284, %v1327, %v1328
      %v1330 = vrot.slane %v983, 7
      %v1331 = vrot.slane %v986, 7
      %v1332 = vsel %vm1284, %v1330, %v1331
      %v1365 = vsel %vm1284, %v1236, %v1285
      %v1366 = vsel %vm1284, %v1237, %v1288
      %v1367 = vsel %vm1284, %v1238, %v1291
      %v1368 = vsel %vm1284, %v1239, %v1294
      %v1369 = vsel %vm1284, %v1240, %v1297
      %v1370 = vsel %vm1284, %v1241, %v1300
      %v1371 = vsel %vm1284, %v1242, %v1303
      %v1372 = vsel %vm1284, %v1243, %v1306
      %v1373 = vsel %vm1284, %v1244, %v1309
      %v1374 = vsel %vm1284, %v1245, %v1312
      %v1375 = vsel %vm1284, %v1246, %v1315
      %v1376 = vsel %vm1284, %v1247, %v1318
      %v1377 = vsel %vm1284, %v1248, %v1321
      %v1378 = vsel %vm1284, %v1249, %v1324
      %v1379 = vsel %vm1284, %v1250, %v1327
      %v1380 = vsel %vm1284, %v1251, %v1330
      %vm1413 = vcmask 1046528
      %v1414 = vrot.slane %v1125, 1
      %v1415 = vrot.slane %v1128, 1
      %v1416 = vsel %vm1413, %v1414, %v1415
      %v1417 = vrot.slane %v1131, 1
      %v1418 = vrot.slane %v1134, 1
      %v1419 = vsel %vm1413, %v1417, %v1418
      %v1420 = vrot.slane %v1137, 1
      %v1421 = vrot.slane %v1140, 1
      %v1422 = vsel %vm1413, %v1420, %v1421
      %v1423 = vrot.slane %v1143, 1
      %v1424 = vrot.slane %v1146, 1
      %v1425 = vsel %vm1413, %v1423, %v1424
      %v1426 = vrot.slane %v1149, 1
      %v1427 = vrot.slane %v1152, 1
      %v1428 = vsel %vm1413, %v1426, %v1427
      %v1429 = vrot.slane %v1155, 1
      %v1430 = vrot.slane %v1158, 1
      %v1431 = vsel %vm1413, %v1429, %v1430
      %v1432 = vrot.slane %v1161, 1
      %v1433 = vrot.slane %v1164, 1
      %v1434 = vsel %vm1413, %v1432, %v1433
      %v1435 = vrot.slane %v1167, 1
      %v1436 = vrot.slane %v1170, 1
      %v1437 = vsel %vm1413, %v1435, %v1436
      %v1438 = vrot.slane %v1173, 1
      %v1439 = vrot.slane %v1176, 1
      %v1440 = vsel %vm1413, %v1438, %v1439
      %v1441 = vrot.slane %v1179, 1
      %v1442 = vrot.slane %v1182, 1
      %v1443 = vsel %vm1413, %v1441, %v1442
      %v1444 = vrot.slane %v1185, 1
      %v1445 = vrot.slane %v1188, 1
      %v1446 = vsel %vm1413, %v1444, %v1445
      %v1447 = vrot.slane %v1191, 1
      %v1448 = vrot.slane %v1194, 1
      %v1449 = vsel %vm1413, %v1447, %v1448
      %v1450 = vrot.slane %v1197, 1
      %v1451 = vrot.slane %v1200, 1
      %v1452 = vsel %vm1413, %v1450, %v1451
      %v1453 = vrot.slane %v1203, 1
      %v1454 = vrot.slane %v1206, 1
      %v1455 = vsel %vm1413, %v1453, %v1454
      %v1456 = vrot.slane %v1209, 1
      %v1457 = vrot.slane %v1212, 1
      %v1458 = vsel %vm1413, %v1456, %v1457
      %v1459 = vrot.slane %v1215, 1
      %v1460 = vrot.slane %v1218, 1
      %v1461 = vsel %vm1413, %v1459, %v1460
      %v1494 = vrot.slane %v1128, 7
      %v1495 = vrot.slane %v1134, 7
      %v1496 = vrot.slane %v1140, 7
      %v1497 = vrot.slane %v1146, 7
      %v1498 = vrot.slane %v1152, 7
      %v1499 = vrot.slane %v1158, 7
      %v1500 = vrot.slane %v1164, 7
      %v1501 = vrot.slane %v1170, 7
      %v1502 = vrot.slane %v1176, 7
      %v1503 = vrot.slane %v1182, 7
      %v1504 = vrot.slane %v1188, 7
      %v1505 = vrot.slane %v1194, 7
      %v1506 = vrot.slane %v1200, 7
      %v1507 = vrot.slane %v1206, 7
      %v1508 = vrot.slane %v1212, 7
      %v1509 = vrot.slane %v1218, 7
      %v1526 = vsel %vm1413, %v1415, %v1494
      %v1527 = vsel %vm1413, %v1418, %v1495
      %v1528 = vsel %vm1413, %v1421, %v1496
      %v1529 = vsel %vm1413, %v1424, %v1497
      %v1530 = vsel %vm1413, %v1427, %v1498
      %v1531 = vsel %vm1413, %v1430, %v1499
      %v1532 = vsel %vm1413, %v1433, %v1500
      %v1533 = vsel %vm1413, %v1436, %v1501
      %v1534 = vsel %vm1413, %v1439, %v1502
      %v1535 = vsel %vm1413, %v1442, %v1503
      %v1536 = vsel %vm1413, %v1445, %v1504
      %v1537 = vsel %vm1413, %v1448, %v1505
      %v1538 = vsel %vm1413, %v1451, %v1506
      %v1539 = vsel %vm1413, %v1454, %v1507
      %v1540 = vsel %vm1413, %v1457, %v1508
      %v1541 = vsel %vm1413, %v1460, %v1509
      %v1542 = vadd.f32 %v1365, %v1009
      %v1543 = vadd.f32 %v1287, %v1012
      %v1544 = vadd.f32 %v1366, %v1015
      %v1545 = vadd.f32 %v1290, %v1018
      %v1546 = vadd.f32 %v1367, %v1021
      %v1547 = vadd.f32 %v1293, %v1024
      %v1548 = vadd.f32 %v1368, %v1027
      %v1549 = vadd.f32 %v1296, %v1030
      %v1550 = vadd.f32 %v1369, %v1033
      %v1551 = vadd.f32 %v1299, %v1036
      %v1552 = vadd.f32 %v1370, %v1039
      %v1553 = vadd.f32 %v1302, %v1042
      %v1554 = vadd.f32 %v1371, %v1045
      %v1555 = vadd.f32 %v1305, %v1048
      %v1556 = vadd.f32 %v1372, %v1051
      %v1557 = vadd.f32 %v1308, %v1054
      %v1558 = vadd.f32 %v1373, %v1057
      %v1559 = vadd.f32 %v1311, %v1060
      %v1560 = vadd.f32 %v1374, %v1063
      %v1561 = vadd.f32 %v1314, %v1066
      %v1562 = vadd.f32 %v1375, %v1069
      %v1563 = vadd.f32 %v1317, %v1072
      %v1564 = vadd.f32 %v1376, %v1075
      %v1565 = vadd.f32 %v1320, %v1078
      %v1566 = vadd.f32 %v1377, %v1081
      %v1567 = vadd.f32 %v1323, %v1084
      %v1568 = vadd.f32 %v1378, %v1087
      %v1569 = vadd.f32 %v1326, %v1090
      %v1570 = vadd.f32 %v1379, %v1093
      %v1571 = vadd.f32 %v1329, %v1096
      %v1572 = vadd.f32 %v1380, %v1099
      %v1573 = vadd.f32 %v1332, %v1102
      %v1574 = vadd.f32 %v1542, %v1416
      %v1575 = vadd.f32 %v1543, %v1526
      %v1576 = vadd.f32 %v1544, %v1419
      %v1577 = vadd.f32 %v1545, %v1527
      %v1578 = vadd.f32 %v1546, %v1422
      %v1579 = vadd.f32 %v1547, %v1528
      %v1580 = vadd.f32 %v1548, %v1425
      %v1581 = vadd.f32 %v1549, %v1529
      %v1582 = vadd.f32 %v1550, %v1428
      %v1583 = vadd.f32 %v1551, %v1530
      %v1584 = vadd.f32 %v1552, %v1431
      %v1585 = vadd.f32 %v1553, %v1531
      %v1586 = vadd.f32 %v1554, %v1434
      %v1587 = vadd.f32 %v1555, %v1532
      %v1588 = vadd.f32 %v1556, %v1437
      %v1589 = vadd.f32 %v1557, %v1533
      %v1590 = vadd.f32 %v1558, %v1440
      %v1591 = vadd.f32 %v1559, %v1534
      %v1592 = vadd.f32 %v1560, %v1443
      %v1593 = vadd.f32 %v1561, %v1535
      %v1594 = vadd.f32 %v1562, %v1446
      %v1595 = vadd.f32 %v1563, %v1536
      %v1596 = vadd.f32 %v1564, %v1449
      %v1597 = vadd.f32 %v1565, %v1537
      %v1598 = vadd.f32 %v1566, %v1452
      %v1599 = vadd.f32 %v1567, %v1538
      %v1600 = vadd.f32 %v1568, %v1455
      %v1601 = vadd.f32 %v1569, %v1539
      %v1602 = vadd.f32 %v1570, %v1458
      %v1603 = vadd.f32 %v1571, %v1540
      %v1604 = vadd.f32 %v1572, %v1461
      %v1605 = vadd.f32 %v1573, %v1541
      %1606 = vst.msk [vmem:[%s431] sm:$0xff] %vm708, %v1574
      %1607 = vst.msk [vmem:[%s431 + $0x8] sm:$0xff] %vm708, %v1575
      %1608 = vst.msk [vmem:[%s431 + $0x10] sm:$0xff] %vm708, %v1576
      %1609 = vst.msk [vmem:[%s431 + $0x18] sm:$0xff] %vm708, %v1577
      %1610 = vst.msk [vmem:[%s431 + $0x20] sm:$0xff] %vm708, %v1578
      %1611 = vst.msk [vmem:[%s431 + $0x28] sm:$0xff] %vm708, %v1579
      %1612 = vst.msk [vmem:[%s431 + $0x30] sm:$0xff] %vm708, %v1580
      %1613 = vst.msk [vmem:[%s431 + $0x38] sm:$0xff] %vm708, %v1581
      %1614 = vst.msk [vmem:[%s431 + $0x40] sm:$0xff] %vm708, %v1582
      %1615 = vst.msk [vmem:[%s431 + $0x48] sm:$0xff] %vm708, %v1583
      %1616 = vst.msk [vmem:[%s431 + $0x50] sm:$0xff] %vm708, %v1584
      %1617 = vst.msk [vmem:[%s431 + $0x58] sm:$0xff] %vm708, %v1585
      %1618 = vst.msk [vmem:[%s431 + $0x60] sm:$0xff] %vm708, %v1586
      %1619 = vst.msk [vmem:[%s431 + $0x68] sm:$0xff] %vm708, %v1587
      %1620 = vst.msk [vmem:[%s431 + $0x70] sm:$0xff] %vm708, %v1588
      %1621 = vst.msk [vmem:[%s431 + $0x78] sm:$0xff] %vm708, %v1589
      %1622 = vst.msk [vmem:[%s431 + $0x80] sm:$0xff] %vm708, %v1590
      %1623 = vst.msk [vmem:[%s431 + $0x88] sm:$0xff] %vm708, %v1591
      %1624 = vst.msk [vmem:[%s431 + $0x90] sm:$0xff] %vm708, %v1592
      %1625 = vst.msk [vmem:[%s431 + $0x98] sm:$0xff] %vm708, %v1593
      %1626 = vst.msk [vmem:[%s431 + $0xa0] sm:$0xff] %vm708, %v1594
      %1627 = vst.msk [vmem:[%s431 + $0xa8] sm:$0xff] %vm708, %v1595
      %1628 = vst.msk [vmem:[%s431 + $0xb0] sm:$0xff] %vm708, %v1596
      %1629 = vst.msk [vmem:[%s431 + $0xb8] sm:$0xff] %vm708, %v1597
      %1630 = vst.msk [vmem:[%s431 + $0xc0] sm:$0xff] %vm708, %v1598
      %1631 = vst.msk [vmem:[%s431 + $0xc8] sm:$0xff] %vm708, %v1599
      %1632 = vst.msk [vmem:[%s431 + $0xd0] sm:$0xff] %vm708, %v1600
      %1633 = vst.msk [vmem:[%s431 + $0xd8] sm:$0xff] %vm708, %v1601
      %1634 = vst.msk [vmem:[%s431 + $0xe0] sm:$0xff] %vm708, %v1602
      %1635 = vst.msk [vmem:[%s431 + $0xe8] sm:$0xff] %vm708, %v1603
      %1636 = vst.msk [vmem:[%s431 + $0xf0] sm:$0xff] %vm708, %v1604
      %1637 = vst.msk [vmem:[%s431 + $0xf8] sm:$0xff] %vm708, %v1605
      %v1638 = vsel %vm708, %v1574, 0.0
      %v1639 = vsel %vm708, %v1575, 0.0
      %v1640 = vadd.f32 %v1638, %v1639
      %v1641 = vsel %vm708, %v1576, 0.0
      %v1642 = vadd.f32 %v1640, %v1641
      %v1643 = vsel %vm708, %v1577, 0.0
      %v1644 = vadd.f32 %v1642, %v1643
      %v1645 = vsel %vm708, %v1578, 0.0
      %v1646 = vadd.f32 %v1644, %v1645
      %v1647 = vsel %vm708, %v1579, 0.0
      %v1648 = vadd.f32 %v1646, %v1647
      %v1649 = vsel %vm708, %v1580, 0.0
      %v1650 = vadd.f32 %v1648, %v1649
      %v1651 = vsel %vm708, %v1581, 0.0
      %v1652 = vadd.f32 %v1650, %v1651
      %v1653 = vsel %vm708, %v1582, 0.0
      %v1654 = vadd.f32 %v1652, %v1653
      %v1655 = vsel %vm708, %v1583, 0.0
      %v1656 = vadd.f32 %v1654, %v1655
      %v1657 = vsel %vm708, %v1584, 0.0
      %v1658 = vadd.f32 %v1656, %v1657
      %v1659 = vsel %vm708, %v1585, 0.0
      %v1660 = vadd.f32 %v1658, %v1659
      %v1661 = vsel %vm708, %v1586, 0.0
      %v1662 = vadd.f32 %v1660, %v1661
      %v1663 = vsel %vm708, %v1587, 0.0
      %v1664 = vadd.f32 %v1662, %v1663
      %v1665 = vsel %vm708, %v1588, 0.0
      %v1666 = vadd.f32 %v1664, %v1665
      %v1667 = vsel %vm708, %v1589, 0.0
      %v1668 = vadd.f32 %v1666, %v1667
      %v1669 = vsel %vm708, %v1590, 0.0
      %v1670 = vadd.f32 %v1668, %v1669
      %v1671 = vsel %vm708, %v1591, 0.0
      %v1672 = vadd.f32 %v1670, %v1671
      %v1673 = vsel %vm708, %v1592, 0.0
      %v1674 = vadd.f32 %v1672, %v1673
      %v1675 = vsel %vm708, %v1593, 0.0
      %v1676 = vadd.f32 %v1674, %v1675
      %v1677 = vsel %vm708, %v1594, 0.0
      %v1678 = vadd.f32 %v1676, %v1677
      %v1679 = vsel %vm708, %v1595, 0.0
      %v1680 = vadd.f32 %v1678, %v1679
      %v1681 = vsel %vm708, %v1596, 0.0
      %v1682 = vadd.f32 %v1680, %v1681
      %v1683 = vsel %vm708, %v1597, 0.0
      %v1684 = vadd.f32 %v1682, %v1683
      %v1685 = vsel %vm708, %v1598, 0.0
      %v1686 = vadd.f32 %v1684, %v1685
      %v1687 = vsel %vm708, %v1599, 0.0
      %v1688 = vadd.f32 %v1686, %v1687
      %v1689 = vsel %vm708, %v1600, 0.0
      %v1690 = vadd.f32 %v1688, %v1689
      %v1691 = vsel %vm708, %v1601, 0.0
      %v1692 = vadd.f32 %v1690, %v1691
      %v1693 = vsel %vm708, %v1602, 0.0
      %v1694 = vadd.f32 %v1692, %v1693
      %v1695 = vsel %vm708, %v1603, 0.0
      %v1696 = vadd.f32 %v1694, %v1695
      %v1697 = vsel %vm708, %v1604, 0.0
      %v1698 = vadd.f32 %v1696, %v1697
      %v1699 = vsel %vm708, %v1605, 0.0
      %v1700 = vadd.f32 %v1698, %v1699
      %v1701 = vrot.slane %v1700, 4
      %v1702 = vadd.f32 %v1700, %v1701
      %v1703 = vrot.slane %v1702, 2
      %v1704 = vadd.f32 %v1702, %v1703
      %v1705 = vrot.slane %v1704, 1
      %v1706 = vadd.f32 %v1704, %v1705
      %v1707 = vmul.f32 %v1574, %v1574
      %v1708 = vmul.f32 %v1575, %v1575
      %v1709 = vmul.f32 %v1576, %v1576
      %v1710 = vmul.f32 %v1577, %v1577
      %v1711 = vmul.f32 %v1578, %v1578
      %v1712 = vmul.f32 %v1579, %v1579
      %v1713 = vmul.f32 %v1580, %v1580
      %v1714 = vmul.f32 %v1581, %v1581
      %v1715 = vmul.f32 %v1582, %v1582
      %v1716 = vmul.f32 %v1583, %v1583
      %v1717 = vmul.f32 %v1584, %v1584
      %v1718 = vmul.f32 %v1585, %v1585
      %v1719 = vmul.f32 %v1586, %v1586
      %v1720 = vmul.f32 %v1587, %v1587
      %v1721 = vmul.f32 %v1588, %v1588
      %v1722 = vmul.f32 %v1589, %v1589
      %v1723 = vmul.f32 %v1590, %v1590
      %v1724 = vmul.f32 %v1591, %v1591
      %v1725 = vmul.f32 %v1592, %v1592
      %v1726 = vmul.f32 %v1593, %v1593
      %v1727 = vmul.f32 %v1594, %v1594
      %v1728 = vmul.f32 %v1595, %v1595
      %v1729 = vmul.f32 %v1596, %v1596
      %v1730 = vmul.f32 %v1597, %v1597
      %v1731 = vmul.f32 %v1598, %v1598
      %v1732 = vmul.f32 %v1599, %v1599
      %v1733 = vmul.f32 %v1600, %v1600
      %v1734 = vmul.f32 %v1601, %v1601
      %v1735 = vmul.f32 %v1602, %v1602
      %v1736 = vmul.f32 %v1603, %v1603
      %v1737 = vmul.f32 %v1604, %v1604
      %v1738 = vmul.f32 %v1605, %v1605
      %v1739 = vsel %vm708, %v1707, 0.0
      %v1740 = vsel %vm708, %v1708, 0.0
      %v1741 = vadd.f32 %v1739, %v1740
      %v1742 = vsel %vm708, %v1709, 0.0
      %v1743 = vadd.f32 %v1741, %v1742
      %v1744 = vsel %vm708, %v1710, 0.0
      %v1745 = vadd.f32 %v1743, %v1744
      %v1746 = vsel %vm708, %v1711, 0.0
      %v1747 = vadd.f32 %v1745, %v1746
      %v1748 = vsel %vm708, %v1712, 0.0
      %v1749 = vadd.f32 %v1747, %v1748
      %v1750 = vsel %vm708, %v1713, 0.0
      %v1751 = vadd.f32 %v1749, %v1750
      %v1752 = vsel %vm708, %v1714, 0.0
      %v1753 = vadd.f32 %v1751, %v1752
      %v1754 = vsel %vm708, %v1715, 0.0
      %v1755 = vadd.f32 %v1753, %v1754
      %v1756 = vsel %vm708, %v1716, 0.0
      %v1757 = vadd.f32 %v1755, %v1756
      %v1758 = vsel %vm708, %v1717, 0.0
      %v1759 = vadd.f32 %v1757, %v1758
      %v1760 = vsel %vm708, %v1718, 0.0
      %v1761 = vadd.f32 %v1759, %v1760
      %v1762 = vsel %vm708, %v1719, 0.0
      %v1763 = vadd.f32 %v1761, %v1762
      %v1764 = vsel %vm708, %v1720, 0.0
      %v1765 = vadd.f32 %v1763, %v1764
      %v1766 = vsel %vm708, %v1721, 0.0
      %v1767 = vadd.f32 %v1765, %v1766
      %v1768 = vsel %vm708, %v1722, 0.0
      %v1769 = vadd.f32 %v1767, %v1768
      %v1770 = vsel %vm708, %v1723, 0.0
      %v1771 = vadd.f32 %v1769, %v1770
      %v1772 = vsel %vm708, %v1724, 0.0
      %v1773 = vadd.f32 %v1771, %v1772
      %v1774 = vsel %vm708, %v1725, 0.0
      %v1775 = vadd.f32 %v1773, %v1774
      %v1776 = vsel %vm708, %v1726, 0.0
      %v1777 = vadd.f32 %v1775, %v1776
      %v1778 = vsel %vm708, %v1727, 0.0
      %v1779 = vadd.f32 %v1777, %v1778
      %v1780 = vsel %vm708, %v1728, 0.0
      %v1781 = vadd.f32 %v1779, %v1780
      %v1782 = vsel %vm708, %v1729, 0.0
      %v1783 = vadd.f32 %v1781, %v1782
      %v1784 = vsel %vm708, %v1730, 0.0
      %v1785 = vadd.f32 %v1783, %v1784
      %v1786 = vsel %vm708, %v1731, 0.0
      %v1787 = vadd.f32 %v1785, %v1786
      %v1788 = vsel %vm708, %v1732, 0.0
      %v1789 = vadd.f32 %v1787, %v1788
      %v1790 = vsel %vm708, %v1733, 0.0
      %v1791 = vadd.f32 %v1789, %v1790
      %v1792 = vsel %vm708, %v1734, 0.0
      %v1793 = vadd.f32 %v1791, %v1792
      %v1794 = vsel %vm708, %v1735, 0.0
      %v1795 = vadd.f32 %v1793, %v1794
      %v1796 = vsel %vm708, %v1736, 0.0
      %v1797 = vadd.f32 %v1795, %v1796
      %v1798 = vsel %vm708, %v1737, 0.0
      %v1799 = vadd.f32 %v1797, %v1798
      %v1800 = vsel %vm708, %v1738, 0.0
      %v1801 = vadd.f32 %v1799, %v1800
      %v1802 = vrot.slane %v1801, 4
      %v1803 = vadd.f32 %v1801, %v1802
      %v1804 = vrot.slane %v1803, 2
      %v1805 = vadd.f32 %v1803, %v1804
      %v1806 = vrot.slane %v1805, 1
      %v1807 = vadd.f32 %v1805, %v1806
      %v1808 = vsel %vm1284, %v1706, %v1807
      %vm1809 = vcmask 25600
      %1810 = vst.msk [vmem:[%s439] sm:$0x3] %vm1809, %v1808
      %s1811 = smul.u32 16, %s22
      %p1812 = scmp.lt.s32.totalorder %s21, 1
      %s1813 = scalar_select %p1812, %s21, 1
      %p1814 = scmp.lt.s32.totalorder %s1811, 15
      %s1815 = scalar_select %p1814, %s1811, 15
      %s1816 = smul.addr %s1815, 2
      %s1817 = smul.addr %s1813, 32
      %s1818 = sadd.s32 %s1816, %s1817
      %s1819 = smul.addr %s1818, 8
      %s1820 = scalar_lea.vmem %s4, %s1819
      %p1821 = scmp.lt.s32.totalorder %s21, 1
      %s1822 = scalar_select %p1821, %s21, 1
      %p1823 = scmp.lt.s32.totalorder %s22, 0
      %s1824 = scalar_select %p1823, %s22, 0
      %s1825 = sadd.s32 %s1824, %s1822
      %s1826 = smul.addr %s1825, 2
      %s1827 = scalar_lea.vmem %s5, %s1826
      // Predicated region
      $region37: #{residual_block.3} parent=35 // pred_check
        %p1828 = pneg %p178
      $region38: #{residual_block.3} parent=35 // pred_check_branch
        %1830 = sbr.rel (%p1828) target = $region40
      $region39: #{residual_block.3} parent=35 // pred_region
        %s1831 = smul.u32 16, %s22
      $region40: #{residual_block.3} parent=35 // pred_fallthru
        _
      // Predicated region
      $region41: #{residual_block.3} parent=35 // pred_check
        %p1832 = pneg %p206
      $region42: #{residual_block.3} parent=35 // pred_check_branch
        %1834 = sbr.rel (%p1832) target = $region44
      $region43: #{residual_block.3} parent=35 // pred_region
        _
      $region44: #{residual_block.3} parent=35 // pred_fallthru
        _
    $region36: #{residual_block.3} parent=5 // pred_fallthru
      _
    %p1835 = scmp.le.s32.totalorder 2, %s12
    // Predicated region
    $region45: #{residual_block.3} parent=5 // pred_check
      %p1836 = pneg %p1835
    $region46: #{residual_block.3} parent=5 // pred_check_branch
      %1838 = sbr.rel (%p1836) target = $region48
    $region47: #{residual_block.3} parent=5 // pred_region
      %s1839 = ssub.s32 %s12, 2
      // Predicated region
      $region49: #{residual_block.3} parent=47 // pred_check
        %p1840 = pneg %p184
      $region50: #{residual_block.3} parent=47 // pred_check_branch
        %1842 = sbr.rel (%p1840) target = $region52
      $region51: #{residual_block.3} parent=47 // pred_region
        %s1843 = smul.u32 16, %s24
        %p1844 = scmp.lt.s32.totalorder %s23, 1
        %s1845 = scalar_select %p1844, %s23, 1
        %p1846 = scmp.lt.s32.totalorder %s1843, 15
        %s1847 = scalar_select %p1846, %s1843, 15
        %s1848 = smul.addr %s1847, 2
        %s1849 = smul.addr %s1845, 32
        %s1850 = sadd.s32 %s1848, %s1849
        %s1851 = smul.addr %s1850, 8
        %s1852 = scalar_lea.vmem %s4, %s1851
      $region52: #{residual_block.3} parent=47 // pred_fallthru
        _
      // Predicated region
      $region53: #{residual_block.3} parent=47 // pred_check
        %p1853 = pneg %p212
      $region54: #{residual_block.3} parent=47 // pred_check_branch
        %1855 = sbr.rel (%p1853) target = $region56
      $region55: #{residual_block.3} parent=47 // pred_region
        %p1856 = scmp.lt.s32.totalorder %s23, 1
        %s1857 = scalar_select %p1856, %s23, 1
        %p1858 = scmp.lt.s32.totalorder %s24, 0
        %s1859 = scalar_select %p1858, %s24, 0
        %s1860 = sadd.s32 %s1859, %s1857
        %s1861 = smul.addr %s1860, 2
        %s1862 = scalar_lea.vmem %s5, %s1861
      $region56: #{residual_block.3} parent=47 // pred_fallthru
        _
    $region48: #{residual_block.3} parent=5 // pred_fallthru
      _
  $region6: #{residual_block.3} parent=0 // loop_footer
    %s16 = sadd.s32 1, %s12
  $region7: #{residual_block.3} parent=0 // loop_footer_branch
    %11 = sbr.rel target = $region3
  $region8: #{residual_block.3} parent=0 // loop_exit
    _

// kernel: residual_block.4
$region0: #{residual_block.4}
  #allocation0 [shape = 'u32[]', space=smem, size = 0x4, offset = 0x4, fixed_abs, tag = 'smem constant byte address 0x4 - core index']
  #allocation1 [shape = 'u32[72,128]{1,0:T(1,128)}', space=vmem, size = 0x9000, scoped, tag = 'internal scratch']
  %s0 = inlined_call_operand.vmem [shape: f32[2,16,16,4], index: 0, kind: input, shape index: {}, may-alias: {0,1,2}]
  %s1 = inlined_call_operand.vmem [shape: f32[2,16,16,4], index: 1, kind: input, shape index: {}, may-alias: {0,1,2}]
  %s2 = inlined_call_operand.vmem [shape: f32[2,16,16,4], index: 2, kind: input, shape index: {}, may-alias: {0,1,2}]
  %s3 = inlined_call_operand.vmem [shape: f32[1,4], index: 3, kind: input, shape index: {}]
  %s4 = inlined_call_operand.vmem [shape: f32[1,4], index: 4, kind: input, shape index: {}]
  %s5 = inlined_call_operand.vmem [shape: f32[1,4], index: 5, kind: input, shape index: {}]
  %s6 = inlined_call_operand.vmem [shape: f32[3,12,4], index: 6, kind: input, shape index: {}]
  %s7 = inlined_call_operand.vmem [shape: f32[2,16,16,4], index: 7, kind: output, shape index: {0}]
  %s8 = inlined_call_operand.vmem [shape: f32[2,1,2,4], index: 8, kind: output, shape index: {1}]
  %9 = xla_tuple %s7, %s8
  %s10 = sld [smem:[#allocation0]]
  $region69: #{residual_block.4} parent=0
    _
  %s12 = ssub.s32 1, %s10
  %s13 = scalar_select 0, %s12, %s10
  loop: start=0, step=1, limit=4
  $region2: #{residual_block.4} parent=0 // loop_pre_header
    _
  $region3: #{residual_block.4} parent=0 // loop_header
    %s15 = sphi 0, %s19
    %p16 = scmp.ge.s32.totalorder %s15, 4
    %s22 = sphi 0, %s34
    %s23 = sphi 0, %s30
    %s24 = sphi 0, %s22
    %s25 = sphi 0, %s23
    %s26 = sphi 0, %s24
    %s27 = sphi 0, %s25
    %s39 = sphi 0, %s41
    %s42 = sphi 0, %s39
    %s43 = sphi 0, %s42
    %s59 = sphi 0, %s43
    %s77 = sphi 0, %s79
    %s80 = sphi 0, %s77
    %s81 = sphi 0, %s80
    %s97 = sphi 0, %s81
    %s119 = sphi 0, %s121
    %s122 = sphi 0, %s119
    %s123 = sphi 0, %s122
    %s139 = sphi 0, %s123
    %s143 = sphi 0, %s143
    %s145 = sphi 0, %s143
    %s146 = sphi 0, %s145
    %s160 = sphi 0, %s146
    %s164 = sphi 0, %s164
    %s166 = sphi 0, %s164
    %s167 = sphi 0, %s166
    %s181 = sphi 0, %s167
    %s185 = sphi 0, %s185
    %s187 = sphi 0, %s185
    %s188 = sphi 0, %s187
    %s202 = sphi 0, %s188
    %s206 = sphi 0, %s206
    %s208 = sphi 0, %s206
    %s209 = sphi 0, %s208
    %s223 = sphi 0, %s209
    %s231 = sphi 0, %s233
    %s234 = sphi 0, %s231
    %s235 = sphi 0, %s234
    %s251 = sphi 0, %s235
    %s259 = sphi 0, %s261
    %s262 = sphi 0, %s259
    %s263 = sphi 0, %s262
    %s279 = sphi 0, %s263
  $region4: #{residual_block.4} parent=0 // loop_header_branch
    %18 = sbr.rel (%p16) target = $region8
  $region5: #{residual_block.4} parent=0 // loop_body
    %s20 = ssub.s32 %s15, 1
    %s21 = ssub.s32 %s15, 2
    %s28 = sadd.s32 1, %s23
    %p29 = scmp.ge.s32.totalorder %s28, 1
    %s30 = scalar_select %p29, 0, %s28
    %s31 = sadd.s32 1, %s22
    %s32 = scalar_select %p29, %s31, %s22
    %p33 = scmp.ge.s32.totalorder %s32, 2
    %s34 = scalar_select %p33, 0, %s32
    %s35 = ssub.s32 %s22, %s34
    %s36 = ssub.s32 %s23, %s30
    %s37 = sor.u32 %s35, %s36
    %p38 = scmp.eq.s32.totalorder %s37, 0
    %s40 = sadd.s32 %s39, 1
    %s41 = scalar_select %p38, %s39, %s40
    %p44 = pneg %p38
    %p45 = scmp.eq.s32.totalorder %s15, 1
    %p46 = por %p44, %p45
    %p47 = scmp.ne.s32.totalorder %s39, %s42
    %p48 = scmp.eq.s32.totalorder %s15, 0
    %p49 = por %p47, %p48
    %p50 = scmp.ne.s32.totalorder %s39, %s42
    %p51 = scmp.eq.s32.totalorder %s20, 1
    %p52 = por %p50, %p51
    %p53 = scmp.ne.s32.totalorder %s42, %s43
    %p54 = scmp.eq.s32.totalorder %s20, 0
    %p55 = por %p53, %p54
    %p56 = scmp.ne.s32.totalorder %s42, %s43
    %p57 = scmp.eq.s32.totalorder %s21, 1
    %p58 = por %p56, %p57
    %p60 = scmp.ne.s32.totalorder %s43, %s59
    %p61 = scmp.eq.s32.totalorder %s21, 0
    %p62 = por %p60, %p61
    %s63 = smul.u32 %s23, 16
    %s64 = ssub.s32 %s63, 1
    %s65 = ssub.s32 1, %s63
    %p66 = scmp.gt.s32.totalorder %s64, %s65
    %s67 = scalar_select %p66, %s64, %s65
    %s68 = smul.u32 %s30, 16
    %s69 = ssub.s32 %s68, 1
    %s70 = ssub.s32 1, %s68
    %p71 = scmp.gt.s32.totalorder %s69, %s70
    %s72 = scalar_select %p71, %s69, %s70
    %s73 = ssub.s32 %s22, %s34
    %s74 = ssub.s32 %s67, %s72
    %s75 = sor.u32 %s73, %s74
    %p76 = scmp.eq.s32.totalorder %s75, 0
    %s78 = sadd.s32 %s77, 1
    %s79 = scalar_select %p76, %s77, %s78
    %p82 = pneg %p76
    %p83 = scmp.eq.s32.totalorder %s15, 1
    %p84 = por %p82, %p83
    %p85 = scmp.ne.s32.totalorder %s77, %s80
    %p86 = scmp.eq.s32.totalorder %s15, 0
    %p87 = por %p85, %p86
    %p88 = scmp.ne.s32.totalorder %s77, %s80
    %p89 = scmp.eq.s32.totalorder %s20, 1
    %p90 = por %p88, %p89
    %p91 = scmp.ne.s32.totalorder %s80, %s81
    %p92 = scmp.eq.s32.totalorder %s20, 0
    %p93 = por %p91, %p92
    %p94 = scmp.ne.s32.totalorder %s80, %s81
    %p95 = scmp.eq.s32.totalorder %s21, 1
    %p96 = por %p94, %p95
    %p98 = scmp.ne.s32.totalorder %s81, %s97
    %p99 = scmp.eq.s32.totalorder %s21, 0
    %p100 = por %p98, %p99
    %s101 = sadd.s32 %s23, 1
    %s102 = smul.u32 %s101, 16
    %s103 = ssub.s32 15, %s102
    %s104 = sadd.s32 %s102, 4294967281
    %p105 = scmp.gt.s32.totalorder %s103, %s104
    %s106 = scalar_select %p105, %s103, %s104
    %s107 = ssub.s32 15, %s106
    %s108 = sadd.s32 %s30, 1
    %s109 = smul.u32 %s108, 16
    %s110 = ssub.s32 15, %s109
    %s111 = sadd.s32 %s109, 4294967281
    %p112 = scmp.gt.s32.totalorder %s110, %s111
    %s113 = scalar_select %p112, %s110, %s111
    %s114 = ssub.s32 15, %s113
    %s115 = ssub.s32 %s22, %s34
    %s116 = ssub.s32 %s107, %s114
    %s117 = sor.u32 %s115, %s116
    %p118 = scmp.eq.s32.totalorder %s117, 0
    %s120 = sadd.s32 %s119, 1
    %s121 = scalar_select %p118, %s119, %s120
    %p124 = pneg %p118
    %p125 = scmp.eq.s32.totalorder %s15, 1
    %p126 = por %p124, %p125
    %p127 = scmp.ne.s32.totalorder %s119, %s122
    %p128 = scmp.eq.s32.totalorder %s15, 0
    %p129 = por %p127, %p128
    %p130 = scmp.ne.s32.totalorder %s119, %s122
    %p131 = scmp.eq.s32.totalorder %s20, 1
    %p132 = por %p130, %p131
    %p133 = scmp.ne.s32.totalorder %s122, %s123
    %p134 = scmp.eq.s32.totalorder %s20, 0
    %p135 = por %p133, %p134
    %p136 = scmp.ne.s32.totalorder %s122, %s123
    %p137 = scmp.eq.s32.totalorder %s21, 1
    %p138 = por %p136, %p137
    %p140 = scmp.ne.s32.totalorder %s123, %s139
    %p141 = scmp.eq.s32.totalorder %s21, 0
    %p142 = por %p140, %p141
    %s144 = sadd.s32 %s143, 1
    %p147 = scmp.eq.s32.totalorder %s15, 1
    %p148 = scmp.ne.s32.totalorder %s143, %s145
    %p149 = scmp.eq.s32.totalorder %s15, 0
    %p150 = por %p148, %p149
    %p151 = scmp.ne.s32.totalorder %s143, %s145
    %p152 = scmp.eq.s32.totalorder %s20, 1
    %p153 = por %p151, %p152
    %p154 = scmp.ne.s32.totalorder %s145, %s146
    %p155 = scmp.eq.s32.totalorder %s20, 0
    %p156 = por %p154, %p155
    %p157 = scmp.ne.s32.totalorder %s145, %s146
    %p158 = scmp.eq.s32.totalorder %s21, 1
    %p159 = por %p157, %p158
    %p161 = scmp.ne.s32.totalorder %s146, %s160
    %p162 = scmp.eq.s32.totalorder %s21, 0
    %p163 = por %p161, %p162
    %s165 = sadd.s32 %s164, 1
    %p168 = scmp.eq.s32.totalorder %s15, 1
    %p169 = scmp.ne.s32.totalorder %s164, %s166
    %p170 = scmp.eq.s32.totalorder %s15, 0
    %p171 = por %p169, %p170
    %p172 = scmp.ne.s32.totalorder %s164, %s166
    %p173 = scmp.eq.s32.totalorder %s20, 1
    %p174 = por %p172, %p173
    %p175 = scmp.ne.s32.totalorder %s166, %s167
    %p176 = scmp.eq.s32.totalorder %s20, 0
    %p177 = por %p175, %p176
    %p178 = scmp.ne.s32.totalorder %s166, %s167
    %p179 = scmp.eq.s32.totalorder %s21, 1
    %p180 = por %p178, %p179
    %p182 = scmp.ne.s32.totalorder %s167, %s181
    %p183 = scmp.eq.s32.totalorder %s21, 0
    %p184 = por %p182, %p183
    %s186 = sadd.s32 %s185, 1
    %p189 = scmp.eq.s32.totalorder %s15, 1
    %p190 = scmp.ne.s32.totalorder %s185, %s187
    %p191 = scmp.eq.s32.totalorder %s15, 0
    %p192 = por %p190, %p191
    %p193 = scmp.ne.s32.totalorder %s185, %s187
    %p194 = scmp.eq.s32.totalorder %s20, 1
    %p195 = por %p193, %p194
    %p196 = scmp.ne.s32.totalorder %s187, %s188
    %p197 = scmp.eq.s32.totalorder %s20, 0
    %p198 = por %p196, %p197
    %p199 = scmp.ne.s32.totalorder %s187, %s188
    %p200 = scmp.eq.s32.totalorder %s21, 1
    %p201 = por %p199, %p200
    %p203 = scmp.ne.s32.totalorder %s188, %s202
    %p204 = scmp.eq.s32.totalorder %s21, 0
    %p205 = por %p203, %p204
    %s207 = sadd.s32 %s206, 1
    %p210 = scmp.eq.s32.totalorder %s15, 1
    %p211 = scmp.ne.s32.totalorder %s206, %s208
    %p212 = scmp.eq.s32.totalorder %s15, 0
    %p213 = por %p211, %p212
    %p214 = scmp.ne.s32.totalorder %s206, %s208
    %p215 = scmp.eq.s32.totalorder %s20, 1
    %p216 = por %p214, %p215
    %p217 = scmp.ne.s32.totalorder %s208, %s209
    %p218 = scmp.eq.s32.totalorder %s20, 0
    %p219 = por %p217, %p218
    %p220 = scmp.ne.s32.totalorder %s208, %s209
    %p221 = scmp.eq.s32.totalorder %s21, 1
    %p222 = por %p220, %p221
    %p224 = scmp.ne.s32.totalorder %s209, %s223
    %p225 = scmp.eq.s32.totalorder %s21, 0
    %p226 = por %p224, %p225
    %s227 = ssub.s32 %s22, %s34
    %s228 = ssub.s32 %s23, %s30
    %s229 = sor.u32 %s227, %s228
    %p230 = scmp.eq.s32.totalorder %s229, 0
    %s232 = sadd.s32 %s231, 1
    %s233 = scalar_select %p230, %s231, %s232
    %p236 = pneg %p230
    %p237 = scmp.eq.s32.totalorder %s15, 1
    %p238 = por %p236, %p237
    %p239 = scmp.ne.s32.totalorder %s231, %s234
    %p240 = scmp.eq.s32.totalorder %s15, 0
    %p241 = por %p239, %p240
    %p242 = scmp.ne.s32.totalorder %s231, %s234
    %p243 = scmp.eq.s32.totalorder %s20, 1
    %p244 = por %p242, %p243
    %p245 = scmp.ne.s32.totalorder %s234, %s235
    %p246 = scmp.eq.s32.totalorder %s20, 0
    %p247 = por %p245, %p246
    %p248 = scmp.ne.s32.totalorder %s234, %s235
    %p249 = scmp.eq.s32.totalorder %s21, 1
    %p250 = por %p248, %p249
    %p252 = scmp.ne.s32.totalorder %s235, %s251
    %p253 = scmp.eq.s32.totalorder %s21, 0
    %p254 = por %p252, %p253
    %s255 = ssub.s32 %s22, %s34
    %s256 = ssub.s32 %s23, %s30
    %s257 = sor.u32 %s255, %s256
    %p258 = scmp.eq.s32.totalorder %s257, 0
    %s260 = sadd.s32 %s259, 1
    %s261 = scalar_select %p258, %s259, %s260
    %p264 = pneg %p258
    %p265 = scmp.eq.s32.totalorder %s15, 1
    %p266 = por %p264, %p265
    %p267 = scmp.ne.s32.totalorder %s259, %s262
    %p268 = scmp.eq.s32.totalorder %s15, 0
    %p269 = por %p267, %p268
    %p270 = scmp.ne.s32.totalorder %s259, %s262
    %p271 = scmp.eq.s32.totalorder %s20, 1
    %p272 = por %p270, %p271
    %p273 = scmp.ne.s32.totalorder %s262, %s263
    %p274 = scmp.eq.s32.totalorder %s20, 0
    %p275 = por %p273, %p274
    %p276 = scmp.ne.s32.totalorder %s262, %s263
    %p277 = scmp.eq.s32.totalorder %s21, 1
    %p278 = por %p276, %p277
    %p280 = scmp.ne.s32.totalorder %s263, %s279
    %p281 = scmp.eq.s32.totalorder %s21, 0
    %p282 = por %p280, %p281
    %p283 = scmp.le.s32.totalorder 1, %s15
    %p284 = scmp.lt.s32.totalorder %s15, 3
    %p285 = pnand %p283, %p284
    %p286 = pneg %p285
    // Predicated region
    $region9: #{residual_block.4} parent=5 // pred_check
      _
    $region10: #{residual_block.4} parent=5 // pred_check_branch
      %288 = sbr.rel (%p285) target = $region12
    $region11: #{residual_block.4} parent=5 // pred_region
      %s289 = ssub.s32 %s15, 1
      // Predicated region
      $region13: #{residual_block.4} parent=11 // pred_check
        %p290 = pneg %p156
      $region14: #{residual_block.4} parent=11 // pred_check_branch
        %292 = sbr.rel (%p290) target = $region16
      $region15: #{residual_block.4} parent=11 // pred_region
        _
      $region16: #{residual_block.4} parent=11 // pred_fallthru
        _
      // Predicated region
      $region17: #{residual_block.4} parent=11 // pred_check
        %p293 = pneg %p177
      $region18: #{residual_block.4} parent=11 // pred_check_branch
        %295 = sbr.rel (%p293) target = $region20
      $region19: #{residual_block.4} parent=11 // pred_region
        _
      $region20: #{residual_block.4} parent=11 // pred_fallthru
        _
      // Predicated region
      $region21: #{residual_block.4} parent=11 // pred_check
        %p296 = pneg %p198
      $region22: #{residual_block.4} parent=11 // pred_check_branch
        %298 = sbr.rel (%p296) target = $region24
      $region23: #{residual_block.4} parent=11 // pred_region
        _
      $region24: #{residual_block.4} parent=11 // pred_fallthru
        _
      // Predicated region
      $region25: #{residual_block.4} parent=11 // pred_check
        %p299 = pneg %p219
      $region26: #{residual_block.4} parent=11 // pred_check_branch
        %301 = sbr.rel (%p299) target = $region28
      $region27: #{residual_block.4} parent=11 // pred_region
        _
      $region28: #{residual_block.4} parent=11 // pred_fallthru
        _
    $region12: #{residual_block.4} parent=5 // pred_fallthru
      _
    %p302 = scmp.lt.s32.totalorder %s15, 2
    // Predicated region
    $region29: #{residual_block.4} parent=5 // pred_check
      %p303 = pneg %p302
    $region30: #{residual_block.4} parent=5 // pred_check_branch
      %305 = sbr.rel (%p303) target = $region32
    $region31: #{residual_block.4} parent=5 // pred_region
      // Predicated region
      $region33: #{residual_block.4} parent=31 // pred_check
        %p306 = pneg %p49
      $region34: #{residual_block.4} parent=31 // pred_check_branch
        %308 = sbr.rel (%p306) target = $region36
      $region35: #{residual_block.4} parent=31 // pred_region
        %s309 = smul.u32 16, %s23
        %p310 = scmp.lt.s32.totalorder %s22, 1
        %s311 = scalar_select %p310, %s22, 1
        %p312 = scmp.lt.s32.totalorder %s309, 15
        %s313 = scalar_select %p312, %s309, 15
        %s314 = smul.addr %s313, 2
        %s315 = smul.addr %s311, 32
        %s316 = sadd.s32 %s314, %s315
        %s317 = smul.addr %s316, 8
        %s318 = scalar_lea.vmem %s0, %s317
        %s319 = smul.u32 16, %s23
      $region36: #{residual_block.4} parent=31 // pred_fallthru
        _
      // Predicated region
      $region37: #{residual_block.4} parent=31 // pred_check
        %p320 = pneg %p87
      $region38: #{residual_block.4} parent=31 // pred_check_branch
        %322 = sbr.rel (%p320) target = $region40
      $region39: #{residual_block.4} parent=31 // pred_region
        %s323 = smul.u32 %s23, 16
        %s324 = ssub.s32 %s323, 1
        %s325 = ssub.s32 1, %s323
        %p326 = scmp.gt.s32.totalorder %s324, %s325
        %s327 = scalar_select %p326, %s324, %s325
        %p328 = scmp.lt.s32.totalorder %s22, 1
        %s329 = scalar_select %p328, %s22, 1
        %p330 = scmp.lt.s32.totalorder %s327, 15
        %s331 = scalar_select %p330, %s327, 15
        %s332 = smul.addr %s331, 2
        %s333 = smul.addr %s329, 32
        %s334 = sadd.s32 %s332, %s333
        %s335 = smul.addr %s334, 8
        %s336 = scalar_lea.vmem %s1, %s335
        %s337 = smul.u32 %s23, 16
        %s338 = ssub.s32 %s337, 1
        %s339 = ssub.s32 1, %s337
        %p340 = scmp.gt.s32.totalorder %s338, %s339
        %s341 = scalar_select %p340, %s338, %s339
      $region40: #{residual_block.4} parent=31 // pred_fallthru
        _
      // Predicated region
      $region41: #{residual_block.4} parent=31 // pred_check
        %p342 = pneg %p129
      $region42: #{residual_block.4} parent=31 // pred_check_branch
        %344 = sbr.rel (%p342) target = $region44
      $region43: #{residual_block.4} parent=31 // pred_region
        %s345 = sadd.s32 %s23, 1
        %s346 = smul.u32 %s345, 16
        %s347 = ssub.s32 15, %s346
        %s348 = sadd.s32 %s346, 4294967281
        %p349 = scmp.gt.s32.totalorder %s347, %s348
        %s350 = scalar_select %p349, %s347, %s348
        %s351 = ssub.s32 15, %s350
        %p352 = scmp.lt.s32.totalorder %s22, 1
        %s353 = scalar_select %p352, %s22, 1
        %p354 = scmp.lt.s32.totalorder %s351, 15
        %s355 = scalar_select %p354, %s351, 15
        %s356 = smul.addr %s355, 2
        %s357 = smul.addr %s353, 32
        %s358 = sadd.s32 %s356, %s357
        %s359 = smul.addr %s358, 8
        %s360 = scalar_lea.vmem %s2, %s359
        %s361 = sadd.s32 %s23, 1
        %s362 = smul.u32 %s361, 16
        %s363 = ssub.s32 15, %s362
        %s364 = sadd.s32 %s362, 4294967281
        %p365 = scmp.gt.s32.totalorder %s363, %s364
        %s366 = scalar_select %p365, %s363, %s364
        %s367 = ssub.s32 15, %s366
      $region44: #{residual_block.4} parent=31 // pred_fallthru
        _
    $region32: #{residual_block.4} parent=5 // pred_fallthru
      _
    %p368 = scmp.le.s32.totalorder 1, %s15
    %p369 = scmp.lt.s32.totalorder %s15, 3
    %p370 = pnand %p368, %p369
    %p371 = pneg %p370
    // Predicated region
    $region45: #{residual_block.4} parent=5 // pred_check
      _
    $region46: #{residual_block.4} parent=5 // pred_check_branch
      %373 = sbr.rel (%p370) target = $region48
    $region47: #{residual_block.4} parent=5 // pred_region
      %s374 = ssub.s32 %s15, 1
      %s375 = smul.u32 16, %s25
      %p376 = scmp.lt.s32.totalorder %s24, 1
      %s377 = scalar_select %p376, %s24, 1
      %p378 = scmp.lt.s32.totalorder %s375, 15
      %s379 = scalar_select %p378, %s375, 15
      %s380 = smul.addr %s379, 2
      %s381 = smul.addr %s377, 32
      %s382 = sadd.s32 %s380, %s381
      %s383 = smul.addr %s382, 8
      %s384 = scalar_lea.vmem %s0, %s383
      %p385 = pneg %p55
      %p386 = pneg %p52
      %s387 = smul.u32 %s25, 16
      %s388 = ssub.s32 %s387, 1
      %s389 = ssub.s32 1, %s387
      %p390 = scmp.gt.s32.totalorder %s388, %s389
      %s391 = scalar_select %p390, %s388, %s389
      %p392 = scmp.lt.s32.totalorder %s24, 1
      %s393 = scalar_select %p392, %s24, 1
      %p394 = scmp.lt.s32.totalorder %s391, 15
      %s395 = scalar_select %p394, %s391, 15
      %s396 = smul.addr %s395, 2
      %s397 = smul.addr %s393, 32
      %s398 = sadd.s32 %s396, %s397
      %s399 = smul.addr %s398, 8
      %s400 = scalar_lea.vmem %s1, %s399
      %p401 = pneg %p93
      %p402 = pneg %p90
      %s403 = sadd.s32 %s25, 1
      %s404 = smul.u32 %s403, 16
      %s405 = ssub.s32 15, %s404
      %s406 = sadd.s32 %s404, 4294967281
      %p407 = scmp.gt.s32.totalorder %s405, %s406
      %s408 = scalar_select %p407, %s405, %s406
      %s409 = ssub.s32 15, %s408
      %p410 = scmp.lt.s32.totalorder %s24, 1
      %s411 = scalar_select %p410, %s24, 1
      %p412 = scmp.lt.s32.totalorder %s409, 15
      %s413 = scalar_select %p412, %s409, 15
      %s414 = smul.addr %s413, 2
      %s415 = smul.addr %s411, 32
      %s416 = sadd.s32 %s414, %s415
      %s417 = smul.addr %s416, 8
      %s418 = scalar_lea.vmem %s2, %s417
      %p419 = pneg %p135
      %p420 = pneg %p132
      %p421 = pneg %p156
      %p422 = pneg %p153
      %p423 = pneg %p177
      %p424 = pneg %p174
      %p425 = pneg %p198
      %p426 = pneg %p195
      %p427 = pneg %p219
      %p428 = pneg %p216
      %p429 = pneg %p247
      %p430 = pneg %p244
      %s431 = smul.u32 16, %s25
      %p432 = scmp.lt.s32.totalorder %s24, 1
      %s433 = scalar_select %p432, %s24, 1
      %p434 = scmp.lt.s32.totalorder %s431, 15
      %s435 = scalar_select %p434, %s431, 15
      %s436 = smul.addr %s435, 2
      %s437 = smul.addr %s433, 32
      %s438 = sadd.s32 %s436, %s437
      %s439 = smul.addr %s438, 8
      %s440 = scalar_lea.vmem %s7, %s439
      %p441 = pneg %p275
      %p442 = pneg %p272
      %p443 = scmp.lt.s32.totalorder %s24, 1
      %s444 = scalar_select %p443, %s24, 1
      %p445 = scmp.lt.s32.totalorder %s25, 0
      %s446 = scalar_select %p445, %s25, 0
      %s447 = sadd.s32 %s446, %s444
      %s448 = smul.addr %s447, 2
      %s449 = scalar_lea.vmem %s8, %s448
      %s450 = smul.u32 16, %s25
      %p451 = scmp.lt.s32.totalorder %s24, 1
      %s452 = scalar_select %p451, %s24, 1
      %p453 = scmp.lt.s32.totalorder %s450, 15
      %s454 = scalar_select %p453, %s450, 15
      %s455 = smul.addr %s454, 2
      %s456 = smul.addr %s452, 32
      %s457 = sadd.s32 %s455, %s456
      %s458 = smul.addr %s457, 8
      %s459 = scalar_lea.vmem %s0, %s458
      %s460 = smul.u32 16, %s25
      %s461 = smul.u32 %s25, 16
      %s462 = ssub.s32 %s461, 1
      %s463 = ssub.s32 1, %s461
      %p464 = scmp.gt.s32.totalorder %s462, %s463
      %s465 = scalar_select %p464, %s462, %s463
      %p466 = scmp.lt.s32.totalorder %s24, 1
      %s467 = scalar_select %p466, %s24, 1
      %p468 = scmp.lt.s32.totalorder %s465, 15
      %s469 = scalar_select %p468, %s465, 15
      %s470 = smul.addr %s469, 2
      %s471 = smul.addr %s467, 32
      %s472 = sadd.s32 %s470, %s471
      %s473 = smul.addr %s472, 8
      %s474 = scalar_lea.vmem %s1, %s473
      %s475 = smul.u32 %s25, 16
      %s476 = ssub.s32 %s475, 1
      %s477 = ssub.s32 1, %s475
      %p478 = scmp.gt.s32.totalorder %s476, %s477
      %s479 = scalar_select %p478, %s476, %s477
      %s480 = sadd.s32 %s25, 1
      %s481 = smul.u32 %s480, 16
      %s482 = ssub.s32 15, %s481
      %s483 = sadd.s32 %s481, 4294967281
      %p484 = scmp.gt.s32.totalorder %s482, %s483
      %s485 = scalar_select %p484, %s482, %s483
      %s486 = ssub.s32 15, %s485
      %p487 = scmp.lt.s32.totalorder %s24, 1
      %s488 = scalar_select %p487, %s24, 1
      %p489 = scmp.lt.s32.totalorder %s486, 15
      %s490 = scalar_select %p489, %s486, 15
      %s491 = smul.addr %s490, 2
      %s492 = smul.addr %s488, 32
      %s493 = sadd.s32 %s491, %s492
      %s494 = smul.addr %s493, 8
      %s495 = scalar_lea.vmem %s2, %s494
      %s496 = sadd.s32 %s25, 1
      %s497 = smul.u32 %s496, 16
      %s498 = ssub.s32 15, %s497
      %s499 = sadd.s32 %s497, 4294967281
      %p500 = scmp.gt.s32.totalorder %s498, %s499
      %s501 = scalar_select %p500, %s498, %s499
      %s502 = ssub.s32 15, %s501
      %s503 = smul.u32 16, %s25
      %p504 = scmp.lt.s32.totalorder %s24, 1
      %s505 = scalar_select %p504, %s24, 1
      %p506 = scmp.lt.s32.totalorder %s503, 15
      %s507 = scalar_select %p506, %s503, 15
      %s508 = smul.addr %s507, 2
      %s509 = smul.addr %s505, 32
      %s510 = sadd.s32 %s508, %s509
      %s511 = smul.addr %s510, 8
      %s512 = scalar_lea.vmem %s7, %s511
      %s513 = smul.u32 16, %s25
      %p514 = scmp.lt.s32.totalorder %s24, 1
      %s515 = scalar_select %p514, %s24, 1
      %p516 = scmp.lt.s32.totalorder %s25, 0
      %s517 = scalar_select %p516, %s25, 0
      %s518 = sadd.s32 %s517, %s515
      %s519 = smul.addr %s518, 2
      %s520 = scalar_lea.vmem %s8, %s519
      %v521 = vld [vmem:[%s474] sm:$0xff]
      %v522 = vld [vmem:[%s474 + $0x8] sm:$0xff]
      %v523 = vld [vmem:[%s459] sm:$0xff]
      %v524 = vld [vmem:[%s459 + $0x8] sm:$0xff]
      %v525 = vld [vmem:[%s459 + $0x10] sm:$0xff]
      %v526 = vld [vmem:[%s459 + $0x18] sm:$0xff]
      %v527 = vld [vmem:[%s459 + $0x20] sm:$0xff]
      %v528 = vld [vmem:[%s459 + $0x28] sm:$0xff]
      %v529 = vld [vmem:[%s459 + $0x30] sm:$0xff]
      %v530 = vld [vmem:[%s459 + $0x38] sm:$0xff]
      %v531 = vld [vmem:[%s459 + $0x40] sm:$0xff]
      %v532 = vld [vmem:[%s459 + $0x48] sm:$0xff]
      %v533 = vld [vmem:[%s459 + $0x50] sm:$0xff]
      %v534 = vld [vmem:[%s459 + $0x58] sm:$0xff]
      %v535 = vld [vmem:[%s459 + $0x60] sm:$0xff]
      %v536 = vld [vmem:[%s459 + $0x68] sm:$0xff]
      %v537 = vld [vmem:[%s459 + $0x70] sm:$0xff]
      %v538 = vld [vmem:[%s459 + $0x78] sm:$0xff]
      %v539 = vld [vmem:[%s459 + $0x80] sm:$0xff]
      %v540 = vld [vmem:[%s459 + $0x88] sm:$0xff]
      %v541 = vld [vmem:[%s459 + $0x90] sm:$0xff]
      %v542 = vld [vmem:[%s459 + $0x98] sm:$0xff]
      %v543 = vld [vmem:[%s459 + $0xa0] sm:$0xff]
      %v544 = vld [vmem:[%s459 + $0xa8] sm:$0xff]
      %v545 = vld [vmem:[%s459 + $0xb0] sm:$0xff]
      %v546 = vld [vmem:[%s459 + $0xb8] sm:$0xff]
      %v547 = vld [vmem:[%s459 + $0xc0] sm:$0xff]
      %v548 = vld [vmem:[%s459 + $0xc8] sm:$0xff]
      %v549 = vld [vmem:[%s459 + $0xd0] sm:$0xff]
      %v550 = vld [vmem:[%s459 + $0xd8] sm:$0xff]
      %v551 = vld [vmem:[%s459 + $0xe0] sm:$0xff]
      %v552 = vld [vmem:[%s459 + $0xe8] sm:$0xff]
      %v553 = vld [vmem:[%s459 + $0xf0] sm:$0xff]
      %v554 = vld [vmem:[%s459 + $0xf8] sm:$0xff]
      %v555 = vld [vmem:[%s495] sm:$0xff]
      %v556 = vld [vmem:[%s495 + $0x8] sm:$0xff]
      %v557 = vld [vmem:[%s3] sm:$0x1]
      %v558 = vld [vmem:[%s4] sm:$0x1]
      %v559 = vld [vmem:[%s5] sm:$0x1]
      %v561 = vperm.slane %v557, 0
      %v563 = vmul.f32 %v521, %v561
      %v564 = vmul.f32 %v522, %v561
      %v565 = vmul.f32 %v523, %v561
      %v566 = vmul.f32 %v524, %v561
      %v567 = vmul.f32 %v525, %v561
      %v568 = vmul.f32 %v526, %v561
      %v569 = vmul.f32 %v527, %v561
      %v570 = vmul.f32 %v528, %v561
      %v571 = vmul.f32 %v529, %v561
      %v572 = vmul.f32 %v530, %v561
      %v573 = vmul.f32 %v531, %v561
      %v574 = vmul.f32 %v532, %v561
      %v575 = vmul.f32 %v533, %v561
      %v576 = vmul.f32 %v534, %v561
      %v577 = vmul.f32 %v535, %v561
      %v578 = vmul.f32 %v536, %v561
      %v579 = vmul.f32 %v537, %v561
      %v580 = vmul.f32 %v538, %v561
      %v581 = vmul.f32 %v539, %v561
      %v582 = vmul.f32 %v540, %v561
      %v583 = vmul.f32 %v541, %v561
      %v584 = vmul.f32 %v542, %v561
      %v585 = vmul.f32 %v543, %v561
      %v586 = vmul.f32 %v544, %v561
      %v587 = vmul.f32 %v545, %v561
      %v588 = vmul.f32 %v546, %v561
      %v589 = vmul.f32 %v547, %v561
      %v590 = vmul.f32 %v548, %v561
      %v591 = vmul.f32 %v549, %v561
      %v592 = vmul.f32 %v550, %v561
      %v593 = vmul.f32 %v551, %v561
      %v594 = vmul.f32 %v552, %v561
      %v595 = vmul.f32 %v553, %v561
      %v596 = vmul.f32 %v554, %v561
      %v597 = vmul.f32 %v555, %v561
      %v598 = vmul.f32 %v556, %v561
      %v600 = vperm.slane %v558, 0
      %v602 = vadd.f32 %v563, %v600
      %v603 = vadd.f32 %v564, %v600
      %v604 = vadd.f32 %v565, %v600
      %v605 = vadd.f32 %v566, %v600
      %v606 = vadd.f32 %v567, %v600
      %v607 = vadd.f32 %v568, %v600
      %v608 = vadd.f32 %v569, %v600
      %v609 = vadd.f32 %v570, %v600
      %v610 = vadd.f32 %v571, %v600
      %v611 = vadd.f32 %v572, %v600
      %v612 = vadd.f32 %v573, %v600
      %v613 = vadd.f32 %v574, %v600
      %v614 = vadd.f32 %v575, %v600
      %v615 = vadd.f32 %v576, %v600
      %v616 = vadd.f32 %v577, %v600
      %v617 = vadd.f32 %v578, %v600
      %v618 = vadd.f32 %v579, %v600
      %v619 = vadd.f32 %v580, %v600
      %v620 = vadd.f32 %v581, %v600
      %v621 = vadd.f32 %v582, %v600
      %v622 = vadd.f32 %v583, %v600
      %v623 = vadd.f32 %v584, %v600
      %v624 = vadd.f32 %v585, %v600
      %v625 = vadd.f32 %v586, %v600
      %v626 = vadd.f32 %v587, %v600
      %v627 = vadd.f32 %v588, %v600
      %v628 = vadd.f32 %v589, %v600
      %v629 = vadd.f32 %v590, %v600
      %v630 = vadd.f32 %v591, %v600
      %v631 = vadd.f32 %v592, %v600
      %v632 = vadd.f32 %v593, %v600
      %v633 = vadd.f32 %v594, %v600
      %v634 = vadd.f32 %v595, %v600
      %v635 = vadd.f32 %v596, %v600
      %v636 = vadd.f32 %v597, %v600
      %v637 = vadd.f32 %v598, %v600
      %vm638 = vcmp.gt.f32.partialorder %v602, 0.0
      %vm639 = vcmp.gt.f32.partialorder %v603, 0.0
      %vm640 = vcmp.gt.f32.partialorder %v604, 0.0
      %vm641 = vcmp.gt.f32.partialorder %v605, 0.0
      %vm642 = vcmp.gt.f32.partialorder %v606, 0.0
      %vm643 = vcmp.gt.f32.partialorder %v607, 0.0
      %vm644 = vcmp.gt.f32.partialorder %v608, 0.0
      %vm645 = vcmp.gt.f32.partialorder %v609, 0.0
      %vm646 = vcmp.gt.f32.partialorder %v610, 0.0
      %vm647 = vcmp.gt.f32.partialorder %v611, 0.0
      %vm648 = vcmp.gt.f32.partialorder %v612, 0.0
      %vm649 = vcmp.gt.f32.partialorder %v613, 0.0
      %vm650 = vcmp.gt.f32.partialorder %v614, 0.0
      %vm651 = vcmp.gt.f32.partialorder %v615, 0.0
      %vm652 = vcmp.gt.f32.partialorder %v616, 0.0
      %vm653 = vcmp.gt.f32.partialorder %v617, 0.0
      %vm654 = vcmp.gt.f32.partialorder %v618, 0.0
      %vm655 = vcmp.gt.f32.partialorder %v619, 0.0
      %vm656 = vcmp.gt.f32.partialorder %v620, 0.0
      %vm657 = vcmp.gt.f32.partialorder %v621, 0.0
      %vm658 = vcmp.gt.f32.partialorder %v622, 0.0
      %vm659 = vcmp.gt.f32.partialorder %v623, 0.0
      %vm660 = vcmp.gt.f32.partialorder %v624, 0.0
      %vm661 = vcmp.gt.f32.partialorder %v625, 0.0
      %vm662 = vcmp.gt.f32.partialorder %v626, 0.0
      %vm663 = vcmp.gt.f32.partialorder %v627, 0.0
      %vm664 = vcmp.gt.f32.partialorder %v628, 0.0
      %vm665 = vcmp.gt.f32.partialorder %v629, 0.0
      %vm666 = vcmp.gt.f32.partialorder %v630, 0.0
      %vm667 = vcmp.gt.f32.partialorder %v631, 0.0
      %vm668 = vcmp.gt.f32.partialorder %v632, 0.0
      %vm669 = vcmp.gt.f32.partialorder %v633, 0.0
      %vm670 = vcmp.gt.f32.partialorder %v634, 0.0
      %vm671 = vcmp.gt.f32.partialorder %v635, 0.0
      %vm672 = vcmp.gt.f32.partialorder %v636, 0.0
      %vm673 = vcmp.gt.f32.partialorder %v637, 0.0
      %v675 = vperm.slane %v559, 0
      %v677 = vmul.f32 %v675, %v602
      %v678 = vmul.f32 %v675, %v603
      %v679 = vmul.f32 %v675, %v604
      %v680 = vmul.f32 %v675, %v605
      %v681 = vmul.f32 %v675, %v606
      %v682 = vmul.f32 %v675, %v607
      %v683 = vmul.f32 %v675, %v608
      %v684 = vmul.f32 %v675, %v609
      %v685 = vmul.f32 %v675, %v610
      %v686 = vmul.f32 %v675, %v611
      %v687 = vmul.f32 %v675, %v612
      %v688 = vmul.f32 %v675, %v613
      %v689 = vmul.f32 %v675, %v614
      %v690 = vmul.f32 %v675, %v615
      %v691 = vmul.f32 %v675, %v616
      %v692 = vmul.f32 %v675, %v617
      %v693 = vmul.f32 %v675, %v618
      %v694 = vmul.f32 %v675, %v619
      %v695 = vmul.f32 %v675, %v620
      %v696 = vmul.f32 %v675, %v621
      %v697 = vmul.f32 %v675, %v622
      %v698 = vmul.f32 %v675, %v623
      %v699 = vmul.f32 %v675, %v624
      %v700 = vmul.f32 %v675, %v625
      %v701 = vmul.f32 %v675, %v626
      %v702 = vmul.f32 %v675, %v627
      %v703 = vmul.f32 %v675, %v628
      %v704 = vmul.f32 %v675, %v629
      %v705 = vmul.f32 %v675, %v630
      %v706 = vmul.f32 %v675, %v631
      %v707 = vmul.f32 %v675, %v632
      %v708 = vmul.f32 %v675, %v633
      %v709 = vmul.f32 %v675, %v634
      %v710 = vmul.f32 %v675, %v635
      %v711 = vmul.f32 %v675, %v636
      %v712 = vmul.f32 %v675, %v637
      %v713 = vsel %vm638, %v602, %v677
      %v714 = vsel %vm639, %v603, %v678
      %v715 = vsel %vm640, %v604, %v679
      %v716 = vsel %vm641, %v605, %v680
      %v717 = vsel %vm642, %v606, %v681
      %v718 = vsel %vm643, %v607, %v682
      %v719 = vsel %vm644, %v608, %v683
      %v720 = vsel %vm645, %v609, %v684
      %v721 = vsel %vm646, %v610, %v685
      %v722 = vsel %vm647, %v611, %v686
      %v723 = vsel %vm648, %v612, %v687
      %v724 = vsel %vm649, %v613, %v688
      %v725 = vsel %vm650, %v614, %v689
      %v726 = vsel %vm651, %v615, %v690
      %v727 = vsel %vm652, %v616, %v691
      %v728 = vsel %vm653, %v617, %v692
      %v729 = vsel %vm654, %v618, %v693
      %v730 = vsel %vm655, %v619, %v694
      %v731 = vsel %vm656, %v620, %v695
      %v732 = vsel %vm657, %v621, %v696
      %v733 = vsel %vm658, %v622, %v697
      %v734 = vsel %vm659, %v623, %v698
      %v735 = vsel %vm660, %v624, %v699
      %v736 = vsel %vm661, %v625, %v700
      %v737 = vsel %vm662, %v626, %v701
      %v738 = vsel %vm663, %v627, %v702
      %v739 = vsel %vm664, %v628, %v703
      %v740 = vsel %vm665, %v629, %v704
      %v741 = vsel %vm666, %v630, %v705
      %v742 = vsel %vm667, %v631, %v706
      %v743 = vsel %vm668, %v632, %v707
      %v744 = vsel %vm669, %v633, %v708
      %v745 = vsel %vm670, %v634, %v709
      %v746 = vsel %vm671, %v635, %v710
      %v747 = vsel %vm672, %v636, %v711
      %v748 = vsel %vm673, %v637, %v712
      %v749 = vld [vmem:[%s6] sm:$0xff]
      %v750 = vld [vmem:[%s6 + $0x8] sm:$0xf]
      %v751 = vld [vmem:[%s6 + $0x10] sm:$0xff]
      %v752 = vld [vmem:[%s6 + $0x18] sm:$0xf]
      %v753 = vld [vmem:[%s6 + $0x20] sm:$0xff]
      %v754 = vld [vmem:[%s6 + $0x28] sm:$0xf]
      %787 = vrot.lane.b32.xlu0 %v715, 4
      %v788 = vpop.permute.xlu0 %787
      %789 = vrot.lane.b32.xlu0 %v716, 4
      %v790 = vpop.permute.xlu0 %789
      %791 = vrot.lane.b32.xlu0 %v717, 4
      %v792 = vpop.permute.xlu0 %791
      %793 = vrot.lane.b32.xlu0 %v718, 4
      %v794 = vpop.permute.xlu0 %793
      %795 = vrot.lane.b32.xlu0 %v719, 4
      %v796 = vpop.permute.xlu0 %795
      %797 = vrot.lane.b32.xlu0 %v720, 4
      %v798 = vpop.permute.xlu0 %797
      %799 = vrot.lane.b32.xlu0 %v721, 4
      %v800 = vpop.permute.xlu0 %799
      %801 = vrot.lane.b32.xlu0 %v722, 4
      %v802 = vpop.permute.xlu0 %801
      %803 = vrot.lane.b32.xlu0 %v723, 4
      %v804 = vpop.permute.xlu0 %803
      %805 = vrot.lane.b32.xlu0 %v724, 4
      %v806 = vpop.permute.xlu0 %805
      %807 = vrot.lane.b32.xlu0 %v725, 4
      %v808 = vpop.permute.xlu0 %807
      %809 = vrot.lane.b32.xlu0 %v726, 4
      %v810 = vpop.permute.xlu0 %809
      %811 = vrot.lane.b32.xlu0 %v727, 4
      %v812 = vpop.permute.xlu0 %811
      %813 = vrot.lane.b32.xlu0 %v728, 4
      %v814 = vpop.permute.xlu0 %813
      %815 = vrot.lane.b32.xlu0 %v729, 4
      %v816 = vpop.permute.xlu0 %815
      %817 = vrot.lane.b32.xlu0 %v730, 4
      %v818 = vpop.permute.xlu0 %817
      %819 = vrot.lane.b32.xlu0 %v731, 4
      %v820 = vpop.permute.xlu0 %819
      %821 = vrot.lane.b32.xlu0 %v732, 4
      %v822 = vpop.permute.xlu0 %821
      %823 = vrot.lane.b32.xlu0 %v733, 4
      %v824 = vpop.permute.xlu0 %823
      %825 = vrot.lane.b32.xlu0 %v734, 4
      %v826 = vpop.permute.xlu0 %825
      %827 = vrot.lane.b32.xlu0 %v735, 4
      %v828 = vpop.permute.xlu0 %827
      %829 = vrot.lane.b32.xlu0 %v736, 4
      %v830 = vpop.permute.xlu0 %829
      %831 = vrot.lane.b32.xlu0 %v737, 4
      %v832 = vpop.permute.xlu0 %831
      %833 = vrot.lane.b32.xlu0 %v738, 4
      %v834 = vpop.permute.xlu0 %833
      %835 = vrot.lane.b32.xlu0 %v739, 4
      %v836 = vpop.permute.xlu0 %835
      %837 = vrot.lane.b32.xlu0 %v740, 4
      %v838 = vpop.permute.xlu0 %837
      %839 = vrot.lane.b32.xlu0 %v741, 4
      %v840 = vpop.permute.xlu0 %839
      %841 = vrot.lane.b32.xlu0 %v742, 4
      %v842 = vpop.permute.xlu0 %841
      %843 = vrot.lane.b32.xlu0 %v743, 4
      %v844 = vpop.permute.xlu0 %843
      %845 = vrot.lane.b32.xlu0 %v744, 4
      %v846 = vpop.permute.xlu0 %845
      %847 = vrot.lane.b32.xlu0 %v745, 4
      %v848 = vpop.permute.xlu0 %847
      %849 = vrot.lane.b32.xlu0 %v746, 4
      %v850 = vpop.permute.xlu0 %849
      %885 = vrot.lane.b32.xlu0 %v717, 8
      %v886 = vpop.permute.xlu0 %885
      %887 = vrot.lane.b32.xlu0 %v718, 8
      %v888 = vpop.permute.xlu0 %887
      %889 = vrot.lane.b32.xlu0 %v719, 8
      %v890 = vpop.permute.xlu0 %889
      %891 = vrot.lane.b32.xlu0 %v720, 8
      %v892 = vpop.permute.xlu0 %891
      %893 = vrot.lane.b32.xlu0 %v721, 8
      %v894 = vpop.permute.xlu0 %893
      %895 = vrot.lane.b32.xlu0 %v722, 8
      %v896 = vpop.permute.xlu0 %895
      %897 = vrot.lane.b32.xlu0 %v723, 8
      %v898 = vpop.permute.xlu0 %897
      %899 = vrot.lane.b32.xlu0 %v724, 8
      %v900 = vpop.permute.xlu0 %899
      %901 = vrot.lane.b32.xlu0 %v725, 8
      %v902 = vpop.permute.xlu0 %901
      %903 = vrot.lane.b32.xlu0 %v726, 8
      %v904 = vpop.permute.xlu0 %903
      %905 = vrot.lane.b32.xlu0 %v727, 8
      %v906 = vpop.permute.xlu0 %905
      %907 = vrot.lane.b32.xlu0 %v728, 8
      %v908 = vpop.permute.xlu0 %907
      %909 = vrot.lane.b32.xlu0 %v729, 8
      %v910 = vpop.permute.xlu0 %909
      %911 = vrot.lane.b32.xlu0 %v730, 8
      %v912 = vpop.permute.xlu0 %911
      %913 = vrot.lane.b32.xlu0 %v731, 8
      %v914 = vpop.permute.xlu0 %913
      %915 = vrot.lane.b32.xlu0 %v732, 8
      %v916 = vpop.permute.xlu0 %915
      %917 = vrot.lane.b32.xlu0 %v733, 8
      %v918 = vpop.permute.xlu0 %917
      %919 = vrot.lane.b32.xlu0 %v734, 8
      %v920 = vpop.permute.xlu0 %919
      %921 = vrot.lane.b32.xlu0 %v735, 8
      %v922 = vpop.permute.xlu0 %921
      %923 = vrot.lane.b32.xlu0 %v736, 8
      %v924 = vpop.permute.xlu0 %923
      %925 = vrot.lane.b32.xlu0 %v737, 8
      %v926 = vpop.permute.xlu0 %925
      %927 = vrot.lane.b32.xlu0 %v738, 8
      %v928 = vpop.permute.xlu0 %927
      %929 = vrot.lane.b32.xlu0 %v739, 8
      %v930 = vpop.permute.xlu0 %929
      %931 = vrot.lane.b32.xlu0 %v740, 8
      %v932 = vpop.permute.xlu0 %931
      %933 = vrot.lane.b32.xlu0 %v741, 8
      %v934 = vpop.permute.xlu0 %933
      %935 = vrot.lane.b32.xlu0 %v742, 8
      %v936 = vpop.permute.xlu0 %935
      %937 = vrot.lane.b32.xlu0 %v743, 8
      %v938 = vpop.permute.xlu0 %937
      %939 = vrot.lane.b32.xlu0 %v744, 8
      %v940 = vpop.permute.xlu0 %939
      %941 = vrot.lane.b32.xlu0 %v745, 8
      %v942 = vpop.permute.xlu0 %941
      %943 = vrot.lane.b32.xlu0 %v746, 8
      %v944 = vpop.permute.xlu0 %943
      %945 = vrot.lane.b32.xlu0 %v747, 8
      %v946 = vpop.permute.xlu0 %945
      %947 = vrot.lane.b32.xlu0 %v748, 8
      %v948 = vpop.permute.xlu0 %947
      %vm981 = vcmask 31744
      %v982 = vsel %vm981, %v713, %v788
      %v983 = vsel %vm981, %v714, %v790
      %v984 = vsel %vm981, %v715, %v792
      %v985 = vsel %vm981, %v716, %v794
      %v986 = vsel %vm981, %v717, %v796
      %v987 = vsel %vm981, %v718, %v798
      %v988 = vsel %vm981, %v719, %v800
      %v989 = vsel %vm981, %v720, %v802
      %v990 = vsel %vm981, %v721, %v804
      %v991 = vsel %vm981, %v722, %v806
      %v992 = vsel %vm981, %v723, %v808
      %v993 = vsel %vm981, %v724, %v810
      %v994 = vsel %vm981, %v725, %v812
      %v995 = vsel %vm981, %v726, %v814
      %v996 = vsel %vm981, %v727, %v816
      %v997 = vsel %vm981, %v728, %v818
      %v998 = vsel %vm981, %v729, %v820
      %v999 = vsel %vm981, %v730, %v822
      %v1000 = vsel %vm981, %v731, %v824
      %v1001 = vsel %vm981, %v732, %v826
      %v1002 = vsel %vm981, %v733, %v828
      %v1003 = vsel %vm981, %v734, %v830
      %v1004 = vsel %vm981, %v735, %v832
      %v1005 = vsel %vm981, %v736, %v834
      %v1006 = vsel %vm981, %v737, %v836
      %v1007 = vsel %vm981, %v738, %v838
      %v1008 = vsel %vm981, %v739, %v840
      %v1009 = vsel %vm981, %v740, %v842
      %v1010 = vsel %vm981, %v741, %v844
      %v1011 = vsel %vm981, %v742, %v846
      %v1012 = vsel %vm981, %v743, %v848
      %v1013 = vsel %vm981, %v744, %v850
      %vm1014 = vcmask 64512
      %v1015 = vsel %vm1014, %v982, %v886
      %v1016 = vsel %vm1014, %v983, %v888
      %v1017 = vsel %vm1014, %v984, %v890
      %v1018 = vsel %vm1014, %v985, %v892
      %v1019 = vsel %vm1014, %v986, %v894
      %v1020 = vsel %vm1014, %v987, %v896
      %v1021 = vsel %vm1014, %v988, %v898
      %v1022 = vsel %vm1014, %v989, %v900
      %v1023 = vsel %vm1014, %v990, %v902
      %v1024 = vsel %vm1014, %v991, %v904
      %v1025 = vsel %vm1014, %v992, %v906
      %v1026 = vsel %vm1014, %v993, %v908
      %v1027 = vsel %vm1014, %v994, %v910
      %v1028 = vsel %vm1014, %v995, %v912
      %v1029 = vsel %vm1014, %v996, %v914
      %v1030 = vsel %vm1014, %v997, %v916
      %v1031 = vsel %vm1014, %v998, %v918
      %v1032 = vsel %vm1014, %v999, %v920
      %v1033 = vsel %vm1014, %v1000, %v922
      %v1034 = vsel %vm1014, %v1001, %v924
      %v1035 = vsel %vm1014, %v1002, %v926
      %v1036 = vsel %vm1014, %v1003, %v928
      %v1037 = vsel %vm1014, %v1004, %v930
      %v1038 = vsel %vm1014, %v1005, %v932
      %v1039 = vsel %vm1014, %v1006, %v934
      %v1040 = vsel %vm1014, %v1007, %v936
      %v1041 = vsel %vm1014, %v1008, %v938
      %v1042 = vsel %vm1014, %v1009, %v940
      %v1043 = vsel %vm1014, %v1010, %v942
      %v1044 = vsel %vm1014, %v1011, %v944
      %v1045 = vsel %vm1014, %v1012, %v946
      %v1046 = vsel %vm1014, %v1013, %v948
      %vm1047 = vcmask 97280
      %v1049 = vsel %vm1047, %v1015, 0
      %v1052 = vsel %vm1047, %v1016, 0
      %v1055 = vsel %vm1047, %v1017, 0
      %v1058 = vsel %vm1047, %v1018, 0
      %v1061 = vsel %vm1047, %v1019, 0
      %v1064 = vsel %vm1047, %v1020, 0
      %v1067 = vsel %vm1047, %v1021, 0
      %v1070 = vsel %vm1047, %v1022, 0
      %v1073 = vsel %vm1047, %v1023, 0
      %v1076 = vsel %vm1047, %v1024, 0
      %v1079 = vsel %vm1047, %v1025, 0
      %v1082 = vsel %vm1047, %v1026, 0
      %v1085 = vsel %vm1047, %v1027, 0
      %v1088 = vsel %vm1047, %v1028, 0
      %v1091 = vsel %vm1047, %v1029, 0
      %v1094 = vsel %vm1047, %v1030, 0
      %v1097 = vsel %vm1047, %v1031, 0
      %v1100 = vsel %vm1047, %v1032, 0
      %v1103 = vsel %vm1047, %v1033, 0
      %v1106 = vsel %vm1047, %v1034, 0
      %v1109 = vsel %vm1047, %v1035, 0
      %v1112 = vsel %vm1047, %v1036, 0
      %v1115 = vsel %vm1047, %v1037, 0
      %v1118 = vsel %vm1047, %v1038, 0
      %v1121 = vsel %vm1047, %v1039, 0
      %v1124 = vsel %vm1047, %v1040, 0
      %v1127 = vsel %vm1047, %v1041, 0
      %v1130 = vsel %vm1047, %v1042, 0
      %v1133 = vsel %vm1047, %v1043, 0
      %v1136 = vsel %vm1047, %v1044, 0
      %v1139 = vsel %vm1047, %v1045, 0
      %v1142 = vsel %vm1047, %v1046, 0
      %vm1144 = vcmask 1043456
      %v1146 = vsel %vm1144, %v750, 0
      %1148 = vmatpush.msra.mxu0 0.0
      %1149 = vmatpush.msra.mxu0 0.0
      %1150 = vmatpush.msra.mxu0 0.0
      %1151 = vmatpush.msra.mxu0 0.0
      %1152 = vmatpush.msra.mxu0 0.0
      %1153 = vmatpush.msra.mxu0 0.0
      %1154 = vmatpush.msra.mxu0 0.0
      %1155 = vmatpush.msra.mxu0 0.0
      %1156 = vmatpush.msra.mxu0 0.0
      %1157 = vmatpush.msra.mxu0 0.0
      %1158 = vmatpush.msra.mxu0 0.0
      %1159 = vmatpush.msra.mxu0 0.0
      %1160 = vmatpush.msra.mxu0 0.0
      %1161 = vmatpush.msra.mxu0 0.0
      %1162 = vmatpush.msra.mxu0 %v1146
      %1163 = vmatpush.msra.mxu0 %v749
      %1164 = vmatmul.f32.gmra.mxu0 %v1049
      %v1165 = vpop.f32.mrf.mxu0
      %v1166 = vadd.f32 0.0, %v1165
      %1167 = vmatmul.f32.gmra.mxu0 %v1052
      %v1168 = vpop.f32.mrf.mxu0
      %v1169 = vadd.f32 0.0, %v1168
      %1170 = vmatmul.f32.gmra.mxu0 %v1055
      %v1171 = vpop.f32.mrf.mxu0
      %v1172 = vadd.f32 0.0, %v1171
      %1173 = vmatmul.f32.gmra.mxu0 %v1058
      %v1174 = vpop.f32.mrf.mxu0
      %v1175 = vadd.f32 0.0, %v1174
      %1176 = vmatmul.f32.gmra.mxu0 %v1061
      %v1177 = vpop.f32.mrf.mxu0
      %v1178 = vadd.f32 0.0, %v1177
      %1179 = vmatmul.f32.gmra.mxu0 %v1064
      %v1180 = vpop.f32.mrf.mxu0
      %v1181 = vadd.f32 0.0, %v1180
      %1182 = vmatmul.f32.gmra.mxu0 %v1067
      %v1183 = vpop.f32.mrf.mxu0
      %v1184 = vadd.f32 0.0, %v1183
      %1185 = vmatmul.f32.gmra.mxu0 %v1070
      %v1186 = vpop.f32.mrf.mxu0
      %v1187 = vadd.f32 0.0, %v1186
      %1188 = vmatmul.f32.gmra.mxu0 %v1073
      %v1189 = vpop.f32.mrf.mxu0
      %v1190 = vadd.f32 0.0, %v1189
      %1191 = vmatmul.f32.gmra.mxu0 %v1076
      %v1192 = vpop.f32.mrf.mxu0
      %v1193 = vadd.f32 0.0, %v1192
      %1194 = vmatmul.f32.gmra.mxu0 %v1079
      %v1195 = vpop.f32.mrf.mxu0
      %v1196 = vadd.f32 0.0, %v1195
      %1197 = vmatmul.f32.gmra.mxu0 %v1082
      %v1198 = vpop.f32.mrf.mxu0
      %v1199 = vadd.f32 0.0, %v1198
      %1200 = vmatmul.f32.gmra.mxu0 %v1085
      %v1201 = vpop.f32.mrf.mxu0
      %v1202 = vadd.f32 0.0, %v1201
      %1203 = vmatmul.f32.gmra.mxu0 %v1088
      %v1204 = vpop.f32.mrf.mxu0
      %v1205 = vadd.f32 0.0, %v1204
      %1206 = vmatmul.f32.gmra.mxu0 %v1091
      %v1207 = vpop.f32.mrf.mxu0
      %v1208 = vadd.f32 0.0, %v1207
      %1209 = vmatmul.f32.gmra.mxu0 %v1094
      %v1210 = vpop.f32.mrf.mxu0
      %v1211 = vadd.f32 0.0, %v1210
      %1212 = vmatmul.f32.gmra.mxu0 %v1097
      %v1213 = vpop.f32.mrf.mxu0
      %v1214 = vadd.f32 0.0, %v1213
      %1215 = vmatmul.f32.gmra.mxu0 %v1100
      %v1216 = vpop.f32.mrf.mxu0
      %v1217 = vadd.f32 0.0, %v1216
      %1218 = vmatmul.f32.gmra.mxu0 %v1103
      %v1219 = vpop.f32.mrf.mxu0
      %v1220 = vadd.f32 0.0, %v1219
      %1221 = vmatmul.f32.gmra.mxu0 %v1106
      %v1222 = vpop.f32.mrf.mxu0
      %v1223 = vadd.f32 0.0, %v1222
      %1224 = vmatmul.f32.gmra.mxu0 %v1109
      %v1225 = vpop.f32.mrf.mxu0
      %v1226 = vadd.f32 0.0, %v1225
      %1227 = vmatmul.f32.gmra.mxu0 %v1112
      %v1228 = vpop.f32.mrf.mxu0
      %v1229 = vadd.f32 0.0, %v1228
      %1230 = vmatmul.f32.gmra.mxu0 %v1115
      %v1231 = vpop.f32.mrf.mxu0
      %v1232 = vadd.f32 0.0, %v1231
      %1233 = vmatmul.f32.gmra.mxu0 %v1118
      %v1234 = vpop.f32.mrf.mxu0
      %v1235 = vadd.f32 0.0, %v1234
      %1236 = vmatmul.f32.gmra.mxu0 %v1121
      %v1237 = vpop.f32.mrf.mxu0
      %v1238 = vadd.f32 0.0, %v1237
      %1239 = vmatmul.f32.gmra.mxu0 %v1124
      %v1240 = vpop.f32.mrf.mxu0
      %v1241 = vadd.f32 0.0, %v1240
      %1242 = vmatmul.f32.gmra.mxu0 %v1127
      %v1243 = vpop.f32.mrf.mxu0
      %v1244 = vadd.f32 0.0, %v1243
      %1245 = vmatmul.f32.gmra.mxu0 %v1130
      %v1246 = vpop.f32.mrf.mxu0
      %v1247 = vadd.f32 0.0, %v1246
      %1248 = vmatmul.f32.gmra.mxu0 %v1133
      %v1249 = vpop.f32.mrf.mxu0
      %v1250 = vadd.f32 0.0, %v1249
      %1251 = vmatmul.f32.gmra.mxu0 %v1136
      %v1252 = vpop.f32.mrf.mxu0
      %v1253 = vadd.f32 0.0, %v1252
      %1254 = vmatmul.f32.gmra.mxu0 %v1139
      %v1255 = vpop.f32.mrf.mxu0
      %v1256 = vadd.f32 0.0, %v1255
      %1257 = vmatmul.f32.gmra.mxu0 %v1142
      %v1258 = vpop.f32.mrf.mxu0
      %v1259 = vadd.f32 0.0, %v1258
      %1260 = vdwg.mxu0
      %v1262 = vsel %vm1144, %v752, 0
      %1264 = vmatpush.msra.mxu0 0.0
      %1265 = vmatpush.msra.mxu0 0.0
      %1266 = vmatpush.msra.mxu0 0.0
      %1267 = vmatpush.msra.mxu0 0.0
      %1268 = vmatpush.msra.mxu0 0.0
      %1269 = vmatpush.msra.mxu0 0.0
      %1270 = vmatpush.msra.mxu0 0.0
      %1271 = vmatpush.msra.mxu0 0.0
      %1272 = vmatpush.msra.mxu0 0.0
      %1273 = vmatpush.msra.mxu0 0.0
      %1274 = vmatpush.msra.mxu0 0.0
      %1275 = vmatpush.msra.mxu0 0.0
      %1276 = vmatpush.msra.mxu0 0.0
      %1277 = vmatpush.msra.mxu0 0.0
      %1278 = vmatpush.msra.mxu0 %v1262
      %1279 = vmatpush.msra.mxu0 %v751
      %1280 = vmatmul.f32.gmra.mxu0 %v1049
      %v1281 = vpop.f32.mrf.mxu0
      %v1282 = vadd.f32 0.0, %v1281
      %1283 = vmatmul.f32.gmra.mxu0 %v1052
      %v1284 = vpop.f32.mrf.mxu0
      %v1285 = vadd.f32 0.0, %v1284
      %1286 = vmatmul.f32.gmra.mxu0 %v1055
      %v1287 = vpop.f32.mrf.mxu0
      %v1288 = vadd.f32 0.0, %v1287
      %1289 = vmatmul.f32.gmra.mxu0 %v1058
      %v1290 = vpop.f32.mrf.mxu0
      %v1291 = vadd.f32 0.0, %v1290
      %1292 = vmatmul.f32.gmra.mxu0 %v1061
      %v1293 = vpop.f32.mrf.mxu0
      %v1294 = vadd.f32 0.0, %v1293
      %1295 = vmatmul.f32.gmra.mxu0 %v1064
      %v1296 = vpop.f32.mrf.mxu0
      %v1297 = vadd.f32 0.0, %v1296
      %1298 = vmatmul.f32.gmra.mxu0 %v1067
      %v1299 = vpop.f32.mrf.mxu0
      %v1300 = vadd.f32 0.0, %v1299
      %1301 = vmatmul.f32.gmra.mxu0 %v1070
      %v1302 = vpop.f32.mrf.mxu0
      %v1303 = vadd.f32 0.0, %v1302
      %1304 = vmatmul.f32.gmra.mxu0 %v1073
      %v1305 = vpop.f32.mrf.mxu0
      %v1306 = vadd.f32 0.0, %v1305
      %1307 = vmatmul.f32.gmra.mxu0 %v1076
      %v1308 = vpop.f32.mrf.mxu0
      %v1309 = vadd.f32 0.0, %v1308
      %1310 = vmatmul.f32.gmra.mxu0 %v1079
      %v1311 = vpop.f32.mrf.mxu0
      %v1312 = vadd.f32 0.0, %v1311
      %1313 = vmatmul.f32.gmra.mxu0 %v1082
      %v1314 = vpop.f32.mrf.mxu0
      %v1315 = vadd.f32 0.0, %v1314
      %1316 = vmatmul.f32.gmra.mxu0 %v1085
      %v1317 = vpop.f32.mrf.mxu0
      %v1318 = vadd.f32 0.0, %v1317
      %1319 = vmatmul.f32.gmra.mxu0 %v1088
      %v1320 = vpop.f32.mrf.mxu0
      %v1321 = vadd.f32 0.0, %v1320
      %1322 = vmatmul.f32.gmra.mxu0 %v1091
      %v1323 = vpop.f32.mrf.mxu0
      %v1324 = vadd.f32 0.0, %v1323
      %1325 = vmatmul.f32.gmra.mxu0 %v1094
      %v1326 = vpop.f32.mrf.mxu0
      %v1327 = vadd.f32 0.0, %v1326
      %1328 = vmatmul.f32.gmra.mxu0 %v1097
      %v1329 = vpop.f32.mrf.mxu0
      %v1330 = vadd.f32 0.0, %v1329
      %1331 = vmatmul.f32.gmra.mxu0 %v1100
      %v1332 = vpop.f32.mrf.mxu0
      %v1333 = vadd.f32 0.0, %v1332
      %1334 = vmatmul.f32.gmra.mxu0 %v1103
      %v1335 = vpop.f32.mrf.mxu0
      %v1336 = vadd.f32 0.0, %v1335
      %1337 = vmatmul.f32.gmra.mxu0 %v1106
      %v1338 = vpop.f32.mrf.mxu0
      %v1339 = vadd.f32 0.0, %v1338
      %1340 = vmatmul.f32.gmra.mxu0 %v1109
      %v1341 = vpop.f32.mrf.mxu0
      %v1342 = vadd.f32 0.0, %v1341
      %1343 = vmatmul.f32.gmra.mxu0 %v1112
      %v1344 = vpop.f32.mrf.mxu0
      %v1345 = vadd.f32 0.0, %v1344
      %1346 = vmatmul.f32.gmra.mxu0 %v1115
      %v1347 = vpop.f32.mrf.mxu0
      %v1348 = vadd.f32 0.0, %v1347
      %1349 = vmatmul.f32.gmra.mxu0 %v1118
      %v1350 = vpop.f32.mrf.mxu0
      %v1351 = vadd.f32 0.0, %v1350
      %1352 = vmatmul.f32.gmra.mxu0 %v1121
      %v1353 = vpop.f32.mrf.mxu0
      %v1354 = vadd.f32 0.0, %v1353
      %1355 = vmatmul.f32.gmra.mxu0 %v1124
      %v1356 = vpop.f32.mrf.mxu0
      %v1357 = vadd.f32 0.0, %v1356
      %1358 = vmatmul.f32.gmra.mxu0 %v1127
      %v1359 = vpop.f32.mrf.mxu0
      %v1360 = vadd.f32 0.0, %v1359
      %1361 = vmatmul.f32.gmra.mxu0 %v1130
      %v1362 = vpop.f32.mrf.mxu0
      %v1363 = vadd.f32 0.0, %v1362
      %1364 = vmatmul.f32.gmra.mxu0 %v1133
      %v1365 = vpop.f32.mrf.mxu0
      %v1366 = vadd.f32 0.0, %v1365
      %1367 = vmatmul.f32.gmra.mxu0 %v1136
      %v1368 = vpop.f32.mrf.mxu0
      %v1369 = vadd.f32 0.0, %v1368
      %1370 = vmatmul.f32.gmra.mxu0 %v1139
      %v1371 = vpop.f32.mrf.mxu0
      %v1372 = vadd.f32 0.0, %v1371
      %1373 = vmatmul.f32.gmra.mxu0 %v1142
      %v1374 = vpop.f32.mrf.mxu0
      %v1375 = vadd.f32 0.0, %v1374
      %1376 = vdwg.mxu0
      %v1378 = vsel %vm1144, %v754, 0
      %1380 = vmatpush.msra.mxu0 0.0
      %1381 = vmatpush.msra.mxu0 0.0
      %1382 = vmatpush.msra.mxu0 0.0
      %1383 = vmatpush.msra.mxu0 0.0
      %1384 = vmatpush.msra.mxu0 0.0
      %1385 = vmatpush.msra.mxu0 0.0
      %1386 = vmatpush.msra.mxu0 0.0
      %1387 = vmatpush.msra.mxu0 0.0
      %1388 = vmatpush.msra.mxu0 0.0
      %1389 = vmatpush.msra.mxu0 0.0
      %1390 = vmatpush.msra.mxu0 0.0
      %1391 = vmatpush.msra.mxu0 0.0
      %1392 = vmatpush.msra.mxu0 0.0
      %1393 = vmatpush.msra.mxu0 0.0
      %1394 = vmatpush.msra.mxu0 %v1378
      %1395 = vmatpush.msra.mxu0 %v753
      %1396 = vmatmul.f32.gmra.mxu0 %v1049
      %v1397 = vpop.f32.mrf.mxu0
      %v1398 = vadd.f32 0.0, %v1397
      %1399 = vmatmul.f32.gmra.mxu0 %v1052
      %v1400 = vpop.f32.mrf.mxu0
      %v1401 = vadd.f32 0.0, %v1400
      %1402 = vmatmul.f32.gmra.mxu0 %v1055
      %v1403 = vpop.f32.mrf.mxu0
      %v1404 = vadd.f32 0.0, %v1403
      %1405 = vmatmul.f32.gmra.mxu0 %v1058
      %v1406 = vpop.f32.mrf.mxu0
      %v1407 = vadd.f32 0.0, %v1406
      %1408 = vmatmul.f32.gmra.mxu0 %v1061
      %v1409 = vpop.f32.mrf.mxu0
      %v1410 = vadd.f32 0.0, %v1409
      %1411 = vmatmul.f32.gmra.mxu0 %v1064
      %v1412 = vpop.f32.mrf.mxu0
      %v1413 = vadd.f32 0.0, %v1412
      %1414 = vmatmul.f32.gmra.mxu0 %v1067
      %v1415 = vpop.f32.mrf.mxu0
      %v1416 = vadd.f32 0.0, %v1415
      %1417 = vmatmul.f32.gmra.mxu0 %v1070
      %v1418 = vpop.f32.mrf.mxu0
      %v1419 = vadd.f32 0.0, %v1418
      %1420 = vmatmul.f32.gmra.mxu0 %v1073
      %v1421 = vpop.f32.mrf.mxu0
      %v1422 = vadd.f32 0.0, %v1421
      %1423 = vmatmul.f32.gmra.mxu0 %v1076
      %v1424 = vpop.f32.mrf.mxu0
      %v1425 = vadd.f32 0.0, %v1424
      %1426 = vmatmul.f32.gmra.mxu0 %v1079
      %v1427 = vpop.f32.mrf.mxu0
      %v1428 = vadd.f32 0.0, %v1427
      %1429 = vmatmul.f32.gmra.mxu0 %v1082
      %v1430 = vpop.f32.mrf.mxu0
      %v1431 = vadd.f32 0.0, %v1430
      %1432 = vmatmul.f32.gmra.mxu0 %v1085
      %v1433 = vpop.f32.mrf.mxu0
      %v1434 = vadd.f32 0.0, %v1433
      %1435 = vmatmul.f32.gmra.mxu0 %v1088
      %v1436 = vpop.f32.mrf.mxu0
      %v1437 = vadd.f32 0.0, %v1436
      %1438 = vmatmul.f32.gmra.mxu0 %v1091
      %v1439 = vpop.f32.mrf.mxu0
      %v1440 = vadd.f32 0.0, %v1439
      %1441 = vmatmul.f32.gmra.mxu0 %v1094
      %v1442 = vpop.f32.mrf.mxu0
      %v1443 = vadd.f32 0.0, %v1442
      %1444 = vmatmul.f32.gmra.mxu0 %v1097
      %v1445 = vpop.f32.mrf.mxu0
      %v1446 = vadd.f32 0.0, %v1445
      %1447 = vmatmul.f32.gmra.mxu0 %v1100
      %v1448 = vpop.f32.mrf.mxu0
      %v1449 = vadd.f32 0.0, %v1448
      %1450 = vmatmul.f32.gmra.mxu0 %v1103
      %v1451 = vpop.f32.mrf.mxu0
      %v1452 = vadd.f32 0.0, %v1451
      %1453 = vmatmul.f32.gmra.mxu0 %v1106
      %v1454 = vpop.f32.mrf.mxu0
      %v1455 = vadd.f32 0.0, %v1454
      %1456 = vmatmul.f32.gmra.mxu0 %v1109
      %v1457 = vpop.f32.mrf.mxu0
      %v1458 = vadd.f32 0.0, %v1457
      %1459 = vmatmul.f32.gmra.mxu0 %v1112
      %v1460 = vpop.f32.mrf.mxu0
      %v1461 = vadd.f32 0.0, %v1460
      %1462 = vmatmul.f32.gmra.mxu0 %v1115
      %v1463 = vpop.f32.mrf.mxu0
      %v1464 = vadd.f32 0.0, %v1463
      %1465 = vmatmul.f32.gmra.mxu0 %v1118
      %v1466 = vpop.f32.mrf.mxu0
      %v1467 = vadd.f32 0.0, %v1466
      %1468 = vmatmul.f32.gmra.mxu0 %v1121
      %v1469 = vpop.f32.mrf.mxu0
      %v1470 = vadd.f32 0.0, %v1469
      %1471 = vmatmul.f32.gmra.mxu0 %v1124
      %v1472 = vpop.f32.mrf.mxu0
      %v1473 = vadd.f32 0.0, %v1472
      %1474 = vmatmul.f32.gmra.mxu0 %v1127
      %v1475 = vpop.f32.mrf.mxu0
      %v1476 = vadd.f32 0.0, %v1475
      %1477 = vmatmul.f32.gmra.mxu0 %v1130
      %v1478 = vpop.f32.mrf.mxu0
      %v1479 = vadd.f32 0.0, %v1478
      %1480 = vmatmul.f32.gmra.mxu0 %v1133
      %v1481 = vpop.f32.mrf.mxu0
      %v1482 = vadd.f32 0.0, %v1481
      %1483 = vmatmul.f32.gmra.mxu0 %v1136
      %v1484 = vpop.f32.mrf.mxu0
      %v1485 = vadd.f32 0.0, %v1484
      %1486 = vmatmul.f32.gmra.mxu0 %v1139
      %v1487 = vpop.f32.mrf.mxu0
      %v1488 = vadd.f32 0.0, %v1487
      %1489 = vmatmul.f32.gmra.mxu0 %v1142
      %v1490 = vpop.f32.mrf.mxu0
      %v1491 = vadd.f32 0.0, %v1490
      %1492 = vdwg.mxu0
      %v1509 = vrot.slane %v1166, 1
      %v1510 = vrot.slane %v1172, 1
      %v1511 = vrot.slane %v1178, 1
      %v1512 = vrot.slane %v1184, 1
      %v1513 = vrot.slane %v1190, 1
      %v1514 = vrot.slane %v1196, 1
      %v1515 = vrot.slane %v1202, 1
      %v1516 = vrot.slane %v1208, 1
      %v1517 = vrot.slane %v1214, 1
      %v1518 = vrot.slane %v1220, 1
      %v1519 = vrot.slane %v1226, 1
      %v1520 = vrot.slane %v1232, 1
      %v1521 = vrot.slane %v1238, 1
      %v1522 = vrot.slane %v1244, 1
      %v1523 = vrot.slane %v1250, 1
      %v1524 = vrot.slane %v1256, 1
      %vm1557 = vcmask 1040384
      %v1558 = vrot.slane %v1166, 7
      %v1559 = vrot.slane %v1169, 7
      %v1560 = vsel %vm1557, %v1558, %v1559
      %v1561 = vrot.slane %v1172, 7
      %v1562 = vrot.slane %v1175, 7
      %v1563 = vsel %vm1557, %v1561, %v1562
      %v1564 = vrot.slane %v1178, 7
      %v1565 = vrot.slane %v1181, 7
      %v1566 = vsel %vm1557, %v1564, %v1565
      %v1567 = vrot.slane %v1184, 7
      %v1568 = vrot.slane %v1187, 7
      %v1569 = vsel %vm1557, %v1567, %v1568
      %v1570 = vrot.slane %v1190, 7
      %v1571 = vrot.slane %v1193, 7
      %v1572 = vsel %vm1557, %v1570, %v1571
      %v1573 = vrot.slane %v1196, 7
      %v1574 = vrot.slane %v1199, 7
      %v1575 = vsel %vm1557, %v1573, %v1574
      %v1576 = vrot.slane %v1202, 7
      %v1577 = vrot.slane %v1205, 7
      %v1578 = vsel %vm1557, %v1576, %v1577
      %v1579 = vrot.slane %v1208, 7
      %v1580 = vrot.slane %v1211, 7
      %v1581 = vsel %vm1557, %v1579, %v1580
      %v1582 = vrot.slane %v1214, 7
      %v1583 = vrot.slane %v1217, 7
      %v1584 = vsel %vm1557, %v1582, %v1583
      %v1585 = vrot.slane %v1220, 7
      %v1586 = vrot.slane %v1223, 7
      %v1587 = vsel %vm1557, %v1585, %v1586
      %v1588 = vrot.slane %v1226, 7
      %v1589 = vrot.slane %v1229, 7
      %v1590 = vsel %vm1557, %v1588, %v1589
      %v1591 = vrot.slane %v1232, 7
      %v1592 = vrot.slane %v1235, 7
      %v1593 = vsel %vm1557, %v1591, %v1592
      %v1594 = vrot.slane %v1238, 7
      %v1595 = vrot.slane %v1241, 7
      %v1596 = vsel %vm1557, %v1594, %v1595
      %v1597 = vrot.slane %v1244, 7
      %v1598 = vrot.slane %v1247, 7
      %v1599 = vsel %vm1557, %v1597, %v1598
      %v1600 = vrot.slane %v1250, 7
      %v1601 = vrot.slane %v1253, 7
      %v1602 = vsel %vm1557, %v1600, %v1601
      %v1603 = vrot.slane %v1256, 7
      %v1604 = vrot.slane %v1259, 7
      %v1605 = vsel %vm1557, %v1603, %v1604
      %v1638 = vsel %vm1557, %v1509, %v1558
      %v1639 = vsel %vm1557, %v1510, %v1561
      %v1640 = vsel %vm1557, %v1511, %v1564
      %v1641 = vsel %vm1557, %v1512, %v1567
      %v1642 = vsel %vm1557, %v1513, %v1570
      %v1643 = vsel %vm1557, %v1514, %v1573
      %v1644 = vsel %vm1557, %v1515, %v1576
      %v1645 = vsel %vm1557, %v1516, %v1579
      %v1646 = vsel %vm1557, %v1517, %v1582
      %v1647 = vsel %vm1557, %v1518, %v1585
      %v1648 = vsel %vm1557, %v1519, %v1588
      %v1649 = vsel %vm1557, %v1520, %v1591
      %v1650 = vsel %vm1557, %v1521, %v1594
      %v1651 = vsel %vm1557, %v1522, %v1597
      %v1652 = vsel %vm1557, %v1523, %v1600
      %v1653 = vsel %vm1557, %v1524, %v1603
      %vm1686 = vcmask 1046528
      %v1687 = vrot.slane %v1398, 1
      %v1688 = vrot.slane %v1401, 1
      %v1689 = vsel %vm1686, %v1687, %v1688
      %v1690 = vrot.slane %v1404, 1
      %v1691 = vrot.slane %v1407, 1
      %v1692 = vsel %vm1686, %v1690, %v1691
      %v1693 = vrot.slane %v1410, 1
      %v1694 = vrot.slane %v1413, 1
      %v1695 = vsel %vm1686, %v1693, %v1694
      %v1696 = vrot.slane %v1416, 1
      %v1697 = vrot.slane %v1419, 1
      %v1698 = vsel %vm1686, %v1696, %v1697
      %v1699 = vrot.slane %v1422, 1
      %v1700 = vrot.slane %v1425, 1
      %v1701 = vsel %vm1686, %v1699, %v1700
      %v1702 = vrot.slane %v1428, 1
      %v1703 = vrot.slane %v1431, 1
      %v1704 = vsel %vm1686, %v1702, %v1703
      %v1705 = vrot.slane %v1434, 1
      %v1706 = vrot.slane %v1437, 1
      %v1707 = vsel %vm1686, %v1705, %v1706
      %v1708 = vrot.slane %v1440, 1
      %v1709 = vrot.slane %v1443, 1
      %v1710 = vsel %vm1686, %v1708, %v1709
      %v1711 = vrot.slane %v1446, 1
      %v1712 = vrot.slane %v1449, 1
      %v1713 = vsel %vm1686, %v1711, %v1712
      %v1714 = vrot.slane %v1452, 1
      %v1715 = vrot.slane %v1455, 1
      %v1716 = vsel %vm1686, %v1714, %v1715
      %v1717 = vrot.slane %v1458, 1
      %v1718 = vrot.slane %v1461, 1
      %v1719 = vsel %vm1686, %v1717, %v1718
      %v1720 = vrot.slane %v1464, 1
      %v1721 = vrot.slane %v1467, 1
      %v1722 = vsel %vm1686, %v1720, %v1721
      %v1723 = vrot.slane %v1470, 1
      %v1724 = vrot.slane %v1473, 1
      %v1725 = vsel %vm1686, %v1723, %v1724
      %v1726 = vrot.slane %v1476, 1
      %v1727 = vrot.slane %v1479, 1
      %v1728 = vsel %vm1686, %v1726, %v1727
      %v1729 = vrot.slane %v1482, 1
      %v1730 = vrot.slane %v1485, 1
      %v1731 = vsel %vm1686, %v1729, %v1730
      %v1732 = vrot.slane %v1488, 1
      %v1733 = vrot.slane %v1491, 1
      %v1734 = vsel %vm1686, %v1732, %v1733
      %v1767 = vrot.slane %v1401, 7
      %v1768 = vrot.slane %v1407, 7
      %v1769 = vrot.slane %v1413, 7
      %v1770 = vrot.slane %v1419, 7
      %v1771 = vrot.slane %v1425, 7
      %v1772 = vrot.slane %v1431, 7
      %v1773 = vrot.slane %v1437, 7
      %v1774 = vrot.slane %v1443, 7
      %v1775 = vrot.slane %v1449, 7
      %v1776 = vrot.slane %v1455, 7
      %v1777 = vrot.slane %v1461, 7
      %v1778 = vrot.slane %v1467, 7
      %v1779 = vrot.slane %v1473, 7
      %v1780 = vrot.slane %v1479, 7
      %v1781 = vrot.slane %v1485, 7
      %v1782 = vrot.slane %v1491, 7
      %v1799 = vsel %vm1686, %v1688, %v1767
      %v1800 = vsel %vm1686, %v1691, %v1768
      %v1801 = vsel %vm1686, %v1694, %v1769
      %v1802 = vsel %vm1686, %v1697, %v1770
      %v1803 = vsel %vm1686, %v1700, %v1771
      %v1804 = vsel %vm1686, %v1703, %v1772
      %v1805 = vsel %vm1686, %v1706, %v1773
      %v1806 = vsel %vm1686, %v1709, %v1774
      %v1807 = vsel %vm1686, %v1712, %v1775
      %v1808 = vsel %vm1686, %v1715, %v1776
      %v1809 = vsel %vm1686, %v1718, %v1777
      %v1810 = vsel %vm1686, %v1721, %v1778
      %v1811 = vsel %vm1686, %v1724, %v1779
      %v1812 = vsel %vm1686, %v1727, %v1780
      %v1813 = vsel %vm1686, %v1730, %v1781
      %v1814 = vsel %vm1686, %v1733, %v1782
      %v1815 = vadd.f32 %v1638, %v1282
      %v1816 = vadd.f32 %v1560, %v1285
      %v1817 = vadd.f32 %v1639, %v1288
      %v1818 = vadd.f32 %v1563, %v1291
      %v1819 = vadd.f32 %v1640, %v1294
      %v1820 = vadd.f32 %v1566, %v1297
      %v1821 = vadd.f32 %v1641, %v1300
      %v1822 = vadd.f32 %v1569, %v1303
      %v1823 = vadd.f32 %v1642, %v1306
      %v1824 = vadd.f32 %v1572, %v1309
      %v1825 = vadd.f32 %v1643, %v1312
      %v1826 = vadd.f32 %v1575, %v1315
      %v1827 = vadd.f32 %v1644, %v1318
      %v1828 = vadd.f32 %v1578, %v1321
      %v1829 = vadd.f32 %v1645, %v1324
      %v1830 = vadd.f32 %v1581, %v1327
      %v1831 = vadd.f32 %v1646, %v1330
      %v1832 = vadd.f32 %v1584, %v1333
      %v1833 = vadd.f32 %v1647, %v1336
      %v1834 = vadd.f32 %v1587, %v1339
      %v1835 = vadd.f32 %v1648, %v1342
      %v1836 = vadd.f32 %v1590, %v1345
      %v1837 = vadd.f32 %v1649, %v1348
      %v1838 = vadd.f32 %v1593, %v1351
      %v1839 = vadd.f32 %v1650, %v1354
      %v1840 = vadd.f32 %v1596, %v1357
      %v1841 = vadd.f32 %v1651, %v1360
      %v1842 = vadd.f32 %v1599, %v1363
      %v1843 = vadd.f32 %v1652, %v1366
      %v1844 = vadd.f32 %v1602, %v1369
      %v1845 = vadd.f32 %v1653, %v1372
      %v1846 = vadd.f32 %v1605, %v1375
      %v1847 = vadd.f32 %v1815, %v1689
      %v1848 = vadd.f32 %v1816, %v1799
      %v1849 = vadd.f32 %v1817, %v1692
      %v1850 = vadd.f32 %v1818, %v1800
      %v1851 = vadd.f32 %v1819, %v1695
      %v1852 = vadd.f32 %v1820, %v1801
      %v1853 = vadd.f32 %v1821, %v1698
      %v1854 = vadd.f32 %v1822, %v1802
      %v1855 = vadd.f32 %v1823, %v1701
      %v1856 = vadd.f32 %v1824, %v1803
      %v1857 = vadd.f32 %v1825, %v1704
      %v1858 = vadd.f32 %v1826, %v1804
      %v1859 = vadd.f32 %v1827, %v1707
      %v1860 = vadd.f32 %v1828, %v1805
      %v1861 = vadd.f32 %v1829, %v1710
      %v1862 = vadd.f32 %v1830, %v1806
      %v1863 = vadd.f32 %v1831, %v1713
      %v1864 = vadd.f32 %v1832, %v1807
      %v1865 = vadd.f32 %v1833, %v1716
      %v1866 = vadd.f32 %v1834, %v1808
      %v1867 = vadd.f32 %v1835, %v1719
      %v1868 = vadd.f32 %v1836, %v1809
      %v1869 = vadd.f32 %v1837, %v1722
      %v1870 = vadd.f32 %v1838, %v1810
      %v1871 = vadd.f32 %v1839, %v1725
      %v1872 = vadd.f32 %v1840, %v1811
      %v1873 = vadd.f32 %v1841, %v1728
      %v1874 = vadd.f32 %v1842, %v1812
      %v1875 = vadd.f32 %v1843, %v1731
      %v1876 = vadd.f32 %v1844, %v1813
      %v1877 = vadd.f32 %v1845, %v1734
      %v1878 = vadd.f32 %v1846, %v1814
      %1879 = vst.msk [vmem:[%s512] sm:$0xff] %vm981, %v1847
      %1880 = vst.msk [vmem:[%s512 + $0x8] sm:$0xff] %vm981, %v1848
      %1881 = vst.msk [vmem:[%s512 + $0x10] sm:$0xff] %vm981, %v1849
      %1882 = vst.msk [vmem:[%s512 + $0x18] sm:$0xff] %vm981, %v1850
      %1883 = vst.msk [vmem:[%s512 + $0x20] sm:$0xff] %vm981, %v1851
      %1884 = vst.msk [vmem:[%s512 + $0x28] sm:$0xff] %vm981, %v1852
      %1885 = vst.msk [vmem:[%s512 + $0x30] sm:$0xff] %vm981, %v1853
      %1886 = vst.msk [vmem:[%s512 + $0x38] sm:$0xff] %vm981, %v1854
      %1887 = vst.msk [vmem:[%s512 + $0x40] sm:$0xff] %vm981, %v1855
      %1888 = vst.msk [vmem:[%s512 + $0x48] sm:$0xff] %vm981, %v1856
      %1889 = vst.msk [vmem:[%s512 + $0x50] sm:$0xff] %vm981, %v1857
      %1890 = vst.msk [vmem:[%s512 + $0x58] sm:$0xff] %vm981, %v1858
      %1891 = vst.msk [vmem:[%s512 + $0x60] sm:$0xff] %vm981, %v1859
      %1892 = vst.msk [vmem:[%s512 + $0x68] sm:$0xff] %vm981, %v1860
      %1893 = vst.msk [vmem:[%s512 + $0x70] sm:$0xff] %vm981, %v1861
      %1894 = vst.msk [vmem:[%s512 + $0x78] sm:$0xff] %vm981, %v1862
      %1895 = vst.msk [vmem:[%s512 + $0x80] sm:$0xff] %vm981, %v1863
      %1896 = vst.msk [vmem:[%s512 + $0x88] sm:$0xff] %vm981, %v1864
      %1897 = vst.msk [vmem:[%s512 + $0x90] sm:$0xff] %vm981, %v1865
      %1898 = vst.msk [vmem:[%s512 + $0x98] sm:$0xff] %vm981, %v1866
      %1899 = vst.msk [vmem:[%s512 + $0xa0] sm:$0xff] %vm981, %v1867
      %1900 = vst.msk [vmem:[%s512 + $0xa8] sm:$0xff] %vm981, %v1868
      %1901 = vst.msk [vmem:[%s512 + $0xb0] sm:$0xff] %vm981, %v1869
      %1902 = vst.msk [vmem:[%s512 + $0xb8] sm:$0xff] %vm981, %v1870
      %1903 = vst.msk [vmem:[%s512 + $0xc0] sm:$0xff] %vm981, %v1871
      %1904 = vst.msk [vmem:[%s512 + $0xc8] sm:$0xff] %vm981, %v1872
      %1905 = vst.msk [vmem:[%s512 + $0xd0] sm:$0xff] %vm981, %v1873
      %1906 = vst.msk [vmem:[%s512 + $0xd8] sm:$0xff] %vm981, %v1874
      %1907 = vst.msk [vmem:[%s512 + $0xe0] sm:$0xff] %vm981, %v1875
      %1908 = vst.msk [vmem:[%s512 + $0xe8] sm:$0xff] %vm981, %v1876
      %1909 = vst.msk [vmem:[%s512 + $0xf0] sm:$0xff] %vm981, %v1877
      %1910 = vst.msk [vmem:[%s512 + $0xf8] sm:$0xff] %vm981, %v1878
      %v1911 = vsel %vm981, %v1847, 0.0
      %v1912 = vsel %vm981, %v1848, 0.0
      %v1913 = vadd.f32 %v1911, %v1912
      %v1914 = vsel %vm981, %v1849, 0.0
      %v1915 = vadd.f32 %v1913, %v1914
      %v1916 = vsel %vm981, %v1850, 0.0
      %v1917 = vadd.f32 %v1915, %v1916
      %v1918 = vsel %vm981, %v1851, 0.0
      %v1919 = vadd.f32 %v1917, %v1918
      %v1920 = vsel %vm981, %v1852, 0.0
      %v1921 = vadd.f32 %v1919, %v1920
      %v1922 = vsel %vm981, %v1853, 0.0
      %v1923 = vadd.f32 %v1921, %v1922
      %v1924 = vsel %vm981, %v1854, 0.0
      %v1925 = vadd.f32 %v1923, %v1924
      %v1926 = vsel %vm981, %v1855, 0.0
      %v1927 = vadd.f32 %v1925, %v1926
      %v1928 = vsel %vm981, %v1856, 0.0
      %v1929 = vadd.f32 %v1927, %v1928
      %v1930 = vsel %vm981, %v1857, 0.0
      %v1931 = vadd.f32 %v1929, %v1930
      %v1932 = vsel %vm981, %v1858, 0.0
      %v1933 = vadd.f32 %v1931, %v1932
      %v1934 = vsel %vm981, %v1859, 0.0
      %v1935 = vadd.f32 %v1933, %v1934
      %v1936 = vsel %vm981, %v1860, 0.0
      %v1937 = vadd.f32 %v1935, %v1936
      %v1938 = vsel %vm981, %v1861, 0.0
      %v1939 = vadd.f32 %v1937, %v1938
      %v1940 = vsel %vm981, %v1862, 0.0
      %v1941 = vadd.f32 %v1939, %v1940
      %v1942 = vsel %vm981, %v1863, 0.0
      %v1943 = vadd.f32 %v1941, %v1942
      %v1944 = vsel %vm981, %v1864, 0.0
      %v1945 = vadd.f32 %v1943, %v1944
      %v1946 = vsel %vm981, %v1865, 0.0
      %v1947 = vadd.f32 %v1945, %v1946
      %v1948 = vsel %vm981, %v1866, 0.0
      %v1949 = vadd.f32 %v1947, %v1948
      %v1950 = vsel %vm981, %v1867, 0.0
      %v1951 = vadd.f32 %v1949, %v1950
      %v1952 = vsel %vm981, %v1868, 0.0
      %v1953 = vadd.f32 %v1951, %v1952
      %v1954 = vsel %vm981, %v1869, 0.0
      %v1955 = vadd.f32 %v1953, %v1954
      %v1956 = vsel %vm981, %v1870, 0.0
      %v1957 = vadd.f32 %v1955, %v1956
      %v1958 = vsel %vm981, %v1871, 0.0
      %v1959 = vadd.f32 %v1957, %v1958
      %v1960 = vsel %vm981, %v1872, 0.0
      %v1961 = vadd.f32 %v1959, %v1960
      %v1962 = vsel %vm981, %v1873, 0.0
      %v1963 = vadd.f32 %v1961, %v1962
      %v1964 = vsel %vm981, %v1874, 0.0
      %v1965 = vadd.f32 %v1963, %v1964
      %v1966 = vsel %vm981, %v1875, 0.0
      %v1967 = vadd.f32 %v1965, %v1966
      %v1968 = vsel %vm981, %v1876, 0.0
      %v1969 = vadd.f32 %v1967, %v1968
      %v1970 = vsel %vm981, %v1877, 0.0
      %v1971 = vadd.f32 %v1969, %v1970
      %v1972 = vsel %vm981, %v1878, 0.0
      %v1973 = vadd.f32 %v1971, %v1972
      %v1974 = vrot.slane %v1973, 4
      %v1975 = vadd.f32 %v1973, %v1974
      %v1976 = vrot.slane %v1975, 2
      %v1977 = vadd.f32 %v1975, %v1976
      %v1978 = vrot.slane %v1977, 1
      %v1979 = vadd.f32 %v1977, %v1978
      %v1980 = vmul.f32 %v1847, %v1847
      %v1981 = vmul.f32 %v1848, %v1848
      %v1982 = vmul.f32 %v1849, %v1849
      %v1983 = vmul.f32 %v1850, %v1850
      %v1984 = vmul.f32 %v1851, %v1851
      %v1985 = vmul.f32 %v1852, %v1852
      %v1986 = vmul.f32 %v1853, %v1853
      %v1987 = vmul.f32 %v1854, %v1854
      %v1988 = vmul.f32 %v1855, %v1855
      %v1989 = vmul.f32 %v1856, %v1856
      %v1990 = vmul.f32 %v1857, %v1857
      %v1991 = vmul.f32 %v1858, %v1858
      %v1992 = vmul.f32 %v1859, %v1859
      %v1993 = vmul.f32 %v1860, %v1860
      %v1994 = vmul.f32 %v1861, %v1861
      %v1995 = vmul.f32 %v1862, %v1862
      %v1996 = vmul.f32 %v1863, %v1863
      %v1997 = vmul.f32 %v1864, %v1864
      %v1998 = vmul.f32 %v1865, %v1865
      %v1999 = vmul.f32 %v1866, %v1866
      %v2000 = vmul.f32 %v1867, %v1867
      %v2001 = vmul.f32 %v1868, %v1868
      %v2002 = vmul.f32 %v1869, %v1869
      %v2003 = vmul.f32 %v1870, %v1870
      %v2004 = vmul.f32 %v1871, %v1871
      %v2005 = vmul.f32 %v1872, %v1872
      %v2006 = vmul.f32 %v1873, %v1873
      %v2007 = vmul.f32 %v1874, %v1874
      %v2008 = vmul.f32 %v1875, %v1875
      %v2009 = vmul.f32 %v1876, %v1876
      %v2010 = vmul.f32 %v1877, %v1877
      %v2011 = vmul.f32 %v1878, %v1878
      %v2012 = vsel %vm981, %v1980, 0.0
      %v2013 = vsel %vm981, %v1981, 0.0
      %v2014 = vadd.f32 %v2012, %v2013
      %v2015 = vsel %vm981, %v1982, 0.0
      %v2016 = vadd.f32 %v2014, %v2015
      %v2017 = vsel %vm981, %v1983, 0.0
      %v2018 = vadd.f32 %v2016, %v2017
      %v2019 = vsel %vm981, %v1984, 0.0
      %v2020 = vadd.f32 %v2018, %v2019
      %v2021 = vsel %vm981, %v1985, 0.0
      %v2022 = vadd.f32 %v2020, %v2021
      %v2023 = vsel %vm981, %v1986, 0.0
      %v2024 = vadd.f32 %v2022, %v2023
      %v2025 = vsel %vm981, %v1987, 0.0
      %v2026 = vadd.f32 %v2024, %v2025
      %v2027 = vsel %vm981, %v1988, 0.0
      %v2028 = vadd.f32 %v2026, %v2027
      %v2029 = vsel %vm981, %v1989, 0.0
      %v2030 = vadd.f32 %v2028, %v2029
      %v2031 = vsel %vm981, %v1990, 0.0
      %v2032 = vadd.f32 %v2030, %v2031
      %v2033 = vsel %vm981, %v1991, 0.0
      %v2034 = vadd.f32 %v2032, %v2033
      %v2035 = vsel %vm981, %v1992, 0.0
      %v2036 = vadd.f32 %v2034, %v2035
      %v2037 = vsel %vm981, %v1993, 0.0
      %v2038 = vadd.f32 %v2036, %v2037
      %v2039 = vsel %vm981, %v1994, 0.0
      %v2040 = vadd.f32 %v2038, %v2039
      %v2041 = vsel %vm981, %v1995, 0.0
      %v2042 = vadd.f32 %v2040, %v2041
      %v2043 = vsel %vm981, %v1996, 0.0
      %v2044 = vadd.f32 %v2042, %v2043
      %v2045 = vsel %vm981, %v1997, 0.0
      %v2046 = vadd.f32 %v2044, %v2045
      %v2047 = vsel %vm981, %v1998, 0.0
      %v2048 = vadd.f32 %v2046, %v2047
      %v2049 = vsel %vm981, %v1999, 0.0
      %v2050 = vadd.f32 %v2048, %v2049
      %v2051 = vsel %vm981, %v2000, 0.0
      %v2052 = vadd.f32 %v2050, %v2051
      %v2053 = vsel %vm981, %v2001, 0.0
      %v2054 = vadd.f32 %v2052, %v2053
      %v2055 = vsel %vm981, %v2002, 0.0
      %v2056 = vadd.f32 %v2054, %v2055
      %v2057 = vsel %vm981, %v2003, 0.0
      %v2058 = vadd.f32 %v2056, %v2057
      %v2059 = vsel %vm981, %v2004, 0.0
      %v2060 = vadd.f32 %v2058, %v2059
      %v2061 = vsel %vm981, %v2005, 0.0
      %v2062 = vadd.f32 %v2060, %v2061
      %v2063 = vsel %vm981, %v2006, 0.0
      %v2064 = vadd.f32 %v2062, %v2063
      %v2065 = vsel %vm981, %v2007, 0.0
      %v2066 = vadd.f32 %v2064, %v2065
      %v2067 = vsel %vm981, %v2008, 0.0
      %v2068 = vadd.f32 %v2066, %v2067
      %v2069 = vsel %vm981, %v2009, 0.0
      %v2070 = vadd.f32 %v2068, %v2069
      %v2071 = vsel %vm981, %v2010, 0.0
      %v2072 = vadd.f32 %v2070, %v2071
      %v2073 = vsel %vm981, %v2011, 0.0
      %v2074 = vadd.f32 %v2072, %v2073
      %v2075 = vrot.slane %v2074, 4
      %v2076 = vadd.f32 %v2074, %v2075
      %v2077 = vrot.slane %v2076, 2
      %v2078 = vadd.f32 %v2076, %v2077
      %v2079 = vrot.slane %v2078, 1
      %v2080 = vadd.f32 %v2078, %v2079
      %v2081 = vsel %vm1557, %v1979, %v2080
      %vm2082 = vcmask 25600
      %2083 = vst.msk [vmem:[%s520] sm:$0x3] %vm2082, %v2081
      %s2084 = smul.u32 16, %s25
      %p2085 = scmp.lt.s32.totalorder %s24, 1
      %s2086 = scalar_select %p2085, %s24, 1
      %p2087 = scmp.lt.s32.totalorder %s2084, 15
      %s2088 = scalar_select %p2087, %s2084, 15
      %s2089 = smul.addr %s2088, 2
      %s2090 = smul.addr %s2086, 32
      %s2091 = sadd.s32 %s2089, %s2090
      %s2092 = smul.addr %s2091, 8
      %s2093 = scalar_lea.vmem %s7, %s2092
      %p2094 = scmp.lt.s32.totalorder %s24, 1
      %s2095 = scalar_select %p2094, %s24, 1
      %p2096 = scmp.lt.s32.totalorder %s25, 0
      %s2097 = scalar_select %p2096, %s25, 0
      %s2098 = sadd.s32 %s2097, %s2095
      %s2099 = smul.addr %s2098, 2
      %s2100 = scalar_lea.vmem %s8, %s2099
      // Predicated region
      $region49: #{residual_block.4} parent=47 // pred_check
        %p2101 = pneg %p244
      $region50: #{residual_block.4} parent=47 // pred_check_branch
        %2103 = sbr.rel (%p2101) target = $region52
      $region51: #{residual_block.4} parent=47 // pred_region
        %s2104 = smul.u32 16, %s25
      $region52: #{residual_block.4} parent=47 // pred_fallthru
        _
      // Predicated region
      $region53: #{residual_block.4} parent=47 // pred_check
        %p2105 = pneg %p272
      $region54: #{residual_block.4} parent=47 // pred_check_branch
        %2107 = sbr.rel (%p2105) target = $region56
      $region55: #{residual_block.4} parent=47 // pred_region
        _
      $region56: #{residual_block.4} parent=47 // pred_fallthru
        _
    $region48: #{residual_block.4} parent=5 // pred_fallthru
      _
    %p2108 = scmp.le.s32.totalorder 2, %s15
    // Predicated region
    $region57: #{residual_block.4} parent=5 // pred_check
      %p2109 = pneg %p2108
    $region58: #{residual_block.4} parent=5 // pred_check_branch
      %2111 = sbr.rel (%p2109) target = $region60
    $region59: #{residual_block.4} parent=5 // pred_region
      %s2112 = ssub.s32 %s15, 2
      // Predicated region
      $region61: #{residual_block.4} parent=59 // pred_check
        %p2113 = pneg %p250
      $region62: #{residual_block.4} parent=59 // pred_check_branch
        %2115 = sbr.rel (%p2113) target = $region64
      $region63: #{residual_block.4} parent=59 // pred_region
        %s2116 = smul.u32 16, %s27
        %p2117 = scmp.lt.s32.totalorder %s26, 1
        %s2118 = scalar_select %p2117, %s26, 1
        %p2119 = scmp.lt.s32.totalorder %s2116, 15
        %s2120 = scalar_select %p2119, %s2116, 15
        %s2121 = smul.addr %s2120, 2
        %s2122 = smul.addr %s2118, 32
        %s2123 = sadd.s32 %s2121, %s2122
        %s2124 = smul.addr %s2123, 8
        %s2125 = scalar_lea.vmem %s7, %s2124
      $region64: #{residual_block.4} parent=59 // pred_fallthru
        _
      // Predicated region
      $region65: #{residual_block.4} parent=59 // pred_check
        %p2126 = pneg %p278
      $region66: #{residual_block.4} parent=59 // pred_check_branch
        %2128 = sbr.rel (%p2126) target = $region68
      $region67: #{residual_block.4} parent=59 // pred_region
        %p2129 = scmp.lt.s32.totalorder %s26, 1
        %s2130 = scalar_select %p2129, %s26, 1
        %p2131 = scmp.lt.s32.totalorder %s27, 0
        %s2132 = scalar_select %p2131, %s27, 0
        %s2133 = sadd.s32 %s2132, %s2130
        %s2134 = smul.addr %s2133, 2
        %s2135 = scalar_lea.vmem %s8, %s2134
      $region68: #{residual_block.4} parent=59 // pred_fallthru
        _
    $region60: #{residual_block.4} parent=5 // pred_fallthru
      _
  $region6: #{residual_block.4} parent=0 // loop_footer
    %s19 = sadd.s32 1, %s15
  $region7: #{residual_block.4} parent=0 // loop_footer_branch
    %14 = sbr.rel target = $region3
  $region8: #{residual_block.4} parent=0 // loop_exit
    _

</llo_original>
